<compile_context>
chip_gen: v6e
topology: v6e:2x2x1
jax: 0.10.0
libtpu: 0.0.40
codegen_flags: <defaults>
</compile_context>

<pallas_src>
import math
import functools

import jax
import jax.numpy as jnp
from jax.experimental import pallas as pl
from jax.experimental.pallas import tpu as pltpu

LN_EPS = 1e-5


def _layernorm(h, gamma, beta):
    # h: (M, E) f32, gamma/beta: (1, E) f32
    mu = jnp.mean(h, axis=-1, keepdims=True)
    var = jnp.mean((h - mu) ** 2, axis=-1, keepdims=True)
    return (h - mu) * jax.lax.rsqrt(var + LN_EPS) * gamma + beta


def _gelu_tanh(x):
    c = math.sqrt(2.0 / math.pi)
    return 0.5 * x * (1.0 + jnp.tanh(c * (x + 0.044715 * x * x * x)))


def _residual_block_kernel(num_heads, mlp_chunk,
                           x_ref,
                           ln1_g_ref, ln1_b_ref,
                           wqkv_ref, bqkv_ref,
                           wo_ref, bo_ref,
                           ln2_g_ref, ln2_b_ref,
                           w1_ref, b1_ref,
                           w2_ref, b2_ref,
                           o_ref):
    Bb, T, E = x_ref.shape
    H = num_heads
    hd = E // H
    scale = 1.0 / math.sqrt(hd)

    x = x_ref[...].astype(jnp.float32)            # (Bb, T, E)
    x2d = x.reshape(Bb * T, E)                    # tall M dim for the MXU

    # ---- sub-block 1: x = x + Attention(LN1(x)) ------------------------------
    ln1 = _layernorm(x2d, ln1_g_ref[...], ln1_b_ref[...])               # f32
    qkv = jnp.dot(ln1.astype(jnp.bfloat16), wqkv_ref[...],
                  preferred_element_type=jnp.float32) + bqkv_ref[...]   # (M, 3E)

    # Causal mask built once, broadcast over batch (and heads).
    row = jax.lax.broadcasted_iota(jnp.int32, (1, T, T), 1)
    col = jax.lax.broadcasted_iota(jnp.int32, (1, T, T), 2)
    causal = row >= col                                                  # (1, T, T)

    # Attention core per head (K=hd contraction is inherent to MHA); heads are
    # merged ONCE afterwards so the output projection is one K=E dot.
    # TODO(synk): switch to lax.fori_loop + scratch accumulation for large H.
    heads_out = []
    for h in range(H):
        lo = h * hd
        qs = qkv[:, lo:lo + hd].astype(jnp.bfloat16).reshape(Bb, T, hd)
        ks = qkv[:, E + lo:E + lo + hd].astype(jnp.bfloat16).reshape(Bb, T, hd)
        vs = qkv[:, 2 * E + lo:2 * E + lo + hd].astype(jnp.bfloat16).reshape(Bb, T, hd)

        # K-transpose folded into the contraction.
        s = jnp.einsum('bqd,bkd->bqk', qs, ks,
                       preferred_element_type=jnp.float32) * scale      # (Bb,T,T)
        s = jnp.where(causal, s, -1e30)
        s = s - jnp.max(s, axis=-1, keepdims=True)
        p = jnp.exp(s)
        p = p * pl.reciprocal(jnp.sum(p, axis=-1, keepdims=True), approx=True)
        heads_out.append(jnp.einsum('bqk,bkd->bqd', p.astype(jnp.bfloat16), vs,
                                    preferred_element_type=jnp.float32))

    o_all = jnp.concatenate(heads_out, axis=-1).reshape(Bb * T, E)       # merge heads once
    proj = jnp.dot(o_all.astype(jnp.bfloat16), wo_ref[...],
                   preferred_element_type=jnp.float32)                   # single K=E dot
    x1 = x2d + proj + bo_ref[...]                                        # residual (f32)

    # ---- sub-block 2: x = x + MLP(LN2(x)), hidden dim blocked ----------------
    ln2 = _layernorm(x1, ln2_g_ref[...], ln2_b_ref[...]).astype(jnp.bfloat16)
    F = w1_ref.shape[1]                                                  # 4E
    h2 = jnp.zeros((Bb * T, E), jnp.float32)
    for c in range(0, F, mlp_chunk):
        w = min(mlp_chunk, F - c)
        h1 = jnp.dot(ln2, w1_ref[:, c:c + w],
                     preferred_element_type=jnp.float32) + b1_ref[:, c:c + w]
        h1 = _gelu_tanh(h1)                                              # f32 per chunk
        h2 = h2 + jnp.dot(h1.astype(jnp.bfloat16), w2_ref[c:c + w, :],
                          preferred_element_type=jnp.float32)
    h2 = h2 + b2_ref[...]

    o_ref[...] = (x1 + h2).reshape(Bb, T, E).astype(o_ref.dtype)


# ------------------------- wrapper / tiling policy -----------------------------

_PARAM_ORDER = ["ln1_g", "ln1_b", "wqkv", "bqkv", "wo", "bo",
                "ln2_g", "ln2_b", "w1", "b1", "w2", "b2"]


def _hw_vmem_budget_bytes():
    """Per-core VMEM budget: physical capacity minus headroom for compiler
    scratch and I/O double buffers.  Falls back to the most constrained
    generation (v7x, 64 MiB) if the query is unavailable."""
    try:
        cap = getattr(pltpu.get_tpu_info(), "vmem_capacity_bytes", None)
    except Exception:
        cap = None
    cap = int(cap) if cap else (64 << 20)
    headroom = (12 << 20) if cap <= (64 << 20) else (16 << 20)
    return max(16 << 20, cap - headroom)


def _mxu_target_rows():
    """v5e/v5p MXUs are 128-wide in M; v6e/v7x pushes are 256 rows."""
    try:
        kind = jax.devices()[0].device_kind.lower()
    except Exception:
        return 256
    return 128 if "v5" in kind else 256


def _block_vmem_bytes(batch_block, T, E, mlp_chunk, weight_bytes):
    """Rough per-block footprint: single-buffered weights + double-buffered I/O
    blocks + peak live activations (attention scores + one MLP hidden chunk)."""
    M = batch_block * T
    f32, bf16 = 4, 2
    io = 2 * (2 * M * E * f32)                   # in + out block, double-buffered
    attn = (M * 3 * E * (f32 + bf16)             # qkv f32 + bf16 staging
            + 4 * batch_block * T * T * f32      # live head's scores/probs (+slack)
            + 4 * M * E * f32)                   # x2d, x1, merged heads, proj
    mlp = M * mlp_chunk * (f32 + bf16) + M * E * f32
    return weight_bytes + io + attn + mlp


def _pick_batch_block(B, T, E, mlp_chunk, weight_bytes, vmem_budget, target_rows):
    divisors = [d for d in range(1, B + 1) if B % d == 0]
    fitting = [d for d in divisors
               if _block_vmem_bytes(d, T, E, mlp_chunk, weight_bytes) <= vmem_budget]
    if not fitting:
        return 1
    # (a) keep >= min(4, B) grid steps so the pipeline hides x/out HBM DMA and
    #     both v7x TensorCores get work;
    # (b) among those, take the LARGEST fitting block (amortizes ~0.35us/step);
    # (c) if that block still under-fills the MXU M dim, trade steps down to 2
    #     for the smallest block that reaches target_rows.
    pipelined = [d for d in fitting if B // d >= min(4, B)]
    if pipelined:
        best = max(pipelined)
    else:
        best = max(d for d in fitting if B // d >= min(2, B))
    if best * T < target_rows:
        reach = [d for d in fitting if d * T >= target_rows and B // d >= min(2, B)]
        if reach:
            best = min(reach)
    return best


def _build_call(x_shape, x_dtype, param_list, num_heads, mlp_chunk,
                batch_block, vmem_limit, single_buffer_weights):
    B, T, E = x_shape
    kernel = functools.partial(_residual_block_kernel, num_heads, mlp_chunk)

    def param_spec(p):
        index_map = lambda b, nd=p.ndim: (0,) * nd
        if single_buffer_weights:
            # Grid-invariant operands: one pipeline buffer is enough (halves
            # their VMEM residency — matters on v7x's 64 MiB).
            return pl.BlockSpec(p.shape, index_map, pipeline_mode=pl.Buffered(1))
        return pl.BlockSpec(p.shape, index_map)

    return pl.pallas_call(
        kernel,
        out_shape=jax.ShapeDtypeStruct((B, T, E), x_dtype),
        grid=(B // batch_block,),
        in_specs=[pl.BlockSpec((batch_block, T, E), lambda b: (b, 0, 0))]
                 + [param_spec(p) for p in param_list],
        out_specs=pl.BlockSpec((batch_block, T, E), lambda b: (b, 0, 0)),
        compiler_params=pltpu.CompilerParams(
            dimension_semantics=("parallel",),
            vmem_limit_bytes=int(vmem_limit)),
    )


def d_residual_forward(x, params, num_heads, batch_block=None):
    """x: (B, T, E) f32.  params: dict (matmul weights bf16, biases/LN f32)."""
    B, T, E = x.shape
    assert E % num_heads == 0
    param_list = [params[name] for name in _PARAM_ORDER]
    weight_bytes = sum(int(p.size) * p.dtype.itemsize for p in param_list)

    mlp_chunk = min(4 * E, 512)                       # block the 4E hidden dim
    vmem_budget = _hw_vmem_budget_bytes()
    if batch_block is None:
        batch_block = _pick_batch_block(B, T, E, mlp_chunk, weight_bytes,
                                        vmem_budget, _mxu_target_rows())
    assert B % batch_block == 0

    args = (x, *param_list)
    try:
        return _build_call(x.shape, x.dtype, param_list, num_heads, mlp_chunk,
                           batch_block, vmem_budget, True)(*args)
    except Exception:
        # pipeline_mode=pl.Buffered(1) not supported on this jax build: fall
        # back to default double-buffered weights (correctness unaffected).
        return _build_call(x.shape, x.dtype, param_list, num_heads, mlp_chunk,
                           batch_block, vmem_budget, False)(*args)


# ------------------------- parameters & reference ------------------------------

def init_params(key, num_embed):
    """Deterministic synthetic weights matching the PyTorch layer shapes.
    Matmul weights are stored bf16 (MXU-native); biases/LN affines stay f32."""
    E = num_embed
    keys = jax.random.split(key, 6)
    s = 0.02
    bf = jnp.bfloat16
    return {
        "ln1_g": jnp.ones((1, E), jnp.float32),
        "ln1_b": jnp.zeros((1, E), jnp.float32),
        "ln2_g": jnp.ones((1, E), jnp.float32),
        "ln2_b": jnp.zeros((1, E), jnp.float32),
        "wqkv": (s * jax.random.normal(keys[0], (E, 3 * E), jnp.float32)).astype(bf),
        "bqkv": s * jax.random.normal(keys[1], (1, 3 * E), jnp.float32),
        "wo":   (s * jax.random.normal(keys[2], (E, E), jnp.float32)).astype(bf),
        "bo":   s * jax.random.normal(keys[3], (1, E), jnp.float32),
        "w1":   (s * jax.random.normal(keys[4], (E, 4 * E), jnp.float32)).astype(bf),
        "b1":   jnp.zeros((1, 4 * E), jnp.float32),
        "w2":   (s * jax.random.normal(keys[5], (4 * E, E), jnp.float32)).astype(bf),
        "b2":   jnp.zeros((1, E), jnp.float32),
    }


def d_residual_reference(x, params, num_heads):
    """Pure-JAX f32 reference (same bf16-stored weights, f32 math)."""
    B, T, E = x.shape
    H = num_heads
    hd = E // H
    p = {k: v.astype(jnp.float32) for k, v in params.items()}

    def ln(h, g, b):
        mu = jnp.mean(h, axis=-1, keepdims=True)
        var = jnp.mean((h - mu) ** 2, axis=-1, keepdims=True)
        return (h - mu) * jax.lax.rsqrt(var + LN_EPS) * g + b

    h = ln(x, p["ln1_g"], p["ln1_b"])
    qkv = h @ p["wqkv"] + p["bqkv"]
    q, k, v = jnp.split(qkv, 3, axis=-1)
    q = q.reshape(B, T, H, hd).transpose(0, 2, 1, 3)
    k = k.reshape(B, T, H, hd).transpose(0, 2, 1, 3)
    v = v.reshape(B, T, H, hd).transpose(0, 2, 1, 3)
    s = (q @ jnp.swapaxes(k, -1, -2)) / math.sqrt(hd)
    mask = jnp.tril(jnp.ones((T, T), bool))
    s = jnp.where(mask, s, -1e30)
    a = jax.nn.softmax(s, axis=-1)
    o = (a @ v).transpose(0, 2, 1, 3).reshape(B, T, E)
    x1 = x + o @ p["wo"] + p["bo"]
    g = ln(x1, p["ln2_g"], p["ln2_b"])
    g = g @ p["w1"] + p["b1"]
    g = _gelu_tanh(g)
    return x1 + g @ p["w2"] + p["b2"]


if __name__ == "__main__":
    # Small settings consistent with the module: block_size=8, num_embed=32, 4 heads.
    BATCH, BLOCK_SIZE, NUM_EMBED, NUM_HEADS = 2, 8, 32, 4

    key = jax.random.PRNGKey(0)
    k_x, k_p = jax.random.split(key)
    x = jax.random.normal(k_x, (BATCH, BLOCK_SIZE, NUM_EMBED), jnp.float32)
    params = init_params(k_p, NUM_EMBED)

    out = d_residual_forward(x, params, NUM_HEADS)
    out = jax.block_until_ready(out)
    assert out.shape == (BATCH, BLOCK_SIZE, NUM_EMBED)
    assert bool(jnp.all(jnp.isfinite(out)))

    ref = d_residual_reference(x, params, NUM_HEADS)
    err = float(jnp.max(jnp.abs(out - ref)))
    assert err < 2e-2, f"max |kernel - reference| = {err}"
    print("KERNEL_OK")
</pallas_src>

<mosaic_0001>
module attributes {stable_mosaic.version = 11 : i64} {
  func.func @_residual_block_kernel(%arg0: i32, %arg1: memref<1x8x32xf32, #tpu.memory_space<vmem>>, %arg2: memref<1x32xf32, #tpu.memory_space<vmem>>, %arg3: memref<1x32xf32, #tpu.memory_space<vmem>>, %arg4: memref<32x96xbf16, #tpu.memory_space<vmem>>, %arg5: memref<1x96xf32, #tpu.memory_space<vmem>>, %arg6: memref<32x32xbf16, #tpu.memory_space<vmem>>, %arg7: memref<1x32xf32, #tpu.memory_space<vmem>>, %arg8: memref<1x32xf32, #tpu.memory_space<vmem>>, %arg9: memref<1x32xf32, #tpu.memory_space<vmem>>, %arg10: memref<32x128xbf16, #tpu.memory_space<vmem>>, %arg11: memref<1x128xf32, #tpu.memory_space<vmem>>, %arg12: memref<128x32xbf16, #tpu.memory_space<vmem>>, %arg13: memref<1x32xf32, #tpu.memory_space<vmem>>, %arg14: memref<1x8x32xf32, #tpu.memory_space<vmem>>) attributes {dimension_semantics = [#tpu.dimension_semantics<parallel>], iteration_bounds = array<i64: 2>, scalar_prefetch = 0 : i64, scratch_operands = 0 : i64, tpu.core_type = #tpu.core_type<tc>, window_params = [{transform_indices = @transform_0, window_bounds = array<i64: 1, 8, 32>}, {pipeline_mode = #tpu.pipeline_mode<synchronous>, transform_indices = @transform_1, window_bounds = array<i64: 1, 32>}, {pipeline_mode = #tpu.pipeline_mode<synchronous>, transform_indices = @transform_2, window_bounds = array<i64: 1, 32>}, {pipeline_mode = #tpu.pipeline_mode<synchronous>, transform_indices = @transform_3, window_bounds = array<i64: 32, 96>}, {pipeline_mode = #tpu.pipeline_mode<synchronous>, transform_indices = @transform_4, window_bounds = array<i64: 1, 96>}, {pipeline_mode = #tpu.pipeline_mode<synchronous>, transform_indices = @transform_5, window_bounds = array<i64: 32, 32>}, {pipeline_mode = #tpu.pipeline_mode<synchronous>, transform_indices = @transform_6, window_bounds = array<i64: 1, 32>}, {pipeline_mode = #tpu.pipeline_mode<synchronous>, transform_indices = @transform_7, window_bounds = array<i64: 1, 32>}, {pipeline_mode = #tpu.pipeline_mode<synchronous>, transform_indices = @transform_8, window_bounds = array<i64: 1, 32>}, {pipeline_mode = #tpu.pipeline_mode<synchronous>, transform_indices = @transform_9, window_bounds = array<i64: 32, 128>}, {pipeline_mode = #tpu.pipeline_mode<synchronous>, transform_indices = @transform_10, window_bounds = array<i64: 1, 128>}, {pipeline_mode = #tpu.pipeline_mode<synchronous>, transform_indices = @transform_11, window_bounds = array<i64: 128, 32>}, {pipeline_mode = #tpu.pipeline_mode<synchronous>, transform_indices = @transform_12, window_bounds = array<i64: 1, 32>}, {transform_indices = @transform_13, window_bounds = array<i64: 1, 8, 32>}]} {
    %c0 = arith.constant 0 : index
    %c0_0 = arith.constant 0 : index
    %c0_1 = arith.constant 0 : index
    %0 = vector.load %arg1[%c0, %c0_0, %c0_1] : memref<1x8x32xf32, #tpu.memory_space<vmem>>, vector<1x8x32xf32>
    %1 = vector.shape_cast %0 : vector<1x8x32xf32> to vector<8x32xf32>
    %c0_2 = arith.constant 0 : index
    %c0_3 = arith.constant 0 : index
    %2 = vector.load %arg2[%c0_2, %c0_3] : memref<1x32xf32, #tpu.memory_space<vmem>>, vector<1x32xf32>
    %c0_4 = arith.constant 0 : index
    %c0_5 = arith.constant 0 : index
    %3 = vector.load %arg3[%c0_4, %c0_5] : memref<1x32xf32, #tpu.memory_space<vmem>>, vector<1x32xf32>
    %cst = arith.constant dense<0.000000e+00> : vector<8xf32>
    %4 = vector.multi_reduction <add>, %1, %cst [1] : vector<8x32xf32> to vector<8xf32>
    %5 = vector.shape_cast %4 : vector<8xf32> to vector<8x1xf32>
    %cst_6 = arith.constant 3.200000e+01 : f32
    %6 = vector.broadcast %cst_6 : f32 to vector<8x1xf32>
    %7 = arith.divf %5, %6 : vector<8x1xf32>
    %8 = vector.broadcast %7 : vector<8x1xf32> to vector<8x32xf32>
    %9 = arith.subf %1, %8 : vector<8x32xf32>
    %10 = arith.mulf %9, %9 : vector<8x32xf32>
    %cst_7 = arith.constant dense<0.000000e+00> : vector<8xf32>
    %11 = vector.multi_reduction <add>, %10, %cst_7 [1] : vector<8x32xf32> to vector<8xf32>
    %12 = vector.shape_cast %11 : vector<8xf32> to vector<8x1xf32>
    %cst_8 = arith.constant 3.200000e+01 : f32
    %13 = vector.broadcast %cst_8 : f32 to vector<8x1xf32>
    %14 = arith.divf %12, %13 : vector<8x1xf32>
    %15 = vector.broadcast %7 : vector<8x1xf32> to vector<8x32xf32>
    %16 = arith.subf %1, %15 : vector<8x32xf32>
    %cst_9 = arith.constant 9.99999974E-6 : f32
    %17 = vector.broadcast %cst_9 : f32 to vector<8x1xf32>
    %18 = arith.addf %14, %17 : vector<8x1xf32>
    %19 = math.rsqrt %18 : vector<8x1xf32>
    %20 = vector.broadcast %19 : vector<8x1xf32> to vector<8x32xf32>
    %21 = arith.mulf %16, %20 : vector<8x32xf32>
    %22 = vector.broadcast %2 : vector<1x32xf32> to vector<8x32xf32>
    %23 = arith.mulf %21, %22 : vector<8x32xf32>
    %24 = vector.broadcast %3 : vector<1x32xf32> to vector<8x32xf32>
    %25 = arith.addf %23, %24 : vector<8x32xf32>
    %26 = arith.truncf %25 : vector<8x32xf32> to vector<8x32xbf16>
    %c0_10 = arith.constant 0 : index
    %c0_11 = arith.constant 0 : index
    %27 = vector.load %arg4[%c0_10, %c0_11] : memref<32x96xbf16, #tpu.memory_space<vmem>>, vector<32x96xbf16>
    %cst_12 = arith.constant dense<0.000000e+00> : vector<8x96xf32>
    %28 = tpu.matmul %26, %27, %cst_12 {dimension_numbers = #tpu.dot_dimension_numbers<[1], [0], [0], [1], [0, 0, 1, 1], [], []>} : vector<8x32xbf16>, vector<32x96xbf16>, vector<8x96xf32> -> vector<8x96xf32>
    %c0_13 = arith.constant 0 : index
    %c0_14 = arith.constant 0 : index
    %29 = vector.load %arg5[%c0_13, %c0_14] : memref<1x96xf32, #tpu.memory_space<vmem>>, vector<1x96xf32>
    %30 = vector.broadcast %29 : vector<1x96xf32> to vector<8x96xf32>
    %31 = arith.addf %28, %30 : vector<8x96xf32>
    %32 = tpu.iota {dimensions = array<i32: 1>} : vector<1x8x8xi32>
    %33 = tpu.iota {dimensions = array<i32: 2>} : vector<1x8x8xi32>
    %34 = arith.cmpi sge, %32, %33 : vector<1x8x8xi32>
    %35 = vector.extract_strided_slice %31 {offsets = [0, 0], sizes = [8, 8], strides = [1, 1]} : vector<8x96xf32> to vector<8x8xf32>
    %36 = arith.truncf %35 : vector<8x8xf32> to vector<8x8xbf16>
    %37 = vector.shape_cast %36 : vector<8x8xbf16> to vector<1x8x8xbf16>
    %38 = vector.extract_strided_slice %31 {offsets = [0, 32], sizes = [8, 8], strides = [1, 1]} : vector<8x96xf32> to vector<8x8xf32>
    %39 = arith.truncf %38 : vector<8x8xf32> to vector<8x8xbf16>
    %40 = vector.shape_cast %39 : vector<8x8xbf16> to vector<1x8x8xbf16>
    %41 = vector.extract_strided_slice %31 {offsets = [0, 64], sizes = [8, 8], strides = [1, 1]} : vector<8x96xf32> to vector<8x8xf32>
    %42 = arith.truncf %41 : vector<8x8xf32> to vector<8x8xbf16>
    %43 = vector.shape_cast %42 : vector<8x8xbf16> to vector<1x8x8xbf16>
    "tpu.trace_start"() <{level = 10 : i32, message = "bqd,bkd->bqk"}> : () -> ()
    %cst_15 = arith.constant dense<0.000000e+00> : vector<1x8x8xf32>
    %44 = tpu.matmul %37, %40, %cst_15 {dimension_numbers = #tpu.dot_dimension_numbers<[2], [2], [1], [1], [0, 0, 0, 1, 1, 1], [0], [0]>} : vector<1x8x8xbf16>, vector<1x8x8xbf16>, vector<1x8x8xf32> -> vector<1x8x8xf32>
    "tpu.trace_stop"() : () -> ()
    %cst_16 = arith.constant 0.353553385 : f32
    %45 = vector.broadcast %cst_16 : f32 to vector<1x8x8xf32>
    %46 = arith.mulf %44, %45 : vector<1x8x8xf32>
    %cst_17 = arith.constant -1.000000e+30 : f32
    %47 = vector.broadcast %cst_17 : f32 to vector<1x8x8xf32>
    %48 = arith.select %34, %46, %47 : vector<1x8x8xi1>, vector<1x8x8xf32>
    %cst_18 = arith.constant dense<0xFF800000> : vector<1x8xf32>
    %49 = vector.multi_reduction <maximumf>, %48, %cst_18 [2] : vector<1x8x8xf32> to vector<1x8xf32>
    %50 = vector.shape_cast %49 : vector<1x8xf32> to vector<1x8x1xf32>
    %51 = vector.broadcast %50 : vector<1x8x1xf32> to vector<1x8x8xf32>
    %52 = arith.subf %48, %51 : vector<1x8x8xf32>
    %53 = math.exp %52 : vector<1x8x8xf32>
    %cst_19 = arith.constant dense<0.000000e+00> : vector<1x8xf32>
    %54 = vector.multi_reduction <add>, %53, %cst_19 [2] : vector<1x8x8xf32> to vector<1x8xf32>
    %55 = vector.shape_cast %54 : vector<1x8xf32> to vector<1x8x1xf32>
    %56 = tpu.reciprocal %55 {approx = true} : vector<1x8x1xf32> -> vector<1x8x1xf32>
    %57 = vector.broadcast %56 : vector<1x8x1xf32> to vector<1x8x8xf32>
    %58 = arith.mulf %53, %57 : vector<1x8x8xf32>
    %59 = arith.truncf %58 : vector<1x8x8xf32> to vector<1x8x8xbf16>
    "tpu.trace_start"() <{level = 10 : i32, message = "bqk,bkd->bqd"}> : () -> ()
    %cst_20 = arith.constant dense<0.000000e+00> : vector<1x8x8xf32>
    %60 = tpu.matmul %59, %43, %cst_20 {dimension_numbers = #tpu.dot_dimension_numbers<[2], [1], [1], [2], [0, 0, 0, 1, 1, 2], [0], [0]>} : vector<1x8x8xbf16>, vector<1x8x8xbf16>, vector<1x8x8xf32> -> vector<1x8x8xf32>
    "tpu.trace_stop"() : () -> ()
    %61 = vector.extract_strided_slice %31 {offsets = [0, 8], sizes = [8, 8], strides = [1, 1]} : vector<8x96xf32> to vector<8x8xf32>
    %62 = arith.truncf %61 : vector<8x8xf32> to vector<8x8xbf16>
    %63 = vector.shape_cast %62 : vector<8x8xbf16> to vector<1x8x8xbf16>
    %64 = vector.extract_strided_slice %31 {offsets = [0, 40], sizes = [8, 8], strides = [1, 1]} : vector<8x96xf32> to vector<8x8xf32>
    %65 = arith.truncf %64 : vector<8x8xf32> to vector<8x8xbf16>
    %66 = vector.shape_cast %65 : vector<8x8xbf16> to vector<1x8x8xbf16>
    %67 = vector.extract_strided_slice %31 {offsets = [0, 72], sizes = [8, 8], strides = [1, 1]} : vector<8x96xf32> to vector<8x8xf32>
    %68 = arith.truncf %67 : vector<8x8xf32> to vector<8x8xbf16>
    %69 = vector.shape_cast %68 : vector<8x8xbf16> to vector<1x8x8xbf16>
    "tpu.trace_start"() <{level = 10 : i32, message = "bqd,bkd->bqk"}> : () -> ()
    %cst_21 = arith.constant dense<0.000000e+00> : vector<1x8x8xf32>
    %70 = tpu.matmul %63, %66, %cst_21 {dimension_numbers = #tpu.dot_dimension_numbers<[2], [2], [1], [1], [0, 0, 0, 1, 1, 1], [0], [0]>} : vector<1x8x8xbf16>, vector<1x8x8xbf16>, vector<1x8x8xf32> -> vector<1x8x8xf32>
    "tpu.trace_stop"() : () -> ()
    %cst_22 = arith.constant 0.353553385 : f32
    %71 = vector.broadcast %cst_22 : f32 to vector<1x8x8xf32>
    %72 = arith.mulf %70, %71 : vector<1x8x8xf32>
    %cst_23 = arith.constant -1.000000e+30 : f32
    %73 = vector.broadcast %cst_23 : f32 to vector<1x8x8xf32>
    %74 = arith.select %34, %72, %73 : vector<1x8x8xi1>, vector<1x8x8xf32>
    %cst_24 = arith.constant dense<0xFF800000> : vector<1x8xf32>
    %75 = vector.multi_reduction <maximumf>, %74, %cst_24 [2] : vector<1x8x8xf32> to vector<1x8xf32>
    %76 = vector.shape_cast %75 : vector<1x8xf32> to vector<1x8x1xf32>
    %77 = vector.broadcast %76 : vector<1x8x1xf32> to vector<1x8x8xf32>
    %78 = arith.subf %74, %77 : vector<1x8x8xf32>
    %79 = math.exp %78 : vector<1x8x8xf32>
    %cst_25 = arith.constant dense<0.000000e+00> : vector<1x8xf32>
    %80 = vector.multi_reduction <add>, %79, %cst_25 [2] : vector<1x8x8xf32> to vector<1x8xf32>
    %81 = vector.shape_cast %80 : vector<1x8xf32> to vector<1x8x1xf32>
    %82 = tpu.reciprocal %81 {approx = true} : vector<1x8x1xf32> -> vector<1x8x1xf32>
    %83 = vector.broadcast %82 : vector<1x8x1xf32> to vector<1x8x8xf32>
    %84 = arith.mulf %79, %83 : vector<1x8x8xf32>
    %85 = arith.truncf %84 : vector<1x8x8xf32> to vector<1x8x8xbf16>
    "tpu.trace_start"() <{level = 10 : i32, message = "bqk,bkd->bqd"}> : () -> ()
    %cst_26 = arith.constant dense<0.000000e+00> : vector<1x8x8xf32>
    %86 = tpu.matmul %85, %69, %cst_26 {dimension_numbers = #tpu.dot_dimension_numbers<[2], [1], [1], [2], [0, 0, 0, 1, 1, 2], [0], [0]>} : vector<1x8x8xbf16>, vector<1x8x8xbf16>, vector<1x8x8xf32> -> vector<1x8x8xf32>
    "tpu.trace_stop"() : () -> ()
    %87 = vector.extract_strided_slice %31 {offsets = [0, 16], sizes = [8, 8], strides = [1, 1]} : vector<8x96xf32> to vector<8x8xf32>
    %88 = arith.truncf %87 : vector<8x8xf32> to vector<8x8xbf16>
    %89 = vector.shape_cast %88 : vector<8x8xbf16> to vector<1x8x8xbf16>
    %90 = vector.extract_strided_slice %31 {offsets = [0, 48], sizes = [8, 8], strides = [1, 1]} : vector<8x96xf32> to vector<8x8xf32>
    %91 = arith.truncf %90 : vector<8x8xf32> to vector<8x8xbf16>
    %92 = vector.shape_cast %91 : vector<8x8xbf16> to vector<1x8x8xbf16>
    %93 = vector.extract_strided_slice %31 {offsets = [0, 80], sizes = [8, 8], strides = [1, 1]} : vector<8x96xf32> to vector<8x8xf32>
    %94 = arith.truncf %93 : vector<8x8xf32> to vector<8x8xbf16>
    %95 = vector.shape_cast %94 : vector<8x8xbf16> to vector<1x8x8xbf16>
    "tpu.trace_start"() <{level = 10 : i32, message = "bqd,bkd->bqk"}> : () -> ()
    %cst_27 = arith.constant dense<0.000000e+00> : vector<1x8x8xf32>
    %96 = tpu.matmul %89, %92, %cst_27 {dimension_numbers = #tpu.dot_dimension_numbers<[2], [2], [1], [1], [0, 0, 0, 1, 1, 1], [0], [0]>} : vector<1x8x8xbf16>, vector<1x8x8xbf16>, vector<1x8x8xf32> -> vector<1x8x8xf32>
    "tpu.trace_stop"() : () -> ()
    %cst_28 = arith.constant 0.353553385 : f32
    %97 = vector.broadcast %cst_28 : f32 to vector<1x8x8xf32>
    %98 = arith.mulf %96, %97 : vector<1x8x8xf32>
    %cst_29 = arith.constant -1.000000e+30 : f32
    %99 = vector.broadcast %cst_29 : f32 to vector<1x8x8xf32>
    %100 = arith.select %34, %98, %99 : vector<1x8x8xi1>, vector<1x8x8xf32>
    %cst_30 = arith.constant dense<0xFF800000> : vector<1x8xf32>
    %101 = vector.multi_reduction <maximumf>, %100, %cst_30 [2] : vector<1x8x8xf32> to vector<1x8xf32>
    %102 = vector.shape_cast %101 : vector<1x8xf32> to vector<1x8x1xf32>
    %103 = vector.broadcast %102 : vector<1x8x1xf32> to vector<1x8x8xf32>
    %104 = arith.subf %100, %103 : vector<1x8x8xf32>
    %105 = math.exp %104 : vector<1x8x8xf32>
    %cst_31 = arith.constant dense<0.000000e+00> : vector<1x8xf32>
    %106 = vector.multi_reduction <add>, %105, %cst_31 [2] : vector<1x8x8xf32> to vector<1x8xf32>
    %107 = vector.shape_cast %106 : vector<1x8xf32> to vector<1x8x1xf32>
    %108 = tpu.reciprocal %107 {approx = true} : vector<1x8x1xf32> -> vector<1x8x1xf32>
    %109 = vector.broadcast %108 : vector<1x8x1xf32> to vector<1x8x8xf32>
    %110 = arith.mulf %105, %109 : vector<1x8x8xf32>
    %111 = arith.truncf %110 : vector<1x8x8xf32> to vector<1x8x8xbf16>
    "tpu.trace_start"() <{level = 10 : i32, message = "bqk,bkd->bqd"}> : () -> ()
    %cst_32 = arith.constant dense<0.000000e+00> : vector<1x8x8xf32>
    %112 = tpu.matmul %111, %95, %cst_32 {dimension_numbers = #tpu.dot_dimension_numbers<[2], [1], [1], [2], [0, 0, 0, 1, 1, 2], [0], [0]>} : vector<1x8x8xbf16>, vector<1x8x8xbf16>, vector<1x8x8xf32> -> vector<1x8x8xf32>
    "tpu.trace_stop"() : () -> ()
    %113 = vector.extract_strided_slice %31 {offsets = [0, 24], sizes = [8, 8], strides = [1, 1]} : vector<8x96xf32> to vector<8x8xf32>
    %114 = arith.truncf %113 : vector<8x8xf32> to vector<8x8xbf16>
    %115 = vector.shape_cast %114 : vector<8x8xbf16> to vector<1x8x8xbf16>
    %116 = vector.extract_strided_slice %31 {offsets = [0, 56], sizes = [8, 8], strides = [1, 1]} : vector<8x96xf32> to vector<8x8xf32>
    %117 = arith.truncf %116 : vector<8x8xf32> to vector<8x8xbf16>
    %118 = vector.shape_cast %117 : vector<8x8xbf16> to vector<1x8x8xbf16>
    %119 = vector.extract_strided_slice %31 {offsets = [0, 88], sizes = [8, 8], strides = [1, 1]} : vector<8x96xf32> to vector<8x8xf32>
    %120 = arith.truncf %119 : vector<8x8xf32> to vector<8x8xbf16>
    %121 = vector.shape_cast %120 : vector<8x8xbf16> to vector<1x8x8xbf16>
    "tpu.trace_start"() <{level = 10 : i32, message = "bqd,bkd->bqk"}> : () -> ()
    %cst_33 = arith.constant dense<0.000000e+00> : vector<1x8x8xf32>
    %122 = tpu.matmul %115, %118, %cst_33 {dimension_numbers = #tpu.dot_dimension_numbers<[2], [2], [1], [1], [0, 0, 0, 1, 1, 1], [0], [0]>} : vector<1x8x8xbf16>, vector<1x8x8xbf16>, vector<1x8x8xf32> -> vector<1x8x8xf32>
    "tpu.trace_stop"() : () -> ()
    %cst_34 = arith.constant 0.353553385 : f32
    %123 = vector.broadcast %cst_34 : f32 to vector<1x8x8xf32>
    %124 = arith.mulf %122, %123 : vector<1x8x8xf32>
    %cst_35 = arith.constant -1.000000e+30 : f32
    %125 = vector.broadcast %cst_35 : f32 to vector<1x8x8xf32>
    %126 = arith.select %34, %124, %125 : vector<1x8x8xi1>, vector<1x8x8xf32>
    %cst_36 = arith.constant dense<0xFF800000> : vector<1x8xf32>
    %127 = vector.multi_reduction <maximumf>, %126, %cst_36 [2] : vector<1x8x8xf32> to vector<1x8xf32>
    %128 = vector.shape_cast %127 : vector<1x8xf32> to vector<1x8x1xf32>
    %129 = vector.broadcast %128 : vector<1x8x1xf32> to vector<1x8x8xf32>
    %130 = arith.subf %126, %129 : vector<1x8x8xf32>
    %131 = math.exp %130 : vector<1x8x8xf32>
    %cst_37 = arith.constant dense<0.000000e+00> : vector<1x8xf32>
    %132 = vector.multi_reduction <add>, %131, %cst_37 [2] : vector<1x8x8xf32> to vector<1x8xf32>
    %133 = vector.shape_cast %132 : vector<1x8xf32> to vector<1x8x1xf32>
    %134 = tpu.reciprocal %133 {approx = true} : vector<1x8x1xf32> -> vector<1x8x1xf32>
    %135 = vector.broadcast %134 : vector<1x8x1xf32> to vector<1x8x8xf32>
    %136 = arith.mulf %131, %135 : vector<1x8x8xf32>
    %137 = arith.truncf %136 : vector<1x8x8xf32> to vector<1x8x8xbf16>
    "tpu.trace_start"() <{level = 10 : i32, message = "bqk,bkd->bqd"}> : () -> ()
    %cst_38 = arith.constant dense<0.000000e+00> : vector<1x8x8xf32>
    %138 = tpu.matmul %137, %121, %cst_38 {dimension_numbers = #tpu.dot_dimension_numbers<[2], [1], [1], [2], [0, 0, 0, 1, 1, 2], [0], [0]>} : vector<1x8x8xbf16>, vector<1x8x8xbf16>, vector<1x8x8xf32> -> vector<1x8x8xf32>
    "tpu.trace_stop"() : () -> ()
    %139 = tpu.concatenate %60, %86, %112, %138 in 2 : vector<1x8x8xf32>, vector<1x8x8xf32>, vector<1x8x8xf32>, vector<1x8x8xf32> -> vector<1x8x32xf32>
    %140 = vector.shape_cast %139 : vector<1x8x32xf32> to vector<8x32xf32>
    %141 = arith.truncf %140 : vector<8x32xf32> to vector<8x32xbf16>
    %c0_39 = arith.constant 0 : index
    %c0_40 = arith.constant 0 : index
    %142 = vector.load %arg6[%c0_39, %c0_40] : memref<32x32xbf16, #tpu.memory_space<vmem>>, vector<32x32xbf16>
    %cst_41 = arith.constant dense<0.000000e+00> : vector<8x32xf32>
    %143 = tpu.matmul %141, %142, %cst_41 {dimension_numbers = #tpu.dot_dimension_numbers<[1], [0], [0], [1], [0, 0, 1, 1], [], []>} : vector<8x32xbf16>, vector<32x32xbf16>, vector<8x32xf32> -> vector<8x32xf32>
    %144 = arith.addf %1, %143 : vector<8x32xf32>
    %c0_42 = arith.constant 0 : index
    %c0_43 = arith.constant 0 : index
    %145 = vector.load %arg7[%c0_42, %c0_43] : memref<1x32xf32, #tpu.memory_space<vmem>>, vector<1x32xf32>
    %146 = vector.broadcast %145 : vector<1x32xf32> to vector<8x32xf32>
    %147 = arith.addf %144, %146 : vector<8x32xf32>
    %c0_44 = arith.constant 0 : index
    %c0_45 = arith.constant 0 : index
    %148 = vector.load %arg8[%c0_44, %c0_45] : memref<1x32xf32, #tpu.memory_space<vmem>>, vector<1x32xf32>
    %c0_46 = arith.constant 0 : index
    %c0_47 = arith.constant 0 : index
    %149 = vector.load %arg9[%c0_46, %c0_47] : memref<1x32xf32, #tpu.memory_space<vmem>>, vector<1x32xf32>
    %cst_48 = arith.constant dense<0.000000e+00> : vector<8xf32>
    %150 = vector.multi_reduction <add>, %147, %cst_48 [1] : vector<8x32xf32> to vector<8xf32>
    %151 = vector.shape_cast %150 : vector<8xf32> to vector<8x1xf32>
    %cst_49 = arith.constant 3.200000e+01 : f32
    %152 = vector.broadcast %cst_49 : f32 to vector<8x1xf32>
    %153 = arith.divf %151, %152 : vector<8x1xf32>
    %154 = vector.broadcast %153 : vector<8x1xf32> to vector<8x32xf32>
    %155 = arith.subf %147, %154 : vector<8x32xf32>
    %156 = arith.mulf %155, %155 : vector<8x32xf32>
    %cst_50 = arith.constant dense<0.000000e+00> : vector<8xf32>
    %157 = vector.multi_reduction <add>, %156, %cst_50 [1] : vector<8x32xf32> to vector<8xf32>
    %158 = vector.shape_cast %157 : vector<8xf32> to vector<8x1xf32>
    %cst_51 = arith.constant 3.200000e+01 : f32
    %159 = vector.broadcast %cst_51 : f32 to vector<8x1xf32>
    %160 = arith.divf %158, %159 : vector<8x1xf32>
    %161 = vector.broadcast %153 : vector<8x1xf32> to vector<8x32xf32>
    %162 = arith.subf %147, %161 : vector<8x32xf32>
    %cst_52 = arith.constant 9.99999974E-6 : f32
    %163 = vector.broadcast %cst_52 : f32 to vector<8x1xf32>
    %164 = arith.addf %160, %163 : vector<8x1xf32>
    %165 = math.rsqrt %164 : vector<8x1xf32>
    %166 = vector.broadcast %165 : vector<8x1xf32> to vector<8x32xf32>
    %167 = arith.mulf %162, %166 : vector<8x32xf32>
    %168 = vector.broadcast %148 : vector<1x32xf32> to vector<8x32xf32>
    %169 = arith.mulf %167, %168 : vector<8x32xf32>
    %170 = vector.broadcast %149 : vector<1x32xf32> to vector<8x32xf32>
    %171 = arith.addf %169, %170 : vector<8x32xf32>
    %172 = arith.truncf %171 : vector<8x32xf32> to vector<8x32xbf16>
    %cst_53 = arith.constant 0.000000e+00 : f32
    %173 = vector.broadcast %cst_53 : f32 to vector<8x32xf32>
    %c0_54 = arith.constant 0 : index
    %c0_55 = arith.constant 0 : index
    %174 = vector.load %arg10[%c0_54, %c0_55] : memref<32x128xbf16, #tpu.memory_space<vmem>>, vector<32x128xbf16>
    %cst_56 = arith.constant dense<0.000000e+00> : vector<8x128xf32>
    %175 = tpu.matmul %172, %174, %cst_56 {dimension_numbers = #tpu.dot_dimension_numbers<[1], [0], [0], [1], [0, 0, 1, 1], [], []>} : vector<8x32xbf16>, vector<32x128xbf16>, vector<8x128xf32> -> vector<8x128xf32>
    %c0_57 = arith.constant 0 : index
    %c0_58 = arith.constant 0 : index
    %176 = vector.load %arg11[%c0_57, %c0_58] : memref<1x128xf32, #tpu.memory_space<vmem>>, vector<1x128xf32>
    %177 = vector.broadcast %176 : vector<1x128xf32> to vector<8x128xf32>
    %178 = arith.addf %175, %177 : vector<8x128xf32>
    %cst_59 = arith.constant 5.000000e-01 : f32
    %179 = vector.broadcast %cst_59 : f32 to vector<8x128xf32>
    %180 = arith.mulf %179, %178 : vector<8x128xf32>
    %cst_60 = arith.constant 4.471500e-02 : f32
    %181 = vector.broadcast %cst_60 : f32 to vector<8x128xf32>
    %182 = arith.mulf %181, %178 : vector<8x128xf32>
    %183 = arith.mulf %182, %178 : vector<8x128xf32>
    %184 = arith.mulf %183, %178 : vector<8x128xf32>
    %185 = arith.addf %178, %184 : vector<8x128xf32>
    %cst_61 = arith.constant 0.797884583 : f32
    %186 = vector.broadcast %cst_61 : f32 to vector<8x128xf32>
    %187 = arith.mulf %186, %185 : vector<8x128xf32>
    %188 = math.tanh %187 : vector<8x128xf32>
    %cst_62 = arith.constant 1.000000e+00 : f32
    %189 = vector.broadcast %cst_62 : f32 to vector<8x128xf32>
    %190 = arith.addf %189, %188 : vector<8x128xf32>
    %191 = arith.mulf %180, %190 : vector<8x128xf32>
    %192 = arith.truncf %191 : vector<8x128xf32> to vector<8x128xbf16>
    %c0_63 = arith.constant 0 : index
    %c0_64 = arith.constant 0 : index
    %193 = vector.load %arg12[%c0_63, %c0_64] : memref<128x32xbf16, #tpu.memory_space<vmem>>, vector<128x32xbf16>
    %cst_65 = arith.constant dense<0.000000e+00> : vector<8x32xf32>
    %194 = tpu.matmul %192, %193, %cst_65 {dimension_numbers = #tpu.dot_dimension_numbers<[1], [0], [0], [1], [0, 0, 1, 1], [], []>} : vector<8x128xbf16>, vector<128x32xbf16>, vector<8x32xf32> -> vector<8x32xf32>
    %195 = arith.addf %173, %194 : vector<8x32xf32>
    %c0_66 = arith.constant 0 : index
    %c0_67 = arith.constant 0 : index
    %196 = vector.load %arg13[%c0_66, %c0_67] : memref<1x32xf32, #tpu.memory_space<vmem>>, vector<1x32xf32>
    %197 = vector.broadcast %196 : vector<1x32xf32> to vector<8x32xf32>
    %198 = arith.addf %195, %197 : vector<8x32xf32>
    %199 = arith.addf %147, %198 : vector<8x32xf32>
    %200 = vector.shape_cast %199 : vector<8x32xf32> to vector<1x8x32xf32>
    %c0_68 = arith.constant 0 : index
    %c0_69 = arith.constant 0 : index
    %c0_70 = arith.constant 0 : index
    %201 = vector.load %arg14[%c0_68, %c0_69, %c0_70] : memref<1x8x32xf32, #tpu.memory_space<vmem>>, vector<1x8x32xf32>
    tpu.vector_store %arg14[%c0_68, %c0_69, %c0_70], %200 {strides = array<i32>} : memref<1x8x32xf32, #tpu.memory_space<vmem>>, vector<1x8x32xf32>,
    return
  }
  func.func @transform_0(%arg0: i32) -> (i32, i32, i32) {
    %c0_i32 = arith.constant 0 : i32
    %c0_i32_0 = arith.constant 0 : i32
    %c0_i32_1 = arith.constant 0 : i32
    return %arg0, %c0_i32, %c0_i32_0 : i32, i32, i32
  }
  func.func @transform_1(%arg0: i32) -> (i32, i32) {
    %c0_i32 = arith.constant 0 : i32
    %c0_i32_0 = arith.constant 0 : i32
    %c0_i32_1 = arith.constant 0 : i32
    return %c0_i32, %c0_i32_0 : i32, i32
  }
  func.func @transform_2(%arg0: i32) -> (i32, i32) {
    %c0_i32 = arith.constant 0 : i32
    %c0_i32_0 = arith.constant 0 : i32
    %c0_i32_1 = arith.constant 0 : i32
    return %c0_i32, %c0_i32_0 : i32, i32
  }
  func.func @transform_3(%arg0: i32) -> (i32, i32) {
    %c0_i32 = arith.constant 0 : i32
    %c0_i32_0 = arith.constant 0 : i32
    %c0_i32_1 = arith.constant 0 : i32
    return %c0_i32, %c0_i32_0 : i32, i32
  }
  func.func @transform_4(%arg0: i32) -> (i32, i32) {
    %c0_i32 = arith.constant 0 : i32
    %c0_i32_0 = arith.constant 0 : i32
    %c0_i32_1 = arith.constant 0 : i32
    return %c0_i32, %c0_i32_0 : i32, i32
  }
  func.func @transform_5(%arg0: i32) -> (i32, i32) {
    %c0_i32 = arith.constant 0 : i32
    %c0_i32_0 = arith.constant 0 : i32
    %c0_i32_1 = arith.constant 0 : i32
    return %c0_i32, %c0_i32_0 : i32, i32
  }
  func.func @transform_6(%arg0: i32) -> (i32, i32) {
    %c0_i32 = arith.constant 0 : i32
    %c0_i32_0 = arith.constant 0 : i32
    %c0_i32_1 = arith.constant 0 : i32
    return %c0_i32, %c0_i32_0 : i32, i32
  }
  func.func @transform_7(%arg0: i32) -> (i32, i32) {
    %c0_i32 = arith.constant 0 : i32
    %c0_i32_0 = arith.constant 0 : i32
    %c0_i32_1 = arith.constant 0 : i32
    return %c0_i32, %c0_i32_0 : i32, i32
  }
  func.func @transform_8(%arg0: i32) -> (i32, i32) {
    %c0_i32 = arith.constant 0 : i32
    %c0_i32_0 = arith.constant 0 : i32
    %c0_i32_1 = arith.constant 0 : i32
    return %c0_i32, %c0_i32_0 : i32, i32
  }
  func.func @transform_9(%arg0: i32) -> (i32, i32) {
    %c0_i32 = arith.constant 0 : i32
    %c0_i32_0 = arith.constant 0 : i32
    %c0_i32_1 = arith.constant 0 : i32
    return %c0_i32, %c0_i32_0 : i32, i32
  }
  func.func @transform_10(%arg0: i32) -> (i32, i32) {
    %c0_i32 = arith.constant 0 : i32
    %c0_i32_0 = arith.constant 0 : i32
    %c0_i32_1 = arith.constant 0 : i32
    return %c0_i32, %c0_i32_0 : i32, i32
  }
  func.func @transform_11(%arg0: i32) -> (i32, i32) {
    %c0_i32 = arith.constant 0 : i32
    %c0_i32_0 = arith.constant 0 : i32
    %c0_i32_1 = arith.constant 0 : i32
    return %c0_i32, %c0_i32_0 : i32, i32
  }
  func.func @transform_12(%arg0: i32) -> (i32, i32) {
    %c0_i32 = arith.constant 0 : i32
    %c0_i32_0 = arith.constant 0 : i32
    %c0_i32_1 = arith.constant 0 : i32
    return %c0_i32, %c0_i32_0 : i32, i32
  }
  func.func @transform_13(%arg0: i32) -> (i32, i32, i32) {
    %c0_i32 = arith.constant 0 : i32
    %c0_i32_0 = arith.constant 0 : i32
    %c0_i32_1 = arith.constant 0 : i32
    return %arg0, %c0_i32, %c0_i32_0 : i32, i32, i32
  }
}

module attributes {stable_mosaic.version = 11 : i64} {
  func.func @_residual_block_kernel(%arg0: i32, %arg1: memref<1x8x32xf32, #tpu.memory_space<vmem>>, %arg2: memref<1x32xf32, #tpu.memory_space<vmem>>, %arg3: memref<1x32xf32, #tpu.memory_space<vmem>>, %arg4: memref<32x96xbf16, #tpu.memory_space<vmem>>, %arg5: memref<1x96xf32, #tpu.memory_space<vmem>>, %arg6: memref<32x32xbf16, #tpu.memory_space<vmem>>, %arg7: memref<1x32xf32, #tpu.memory_space<vmem>>, %arg8: memref<1x32xf32, #tpu.memory_space<vmem>>, %arg9: memref<1x32xf32, #tpu.memory_space<vmem>>, %arg10: memref<32x128xbf16, #tpu.memory_space<vmem>>, %arg11: memref<1x128xf32, #tpu.memory_space<vmem>>, %arg12: memref<128x32xbf16, #tpu.memory_space<vmem>>, %arg13: memref<1x32xf32, #tpu.memory_space<vmem>>, %arg14: memref<1x8x32xf32, #tpu.memory_space<vmem>>) attributes {dimension_semantics = [#tpu.dimension_semantics<parallel>], iteration_bounds = array<i64: 2>, scalar_prefetch = 0 : i64, scratch_operands = 0 : i64, tpu.core_type = #tpu.core_type<tc>, window_params = [{transform_indices = @transform_0, window_bounds = array<i64: 1, 8, 32>}, {pipeline_mode = #tpu.pipeline_mode<synchronous>, transform_indices = @transform_1, window_bounds = array<i64: 1, 32>}, {pipeline_mode = #tpu.pipeline_mode<synchronous>, transform_indices = @transform_2, window_bounds = array<i64: 1, 32>}, {pipeline_mode = #tpu.pipeline_mode<synchronous>, transform_indices = @transform_3, window_bounds = array<i64: 32, 96>}, {pipeline_mode = #tpu.pipeline_mode<synchronous>, transform_indices = @transform_4, window_bounds = array<i64: 1, 96>}, {pipeline_mode = #tpu.pipeline_mode<synchronous>, transform_indices = @transform_5, window_bounds = array<i64: 32, 32>}, {pipeline_mode = #tpu.pipeline_mode<synchronous>, transform_indices = @transform_6, window_bounds = array<i64: 1, 32>}, {pipeline_mode = #tpu.pipeline_mode<synchronous>, transform_indices = @transform_7, window_bounds = array<i64: 1, 32>}, {pipeline_mode = #tpu.pipeline_mode<synchronous>, transform_indices = @transform_8, window_bounds = array<i64: 1, 32>}, {pipeline_mode = #tpu.pipeline_mode<synchronous>, transform_indices = @transform_9, window_bounds = array<i64: 32, 128>}, {pipeline_mode = #tpu.pipeline_mode<synchronous>, transform_indices = @transform_10, window_bounds = array<i64: 1, 128>}, {pipeline_mode = #tpu.pipeline_mode<synchronous>, transform_indices = @transform_11, window_bounds = array<i64: 128, 32>}, {pipeline_mode = #tpu.pipeline_mode<synchronous>, transform_indices = @transform_12, window_bounds = array<i64: 1, 32>}, {transform_indices = @transform_13, window_bounds = array<i64: 1, 8, 32>}]} {
    %c0 = arith.constant 0 : index
    %c0_0 = arith.constant 0 : index
    %c0_1 = arith.constant 0 : index
    %0 = vector.load %arg1[%c0, %c0_0, %c0_1] : memref<1x8x32xf32, #tpu.memory_space<vmem>>, vector<1x8x32xf32>
    %1 = vector.shape_cast %0 : vector<1x8x32xf32> to vector<8x32xf32>
    %c0_2 = arith.constant 0 : index
    %c0_3 = arith.constant 0 : index
    %2 = vector.load %arg2[%c0_2, %c0_3] : memref<1x32xf32, #tpu.memory_space<vmem>>, vector<1x32xf32>
    %c0_4 = arith.constant 0 : index
    %c0_5 = arith.constant 0 : index
    %3 = vector.load %arg3[%c0_4, %c0_5] : memref<1x32xf32, #tpu.memory_space<vmem>>, vector<1x32xf32>
    %cst = arith.constant dense<0.000000e+00> : vector<8xf32>
    %4 = vector.multi_reduction <add>, %1, %cst [1] : vector<8x32xf32> to vector<8xf32>
    %5 = vector.shape_cast %4 : vector<8xf32> to vector<8x1xf32>
    %cst_6 = arith.constant 3.200000e+01 : f32
    %6 = vector.broadcast %cst_6 : f32 to vector<8x1xf32>
    %7 = arith.divf %5, %6 : vector<8x1xf32>
    %8 = vector.broadcast %7 : vector<8x1xf32> to vector<8x32xf32>
    %9 = arith.subf %1, %8 : vector<8x32xf32>
    %10 = arith.mulf %9, %9 : vector<8x32xf32>
    %cst_7 = arith.constant dense<0.000000e+00> : vector<8xf32>
    %11 = vector.multi_reduction <add>, %10, %cst_7 [1] : vector<8x32xf32> to vector<8xf32>
    %12 = vector.shape_cast %11 : vector<8xf32> to vector<8x1xf32>
    %cst_8 = arith.constant 3.200000e+01 : f32
    %13 = vector.broadcast %cst_8 : f32 to vector<8x1xf32>
    %14 = arith.divf %12, %13 : vector<8x1xf32>
    %15 = vector.broadcast %7 : vector<8x1xf32> to vector<8x32xf32>
    %16 = arith.subf %1, %15 : vector<8x32xf32>
    %cst_9 = arith.constant 9.99999974E-6 : f32
    %17 = vector.broadcast %cst_9 : f32 to vector<8x1xf32>
    %18 = arith.addf %14, %17 : vector<8x1xf32>
    %19 = math.rsqrt %18 : vector<8x1xf32>
    %20 = vector.broadcast %19 : vector<8x1xf32> to vector<8x32xf32>
    %21 = arith.mulf %16, %20 : vector<8x32xf32>
    %22 = vector.broadcast %2 : vector<1x32xf32> to vector<8x32xf32>
    %23 = arith.mulf %21, %22 : vector<8x32xf32>
    %24 = vector.broadcast %3 : vector<1x32xf32> to vector<8x32xf32>
    %25 = arith.addf %23, %24 : vector<8x32xf32>
    %26 = arith.truncf %25 : vector<8x32xf32> to vector<8x32xbf16>
    %c0_10 = arith.constant 0 : index
    %c0_11 = arith.constant 0 : index
    %27 = vector.load %arg4[%c0_10, %c0_11] : memref<32x96xbf16, #tpu.memory_space<vmem>>, vector<32x96xbf16>
    %cst_12 = arith.constant dense<0.000000e+00> : vector<8x96xf32>
    %28 = tpu.matmul %26, %27, %cst_12 {dimension_numbers = #tpu.dot_dimension_numbers<[1], [0], [0], [1], [0, 0, 1, 1], [], []>} : vector<8x32xbf16>, vector<32x96xbf16>, vector<8x96xf32> -> vector<8x96xf32>
    %c0_13 = arith.constant 0 : index
    %c0_14 = arith.constant 0 : index
    %29 = vector.load %arg5[%c0_13, %c0_14] : memref<1x96xf32, #tpu.memory_space<vmem>>, vector<1x96xf32>
    %30 = vector.broadcast %29 : vector<1x96xf32> to vector<8x96xf32>
    %31 = arith.addf %28, %30 : vector<8x96xf32>
    %32 = tpu.iota {dimensions = array<i32: 1>} : vector<1x8x8xi32>
    %33 = tpu.iota {dimensions = array<i32: 2>} : vector<1x8x8xi32>
    %34 = arith.cmpi sge, %32, %33 : vector<1x8x8xi32>
    %35 = vector.extract_strided_slice %31 {offsets = [0, 0], sizes = [8, 8], strides = [1, 1]} : vector<8x96xf32> to vector<8x8xf32>
    %36 = arith.truncf %35 : vector<8x8xf32> to vector<8x8xbf16>
    %37 = vector.shape_cast %36 : vector<8x8xbf16> to vector<1x8x8xbf16>
    %38 = vector.extract_strided_slice %31 {offsets = [0, 32], sizes = [8, 8], strides = [1, 1]} : vector<8x96xf32> to vector<8x8xf32>
    %39 = arith.truncf %38 : vector<8x8xf32> to vector<8x8xbf16>
    %40 = vector.shape_cast %39 : vector<8x8xbf16> to vector<1x8x8xbf16>
    %41 = vector.extract_strided_slice %31 {offsets = [0, 64], sizes = [8, 8], strides = [1, 1]} : vector<8x96xf32> to vector<8x8xf32>
    %42 = arith.truncf %41 : vector<8x8xf32> to vector<8x8xbf16>
    %43 = vector.shape_cast %42 : vector<8x8xbf16> to vector<1x8x8xbf16>
    "tpu.trace_start"() <{level = 10 : i32, message = "bqd,bkd->bqk"}> : () -> ()
    %cst_15 = arith.constant dense<0.000000e+00> : vector<1x8x8xf32>
    %44 = tpu.matmul %37, %40, %cst_15 {dimension_numbers = #tpu.dot_dimension_numbers<[2], [2], [1], [1], [0, 0, 0, 1, 1, 1], [0], [0]>} : vector<1x8x8xbf16>, vector<1x8x8xbf16>, vector<1x8x8xf32> -> vector<1x8x8xf32>
    "tpu.trace_stop"() : () -> ()
    %cst_16 = arith.constant 0.353553385 : f32
    %45 = vector.broadcast %cst_16 : f32 to vector<1x8x8xf32>
    %46 = arith.mulf %44, %45 : vector<1x8x8xf32>
    %cst_17 = arith.constant -1.000000e+30 : f32
    %47 = vector.broadcast %cst_17 : f32 to vector<1x8x8xf32>
    %48 = arith.select %34, %46, %47 : vector<1x8x8xi1>, vector<1x8x8xf32>
    %cst_18 = arith.constant dense<0xFF800000> : vector<1x8xf32>
    %49 = vector.multi_reduction <maximumf>, %48, %cst_18 [2] : vector<1x8x8xf32> to vector<1x8xf32>
    %50 = vector.shape_cast %49 : vector<1x8xf32> to vector<1x8x1xf32>
    %51 = vector.broadcast %50 : vector<1x8x1xf32> to vector<1x8x8xf32>
    %52 = arith.subf %48, %51 : vector<1x8x8xf32>
    %53 = math.exp %52 : vector<1x8x8xf32>
    %cst_19 = arith.constant dense<0.000000e+00> : vector<1x8xf32>
    %54 = vector.multi_reduction <add>, %53, %cst_19 [2] : vector<1x8x8xf32> to vector<1x8xf32>
    %55 = vector.shape_cast %54 : vector<1x8xf32> to vector<1x8x1xf32>
    %56 = tpu.reciprocal %55 {approx = true} : vector<1x8x1xf32> -> vector<1x8x1xf32>
    %57 = vector.broadcast %56 : vector<1x8x1xf32> to vector<1x8x8xf32>
    %58 = arith.mulf %53, %57 : vector<1x8x8xf32>
    %59 = arith.truncf %58 : vector<1x8x8xf32> to vector<1x8x8xbf16>
    "tpu.trace_start"() <{level = 10 : i32, message = "bqk,bkd->bqd"}> : () -> ()
    %cst_20 = arith.constant dense<0.000000e+00> : vector<1x8x8xf32>
    %60 = tpu.matmul %59, %43, %cst_20 {dimension_numbers = #tpu.dot_dimension_numbers<[2], [1], [1], [2], [0, 0, 0, 1, 1, 2], [0], [0]>} : vector<1x8x8xbf16>, vector<1x8x8xbf16>, vector<1x8x8xf32> -> vector<1x8x8xf32>
    "tpu.trace_stop"() : () -> ()
    %61 = vector.extract_strided_slice %31 {offsets = [0, 8], sizes = [8, 8], strides = [1, 1]} : vector<8x96xf32> to vector<8x8xf32>
    %62 = arith.truncf %61 : vector<8x8xf32> to vector<8x8xbf16>
    %63 = vector.shape_cast %62 : vector<8x8xbf16> to vector<1x8x8xbf16>
    %64 = vector.extract_strided_slice %31 {offsets = [0, 40], sizes = [8, 8], strides = [1, 1]} : vector<8x96xf32> to vector<8x8xf32>
    %65 = arith.truncf %64 : vector<8x8xf32> to vector<8x8xbf16>
    %66 = vector.shape_cast %65 : vector<8x8xbf16> to vector<1x8x8xbf16>
    %67 = vector.extract_strided_slice %31 {offsets = [0, 72], sizes = [8, 8], strides = [1, 1]} : vector<8x96xf32> to vector<8x8xf32>
    %68 = arith.truncf %67 : vector<8x8xf32> to vector<8x8xbf16>
    %69 = vector.shape_cast %68 : vector<8x8xbf16> to vector<1x8x8xbf16>
    "tpu.trace_start"() <{level = 10 : i32, message = "bqd,bkd->bqk"}> : () -> ()
    %cst_21 = arith.constant dense<0.000000e+00> : vector<1x8x8xf32>
    %70 = tpu.matmul %63, %66, %cst_21 {dimension_numbers = #tpu.dot_dimension_numbers<[2], [2], [1], [1], [0, 0, 0, 1, 1, 1], [0], [0]>} : vector<1x8x8xbf16>, vector<1x8x8xbf16>, vector<1x8x8xf32> -> vector<1x8x8xf32>
    "tpu.trace_stop"() : () -> ()
    %cst_22 = arith.constant 0.353553385 : f32
    %71 = vector.broadcast %cst_22 : f32 to vector<1x8x8xf32>
    %72 = arith.mulf %70, %71 : vector<1x8x8xf32>
    %cst_23 = arith.constant -1.000000e+30 : f32
    %73 = vector.broadcast %cst_23 : f32 to vector<1x8x8xf32>
    %74 = arith.select %34, %72, %73 : vector<1x8x8xi1>, vector<1x8x8xf32>
    %cst_24 = arith.constant dense<0xFF800000> : vector<1x8xf32>
    %75 = vector.multi_reduction <maximumf>, %74, %cst_24 [2] : vector<1x8x8xf32> to vector<1x8xf32>
    %76 = vector.shape_cast %75 : vector<1x8xf32> to vector<1x8x1xf32>
    %77 = vector.broadcast %76 : vector<1x8x1xf32> to vector<1x8x8xf32>
    %78 = arith.subf %74, %77 : vector<1x8x8xf32>
    %79 = math.exp %78 : vector<1x8x8xf32>
    %cst_25 = arith.constant dense<0.000000e+00> : vector<1x8xf32>
    %80 = vector.multi_reduction <add>, %79, %cst_25 [2] : vector<1x8x8xf32> to vector<1x8xf32>
    %81 = vector.shape_cast %80 : vector<1x8xf32> to vector<1x8x1xf32>
    %82 = tpu.reciprocal %81 {approx = true} : vector<1x8x1xf32> -> vector<1x8x1xf32>
    %83 = vector.broadcast %82 : vector<1x8x1xf32> to vector<1x8x8xf32>
    %84 = arith.mulf %79, %83 : vector<1x8x8xf32>
    %85 = arith.truncf %84 : vector<1x8x8xf32> to vector<1x8x8xbf16>
    "tpu.trace_start"() <{level = 10 : i32, message = "bqk,bkd->bqd"}> : () -> ()
    %cst_26 = arith.constant dense<0.000000e+00> : vector<1x8x8xf32>
    %86 = tpu.matmul %85, %69, %cst_26 {dimension_numbers = #tpu.dot_dimension_numbers<[2], [1], [1], [2], [0, 0, 0, 1, 1, 2], [0], [0]>} : vector<1x8x8xbf16>, vector<1x8x8xbf16>, vector<1x8x8xf32> -> vector<1x8x8xf32>
    "tpu.trace_stop"() : () -> ()
    %87 = vector.extract_strided_slice %31 {offsets = [0, 16], sizes = [8, 8], strides = [1, 1]} : vector<8x96xf32> to vector<8x8xf32>
    %88 = arith.truncf %87 : vector<8x8xf32> to vector<8x8xbf16>
    %89 = vector.shape_cast %88 : vector<8x8xbf16> to vector<1x8x8xbf16>
    %90 = vector.extract_strided_slice %31 {offsets = [0, 48], sizes = [8, 8], strides = [1, 1]} : vector<8x96xf32> to vector<8x8xf32>
    %91 = arith.truncf %90 : vector<8x8xf32> to vector<8x8xbf16>
    %92 = vector.shape_cast %91 : vector<8x8xbf16> to vector<1x8x8xbf16>
    %93 = vector.extract_strided_slice %31 {offsets = [0, 80], sizes = [8, 8], strides = [1, 1]} : vector<8x96xf32> to vector<8x8xf32>
    %94 = arith.truncf %93 : vector<8x8xf32> to vector<8x8xbf16>
    %95 = vector.shape_cast %94 : vector<8x8xbf16> to vector<1x8x8xbf16>
    "tpu.trace_start"() <{level = 10 : i32, message = "bqd,bkd->bqk"}> : () -> ()
    %cst_27 = arith.constant dense<0.000000e+00> : vector<1x8x8xf32>
    %96 = tpu.matmul %89, %92, %cst_27 {dimension_numbers = #tpu.dot_dimension_numbers<[2], [2], [1], [1], [0, 0, 0, 1, 1, 1], [0], [0]>} : vector<1x8x8xbf16>, vector<1x8x8xbf16>, vector<1x8x8xf32> -> vector<1x8x8xf32>
    "tpu.trace_stop"() : () -> ()
    %cst_28 = arith.constant 0.353553385 : f32
    %97 = vector.broadcast %cst_28 : f32 to vector<1x8x8xf32>
    %98 = arith.mulf %96, %97 : vector<1x8x8xf32>
    %cst_29 = arith.constant -1.000000e+30 : f32
    %99 = vector.broadcast %cst_29 : f32 to vector<1x8x8xf32>
    %100 = arith.select %34, %98, %99 : vector<1x8x8xi1>, vector<1x8x8xf32>
    %cst_30 = arith.constant dense<0xFF800000> : vector<1x8xf32>
    %101 = vector.multi_reduction <maximumf>, %100, %cst_30 [2] : vector<1x8x8xf32> to vector<1x8xf32>
    %102 = vector.shape_cast %101 : vector<1x8xf32> to vector<1x8x1xf32>
    %103 = vector.broadcast %102 : vector<1x8x1xf32> to vector<1x8x8xf32>
    %104 = arith.subf %100, %103 : vector<1x8x8xf32>
    %105 = math.exp %104 : vector<1x8x8xf32>
    %cst_31 = arith.constant dense<0.000000e+00> : vector<1x8xf32>
    %106 = vector.multi_reduction <add>, %105, %cst_31 [2] : vector<1x8x8xf32> to vector<1x8xf32>
    %107 = vector.shape_cast %106 : vector<1x8xf32> to vector<1x8x1xf32>
    %108 = tpu.reciprocal %107 {approx = true} : vector<1x8x1xf32> -> vector<1x8x1xf32>
    %109 = vector.broadcast %108 : vector<1x8x1xf32> to vector<1x8x8xf32>
    %110 = arith.mulf %105, %109 : vector<1x8x8xf32>
    %111 = arith.truncf %110 : vector<1x8x8xf32> to vector<1x8x8xbf16>
    "tpu.trace_start"() <{level = 10 : i32, message = "bqk,bkd->bqd"}> : () -> ()
    %cst_32 = arith.constant dense<0.000000e+00> : vector<1x8x8xf32>
    %112 = tpu.matmul %111, %95, %cst_32 {dimension_numbers = #tpu.dot_dimension_numbers<[2], [1], [1], [2], [0, 0, 0, 1, 1, 2], [0], [0]>} : vector<1x8x8xbf16>, vector<1x8x8xbf16>, vector<1x8x8xf32> -> vector<1x8x8xf32>
    "tpu.trace_stop"() : () -> ()
    %113 = vector.extract_strided_slice %31 {offsets = [0, 24], sizes = [8, 8], strides = [1, 1]} : vector<8x96xf32> to vector<8x8xf32>
    %114 = arith.truncf %113 : vector<8x8xf32> to vector<8x8xbf16>
    %115 = vector.shape_cast %114 : vector<8x8xbf16> to vector<1x8x8xbf16>
    %116 = vector.extract_strided_slice %31 {offsets = [0, 56], sizes = [8, 8], strides = [1, 1]} : vector<8x96xf32> to vector<8x8xf32>
    %117 = arith.truncf %116 : vector<8x8xf32> to vector<8x8xbf16>
    %118 = vector.shape_cast %117 : vector<8x8xbf16> to vector<1x8x8xbf16>
    %119 = vector.extract_strided_slice %31 {offsets = [0, 88], sizes = [8, 8], strides = [1, 1]} : vector<8x96xf32> to vector<8x8xf32>
    %120 = arith.truncf %119 : vector<8x8xf32> to vector<8x8xbf16>
    %121 = vector.shape_cast %120 : vector<8x8xbf16> to vector<1x8x8xbf16>
    "tpu.trace_start"() <{level = 10 : i32, message = "bqd,bkd->bqk"}> : () -> ()
    %cst_33 = arith.constant dense<0.000000e+00> : vector<1x8x8xf32>
    %122 = tpu.matmul %115, %118, %cst_33 {dimension_numbers = #tpu.dot_dimension_numbers<[2], [2], [1], [1], [0, 0, 0, 1, 1, 1], [0], [0]>} : vector<1x8x8xbf16>, vector<1x8x8xbf16>, vector<1x8x8xf32> -> vector<1x8x8xf32>
    "tpu.trace_stop"() : () -> ()
    %cst_34 = arith.constant 0.353553385 : f32
    %123 = vector.broadcast %cst_34 : f32 to vector<1x8x8xf32>
    %124 = arith.mulf %122, %123 : vector<1x8x8xf32>
    %cst_35 = arith.constant -1.000000e+30 : f32
    %125 = vector.broadcast %cst_35 : f32 to vector<1x8x8xf32>
    %126 = arith.select %34, %124, %125 : vector<1x8x8xi1>, vector<1x8x8xf32>
    %cst_36 = arith.constant dense<0xFF800000> : vector<1x8xf32>
    %127 = vector.multi_reduction <maximumf>, %126, %cst_36 [2] : vector<1x8x8xf32> to vector<1x8xf32>
    %128 = vector.shape_cast %127 : vector<1x8xf32> to vector<1x8x1xf32>
    %129 = vector.broadcast %128 : vector<1x8x1xf32> to vector<1x8x8xf32>
    %130 = arith.subf %126, %129 : vector<1x8x8xf32>
    %131 = math.exp %130 : vector<1x8x8xf32>
    %cst_37 = arith.constant dense<0.000000e+00> : vector<1x8xf32>
    %132 = vector.multi_reduction <add>, %131, %cst_37 [2] : vector<1x8x8xf32> to vector<1x8xf32>
    %133 = vector.shape_cast %132 : vector<1x8xf32> to vector<1x8x1xf32>
    %134 = tpu.reciprocal %133 {approx = true} : vector<1x8x1xf32> -> vector<1x8x1xf32>
    %135 = vector.broadcast %134 : vector<1x8x1xf32> to vector<1x8x8xf32>
    %136 = arith.mulf %131, %135 : vector<1x8x8xf32>
    %137 = arith.truncf %136 : vector<1x8x8xf32> to vector<1x8x8xbf16>
    "tpu.trace_start"() <{level = 10 : i32, message = "bqk,bkd->bqd"}> : () -> ()
    %cst_38 = arith.constant dense<0.000000e+00> : vector<1x8x8xf32>
    %138 = tpu.matmul %137, %121, %cst_38 {dimension_numbers = #tpu.dot_dimension_numbers<[2], [1], [1], [2], [0, 0, 0, 1, 1, 2], [0], [0]>} : vector<1x8x8xbf16>, vector<1x8x8xbf16>, vector<1x8x8xf32> -> vector<1x8x8xf32>
    "tpu.trace_stop"() : () -> ()
    %139 = tpu.concatenate %60, %86, %112, %138 in 2 : vector<1x8x8xf32>, vector<1x8x8xf32>, vector<1x8x8xf32>, vector<1x8x8xf32> -> vector<1x8x32xf32>
    %140 = vector.shape_cast %139 : vector<1x8x32xf32> to vector<8x32xf32>
    %141 = arith.truncf %140 : vector<8x32xf32> to vector<8x32xbf16>
    %c0_39 = arith.constant 0 : index
    %c0_40 = arith.constant 0 : index
    %142 = vector.load %arg6[%c0_39, %c0_40] : memref<32x32xbf16, #tpu.memory_space<vmem>>, vector<32x32xbf16>
    %cst_41 = arith.constant dense<0.000000e+00> : vector<8x32xf32>
    %143 = tpu.matmul %141, %142, %cst_41 {dimension_numbers = #tpu.dot_dimension_numbers<[1], [0], [0], [1], [0, 0, 1, 1], [], []>} : vector<8x32xbf16>, vector<32x32xbf16>, vector<8x32xf32> -> vector<8x32xf32>
    %144 = arith.addf %1, %143 : vector<8x32xf32>
    %c0_42 = arith.constant 0 : index
    %c0_43 = arith.constant 0 : index
    %145 = vector.load %arg7[%c0_42, %c0_43] : memref<1x32xf32, #tpu.memory_space<vmem>>, vector<1x32xf32>
    %146 = vector.broadcast %145 : vector<1x32xf32> to vector<8x32xf32>
    %147 = arith.addf %144, %146 : vector<8x32xf32>
    %c0_44 = arith.constant 0 : index
    %c0_45 = arith.constant 0 : index
    %148 = vector.load %arg8[%c0_44, %c0_45] : memref<1x32xf32, #tpu.memory_space<vmem>>, vector<1x32xf32>
    %c0_46 = arith.constant 0 : index
    %c0_47 = arith.constant 0 : index
    %149 = vector.load %arg9[%c0_46, %c0_47] : memref<1x32xf32, #tpu.memory_space<vmem>>, vector<1x32xf32>
    %cst_48 = arith.constant dense<0.000000e+00> : vector<8xf32>
    %150 = vector.multi_reduction <add>, %147, %cst_48 [1] : vector<8x32xf32> to vector<8xf32>
    %151 = vector.shape_cast %150 : vector<8xf32> to vector<8x1xf32>
    %cst_49 = arith.constant 3.200000e+01 : f32
    %152 = vector.broadcast %cst_49 : f32 to vector<8x1xf32>
    %153 = arith.divf %151, %152 : vector<8x1xf32>
    %154 = vector.broadcast %153 : vector<8x1xf32> to vector<8x32xf32>
    %155 = arith.subf %147, %154 : vector<8x32xf32>
    %156 = arith.mulf %155, %155 : vector<8x32xf32>
    %cst_50 = arith.constant dense<0.000000e+00> : vector<8xf32>
    %157 = vector.multi_reduction <add>, %156, %cst_50 [1] : vector<8x32xf32> to vector<8xf32>
    %158 = vector.shape_cast %157 : vector<8xf32> to vector<8x1xf32>
    %cst_51 = arith.constant 3.200000e+01 : f32
    %159 = vector.broadcast %cst_51 : f32 to vector<8x1xf32>
    %160 = arith.divf %158, %159 : vector<8x1xf32>
    %161 = vector.broadcast %153 : vector<8x1xf32> to vector<8x32xf32>
    %162 = arith.subf %147, %161 : vector<8x32xf32>
    %cst_52 = arith.constant 9.99999974E-6 : f32
    %163 = vector.broadcast %cst_52 : f32 to vector<8x1xf32>
    %164 = arith.addf %160, %163 : vector<8x1xf32>
    %165 = math.rsqrt %164 : vector<8x1xf32>
    %166 = vector.broadcast %165 : vector<8x1xf32> to vector<8x32xf32>
    %167 = arith.mulf %162, %166 : vector<8x32xf32>
    %168 = vector.broadcast %148 : vector<1x32xf32> to vector<8x32xf32>
    %169 = arith.mulf %167, %168 : vector<8x32xf32>
    %170 = vector.broadcast %149 : vector<1x32xf32> to vector<8x32xf32>
    %171 = arith.addf %169, %170 : vector<8x32xf32>
    %172 = arith.truncf %171 : vector<8x32xf32> to vector<8x32xbf16>
    %cst_53 = arith.constant 0.000000e+00 : f32
    %173 = vector.broadcast %cst_53 : f32 to vector<8x32xf32>
    %c0_54 = arith.constant 0 : index
    %c0_55 = arith.constant 0 : index
    %174 = vector.load %arg10[%c0_54, %c0_55] : memref<32x128xbf16, #tpu.memory_space<vmem>>, vector<32x128xbf16>
    %cst_56 = arith.constant dense<0.000000e+00> : vector<8x128xf32>
    %175 = tpu.matmul %172, %174, %cst_56 {dimension_numbers = #tpu.dot_dimension_numbers<[1], [0], [0], [1], [0, 0, 1, 1], [], []>} : vector<8x32xbf16>, vector<32x128xbf16>, vector<8x128xf32> -> vector<8x128xf32>
    %c0_57 = arith.constant 0 : index
    %c0_58 = arith.constant 0 : index
    %176 = vector.load %arg11[%c0_57, %c0_58] : memref<1x128xf32, #tpu.memory_space<vmem>>, vector<1x128xf32>
    %177 = vector.broadcast %176 : vector<1x128xf32> to vector<8x128xf32>
    %178 = arith.addf %175, %177 : vector<8x128xf32>
    %cst_59 = arith.constant 5.000000e-01 : f32
    %179 = vector.broadcast %cst_59 : f32 to vector<8x128xf32>
    %180 = arith.mulf %179, %178 : vector<8x128xf32>
    %cst_60 = arith.constant 4.471500e-02 : f32
    %181 = vector.broadcast %cst_60 : f32 to vector<8x128xf32>
    %182 = arith.mulf %181, %178 : vector<8x128xf32>
    %183 = arith.mulf %182, %178 : vector<8x128xf32>
    %184 = arith.mulf %183, %178 : vector<8x128xf32>
    %185 = arith.addf %178, %184 : vector<8x128xf32>
    %cst_61 = arith.constant 0.797884583 : f32
    %186 = vector.broadcast %cst_61 : f32 to vector<8x128xf32>
    %187 = arith.mulf %186, %185 : vector<8x128xf32>
    %188 = math.tanh %187 : vector<8x128xf32>
    %cst_62 = arith.constant 1.000000e+00 : f32
    %189 = vector.broadcast %cst_62 : f32 to vector<8x128xf32>
    %190 = arith.addf %189, %188 : vector<8x128xf32>
    %191 = arith.mulf %180, %190 : vector<8x128xf32>
    %192 = arith.truncf %191 : vector<8x128xf32> to vector<8x128xbf16>
    %c0_63 = arith.constant 0 : index
    %c0_64 = arith.constant 0 : index
    %193 = vector.load %arg12[%c0_63, %c0_64] : memref<128x32xbf16, #tpu.memory_space<vmem>>, vector<128x32xbf16>
    %cst_65 = arith.constant dense<0.000000e+00> : vector<8x32xf32>
    %194 = tpu.matmul %192, %193, %cst_65 {dimension_numbers = #tpu.dot_dimension_numbers<[1], [0], [0], [1], [0, 0, 1, 1], [], []>} : vector<8x128xbf16>, vector<128x32xbf16>, vector<8x32xf32> -> vector<8x32xf32>
    %195 = arith.addf %173, %194 : vector<8x32xf32>
    %c0_66 = arith.constant 0 : index
    %c0_67 = arith.constant 0 : index
    %196 = vector.load %arg13[%c0_66, %c0_67] : memref<1x32xf32, #tpu.memory_space<vmem>>, vector<1x32xf32>
    %197 = vector.broadcast %196 : vector<1x32xf32> to vector<8x32xf32>
    %198 = arith.addf %195, %197 : vector<8x32xf32>
    %199 = arith.addf %147, %198 : vector<8x32xf32>
    %200 = vector.shape_cast %199 : vector<8x32xf32> to vector<1x8x32xf32>
    %c0_68 = arith.constant 0 : index
    %c0_69 = arith.constant 0 : index
    %c0_70 = arith.constant 0 : index
    %201 = vector.load %arg14[%c0_68, %c0_69, %c0_70] : memref<1x8x32xf32, #tpu.memory_space<vmem>>, vector<1x8x32xf32>
    tpu.vector_store %arg14[%c0_68, %c0_69, %c0_70], %200 {strides = array<i32>} : memref<1x8x32xf32, #tpu.memory_space<vmem>>, vector<1x8x32xf32>,
    return
  }
  func.func @transform_0(%arg0: i32) -> (i32, i32, i32) {
    %c0_i32 = arith.constant 0 : i32
    %c0_i32_0 = arith.constant 0 : i32
    %c0_i32_1 = arith.constant 0 : i32
    return %arg0, %c0_i32, %c0_i32_0 : i32, i32, i32
  }
  func.func @transform_1(%arg0: i32) -> (i32, i32) {
    %c0_i32 = arith.constant 0 : i32
    %c0_i32_0 = arith.constant 0 : i32
    %c0_i32_1 = arith.constant 0 : i32
    return %c0_i32, %c0_i32_0 : i32, i32
  }
  func.func @transform_2(%arg0: i32) -> (i32, i32) {
    %c0_i32 = arith.constant 0 : i32
    %c0_i32_0 = arith.constant 0 : i32
    %c0_i32_1 = arith.constant 0 : i32
    return %c0_i32, %c0_i32_0 : i32, i32
  }
  func.func @transform_3(%arg0: i32) -> (i32, i32) {
    %c0_i32 = arith.constant 0 : i32
    %c0_i32_0 = arith.constant 0 : i32
    %c0_i32_1 = arith.constant 0 : i32
    return %c0_i32, %c0_i32_0 : i32, i32
  }
  func.func @transform_4(%arg0: i32) -> (i32, i32) {
    %c0_i32 = arith.constant 0 : i32
    %c0_i32_0 = arith.constant 0 : i32
    %c0_i32_1 = arith.constant 0 : i32
    return %c0_i32, %c0_i32_0 : i32, i32
  }
  func.func @transform_5(%arg0: i32) -> (i32, i32) {
    %c0_i32 = arith.constant 0 : i32
    %c0_i32_0 = arith.constant 0 : i32
    %c0_i32_1 = arith.constant 0 : i32
    return %c0_i32, %c0_i32_0 : i32, i32
  }
  func.func @transform_6(%arg0: i32) -> (i32, i32) {
    %c0_i32 = arith.constant 0 : i32
    %c0_i32_0 = arith.constant 0 : i32
    %c0_i32_1 = arith.constant 0 : i32
    return %c0_i32, %c0_i32_0 : i32, i32
  }
  func.func @transform_7(%arg0: i32) -> (i32, i32) {
    %c0_i32 = arith.constant 0 : i32
    %c0_i32_0 = arith.constant 0 : i32
    %c0_i32_1 = arith.constant 0 : i32
    return %c0_i32, %c0_i32_0 : i32, i32
  }
  func.func @transform_8(%arg0: i32) -> (i32, i32) {
    %c0_i32 = arith.constant 0 : i32
    %c0_i32_0 = arith.constant 0 : i32
    %c0_i32_1 = arith.constant 0 : i32
    return %c0_i32, %c0_i32_0 : i32, i32
  }
  func.func @transform_9(%arg0: i32) -> (i32, i32) {
    %c0_i32 = arith.constant 0 : i32
    %c0_i32_0 = arith.constant 0 : i32
    %c0_i32_1 = arith.constant 0 : i32
    return %c0_i32, %c0_i32_0 : i32, i32
  }
  func.func @transform_10(%arg0: i32) -> (i32, i32) {
    %c0_i32 = arith.constant 0 : i32
    %c0_i32_0 = arith.constant 0 : i32
    %c0_i32_1 = arith.constant 0 : i32
    return %c0_i32, %c0_i32_0 : i32, i32
  }
  func.func @transform_11(%arg0: i32) -> (i32, i32) {
    %c0_i32 = arith.constant 0 : i32
    %c0_i32_0 = arith.constant 0 : i32
    %c0_i32_1 = arith.constant 0 : i32
    return %c0_i32, %c0_i32_0 : i32, i32
  }
  func.func @transform_12(%arg0: i32) -> (i32, i32) {
    %c0_i32 = arith.constant 0 : i32
    %c0_i32_0 = arith.constant 0 : i32
    %c0_i32_1 = arith.constant 0 : i32
    return %c0_i32, %c0_i32_0 : i32, i32
  }
  func.func @transform_13(%arg0: i32) -> (i32, i32, i32) {
    %c0_i32 = arith.constant 0 : i32
    %c0_i32_0 = arith.constant 0 : i32
    %c0_i32_1 = arith.constant 0 : i32
    return %arg0, %c0_i32, %c0_i32_0 : i32, i32, i32
  }
}

</mosaic_0001>

<llo_original>
// kernel: tpu_custom_call.1
$region0: #{tpu_custom_call.1}
  #allocation0 [shape = 'u32[]', space=smem, size = 0x4, offset = 0x4, fixed_abs, tag = 'smem constant byte address 0x4 - core index']
  #allocation1 [shape = 'u32[144,128]{1,0:T(1,128)}', space=vmem, size = 0x12000, scoped, tag = 'internal scratch']
  %s0 = inlined_call_operand.vmem [shape: f32[2,8,32], index: 0, kind: input, shape index: {}]
  %s1 = inlined_call_operand.vmem [shape: f32[1,32], index: 1, kind: input, shape index: {}]
  %s2 = inlined_call_operand.vmem [shape: f32[1,32], index: 2, kind: input, shape index: {}]
  %s3 = inlined_call_operand.vmem [shape: bf16[32,96], index: 3, kind: input, shape index: {}]
  %s4 = inlined_call_operand.vmem [shape: f32[1,96], index: 4, kind: input, shape index: {}]
  %s5 = inlined_call_operand.vmem [shape: bf16[32,32], index: 5, kind: input, shape index: {}]
  %s6 = inlined_call_operand.vmem [shape: f32[1,32], index: 6, kind: input, shape index: {}]
  %s7 = inlined_call_operand.vmem [shape: f32[1,32], index: 7, kind: input, shape index: {}]
  %s8 = inlined_call_operand.vmem [shape: f32[1,32], index: 8, kind: input, shape index: {}]
  %s9 = inlined_call_operand.vmem [shape: bf16[32,128], index: 9, kind: input, shape index: {}]
  %s10 = inlined_call_operand.vmem [shape: f32[1,128], index: 10, kind: input, shape index: {}]
  %s11 = inlined_call_operand.vmem [shape: bf16[128,32], index: 11, kind: input, shape index: {}]
  %s12 = inlined_call_operand.vmem [shape: f32[1,32], index: 12, kind: input, shape index: {}]
  %s13 = inlined_call_operand.hbm [shape: f32[2,8,32], index: 13, kind: output, shape index: {}]
  %s14 = sld [smem:[#allocation0]]
  $region85: #{tpu_custom_call.1} parent=0
    _
  %s16 = ssub.s32 1, %s14
  %s17 = scalar_select 0, %s16, %s14
  $region1: #{tpu_custom_call.1} parent=0
    #allocation2 [shape = 'u8[8192]{0}', space=vmem, size = 0x2000, scoped, tag = 'output window, operand 0']
    #allocation3 [shape = 's32[2]{0}', space=sflag, size = 0x8, scoped, tag = 'scoped memory for tpu_custom_call.1']
    %18 = vsyncpa [#allocation3], 0
    %s19 = scalar_lea.sflag [#allocation3], 1
    %20 = vsyncpa %s19, 0
    loop: start=0, step=1, limit=4
    $region2: #{tpu_custom_call.1} parent=1 // loop_pre_header
      _
    $region3: #{tpu_custom_call.1} parent=1 // loop_header
      %s22 = sphi 0, %s26
      %p23 = scmp.ge.s32.totalorder %s22, 4
      %s32 = sphi 0, %s34
      %s35 = sphi 0, %s32
      %s36 = sphi 0, %s35
      %s52 = sphi 0, %s36
      %s56 = sphi 0, %s56
      %s58 = sphi 0, %s56
      %s59 = sphi 0, %s58
      %s73 = sphi 0, %s59
      %s77 = sphi 0, %s77
      %s79 = sphi 0, %s77
      %s80 = sphi 0, %s79
      %s94 = sphi 0, %s80
      %s98 = sphi 0, %s98
      %s100 = sphi 0, %s98
      %s101 = sphi 0, %s100
      %s115 = sphi 0, %s101
      %s119 = sphi 0, %s119
      %s121 = sphi 0, %s119
      %s122 = sphi 0, %s121
      %s136 = sphi 0, %s122
      %s140 = sphi 0, %s140
      %s142 = sphi 0, %s140
      %s143 = sphi 0, %s142
      %s157 = sphi 0, %s143
      %s161 = sphi 0, %s161
      %s163 = sphi 0, %s161
      %s164 = sphi 0, %s163
      %s178 = sphi 0, %s164
      %s182 = sphi 0, %s182
      %s184 = sphi 0, %s182
      %s185 = sphi 0, %s184
      %s199 = sphi 0, %s185
      %s203 = sphi 0, %s203
      %s205 = sphi 0, %s203
      %s206 = sphi 0, %s205
      %s220 = sphi 0, %s206
      %s224 = sphi 0, %s224
      %s226 = sphi 0, %s224
      %s227 = sphi 0, %s226
      %s241 = sphi 0, %s227
      %s245 = sphi 0, %s245
      %s247 = sphi 0, %s245
      %s248 = sphi 0, %s247
      %s262 = sphi 0, %s248
      %s266 = sphi 0, %s266
      %s268 = sphi 0, %s266
      %s269 = sphi 0, %s268
      %s283 = sphi 0, %s269
      %s287 = sphi 0, %s287
      %s289 = sphi 0, %s287
      %s290 = sphi 0, %s289
      %s304 = sphi 0, %s290
      %s310 = sphi 0, %s312
      %s313 = sphi 0, %s310
      %s314 = sphi 0, %s313
      %s330 = sphi 0, %s314
    $region4: #{tpu_custom_call.1} parent=1 // loop_header_branch
      %25 = sbr.rel (%p23) target = $region8
    $region5: #{tpu_custom_call.1} parent=1 // loop_body
      %s27 = ssub.s32 %s22, 1
      %s28 = ssub.s32 %s22, 2
      %s29 = sadd.s32 %s22, 1
      %s30 = ssub.s32 %s22, %s29
      %p31 = scmp.eq.s32.totalorder %s30, 0
      %s33 = sadd.s32 %s32, 1
      %s34 = scalar_select %p31, %s32, %s33
      %p37 = pneg %p31
      %p38 = scmp.eq.s32.totalorder %s22, 1
      %p39 = por %p37, %p38
      %p40 = scmp.ne.s32.totalorder %s32, %s35
      %p41 = scmp.eq.s32.totalorder %s22, 0
      %p42 = por %p40, %p41
      %p43 = scmp.ne.s32.totalorder %s32, %s35
      %p44 = scmp.eq.s32.totalorder %s27, 1
      %p45 = por %p43, %p44
      %p46 = scmp.ne.s32.totalorder %s35, %s36
      %p47 = scmp.eq.s32.totalorder %s27, 0
      %p48 = por %p46, %p47
      %p49 = scmp.ne.s32.totalorder %s35, %s36
      %p50 = scmp.eq.s32.totalorder %s28, 1
      %p51 = por %p49, %p50
      %p53 = scmp.ne.s32.totalorder %s36, %s52
      %p54 = scmp.eq.s32.totalorder %s28, 0
      %p55 = por %p53, %p54
      %s57 = sadd.s32 %s56, 1
      %p60 = scmp.eq.s32.totalorder %s22, 1
      %p61 = scmp.ne.s32.totalorder %s56, %s58
      %p62 = scmp.eq.s32.totalorder %s22, 0
      %p63 = por %p61, %p62
      %p64 = scmp.ne.s32.totalorder %s56, %s58
      %p65 = scmp.eq.s32.totalorder %s27, 1
      %p66 = por %p64, %p65
      %p67 = scmp.ne.s32.totalorder %s58, %s59
      %p68 = scmp.eq.s32.totalorder %s27, 0
      %p69 = por %p67, %p68
      %p70 = scmp.ne.s32.totalorder %s58, %s59
      %p71 = scmp.eq.s32.totalorder %s28, 1
      %p72 = por %p70, %p71
      %p74 = scmp.ne.s32.totalorder %s59, %s73
      %p75 = scmp.eq.s32.totalorder %s28, 0
      %p76 = por %p74, %p75
      %s78 = sadd.s32 %s77, 1
      %p81 = scmp.eq.s32.totalorder %s22, 1
      %p82 = scmp.ne.s32.totalorder %s77, %s79
      %p83 = scmp.eq.s32.totalorder %s22, 0
      %p84 = por %p82, %p83
      %p85 = scmp.ne.s32.totalorder %s77, %s79
      %p86 = scmp.eq.s32.totalorder %s27, 1
      %p87 = por %p85, %p86
      %p88 = scmp.ne.s32.totalorder %s79, %s80
      %p89 = scmp.eq.s32.totalorder %s27, 0
      %p90 = por %p88, %p89
      %p91 = scmp.ne.s32.totalorder %s79, %s80
      %p92 = scmp.eq.s32.totalorder %s28, 1
      %p93 = por %p91, %p92
      %p95 = scmp.ne.s32.totalorder %s80, %s94
      %p96 = scmp.eq.s32.totalorder %s28, 0
      %p97 = por %p95, %p96
      %s99 = sadd.s32 %s98, 1
      %p102 = scmp.eq.s32.totalorder %s22, 1
      %p103 = scmp.ne.s32.totalorder %s98, %s100
      %p104 = scmp.eq.s32.totalorder %s22, 0
      %p105 = por %p103, %p104
      %p106 = scmp.ne.s32.totalorder %s98, %s100
      %p107 = scmp.eq.s32.totalorder %s27, 1
      %p108 = por %p106, %p107
      %p109 = scmp.ne.s32.totalorder %s100, %s101
      %p110 = scmp.eq.s32.totalorder %s27, 0
      %p111 = por %p109, %p110
      %p112 = scmp.ne.s32.totalorder %s100, %s101
      %p113 = scmp.eq.s32.totalorder %s28, 1
      %p114 = por %p112, %p113
      %p116 = scmp.ne.s32.totalorder %s101, %s115
      %p117 = scmp.eq.s32.totalorder %s28, 0
      %p118 = por %p116, %p117
      %s120 = sadd.s32 %s119, 1
      %p123 = scmp.eq.s32.totalorder %s22, 1
      %p124 = scmp.ne.s32.totalorder %s119, %s121
      %p125 = scmp.eq.s32.totalorder %s22, 0
      %p126 = por %p124, %p125
      %p127 = scmp.ne.s32.totalorder %s119, %s121
      %p128 = scmp.eq.s32.totalorder %s27, 1
      %p129 = por %p127, %p128
      %p130 = scmp.ne.s32.totalorder %s121, %s122
      %p131 = scmp.eq.s32.totalorder %s27, 0
      %p132 = por %p130, %p131
      %p133 = scmp.ne.s32.totalorder %s121, %s122
      %p134 = scmp.eq.s32.totalorder %s28, 1
      %p135 = por %p133, %p134
      %p137 = scmp.ne.s32.totalorder %s122, %s136
      %p138 = scmp.eq.s32.totalorder %s28, 0
      %p139 = por %p137, %p138
      %s141 = sadd.s32 %s140, 1
      %p144 = scmp.eq.s32.totalorder %s22, 1
      %p145 = scmp.ne.s32.totalorder %s140, %s142
      %p146 = scmp.eq.s32.totalorder %s22, 0
      %p147 = por %p145, %p146
      %p148 = scmp.ne.s32.totalorder %s140, %s142
      %p149 = scmp.eq.s32.totalorder %s27, 1
      %p150 = por %p148, %p149
      %p151 = scmp.ne.s32.totalorder %s142, %s143
      %p152 = scmp.eq.s32.totalorder %s27, 0
      %p153 = por %p151, %p152
      %p154 = scmp.ne.s32.totalorder %s142, %s143
      %p155 = scmp.eq.s32.totalorder %s28, 1
      %p156 = por %p154, %p155
      %p158 = scmp.ne.s32.totalorder %s143, %s157
      %p159 = scmp.eq.s32.totalorder %s28, 0
      %p160 = por %p158, %p159
      %s162 = sadd.s32 %s161, 1
      %p165 = scmp.eq.s32.totalorder %s22, 1
      %p166 = scmp.ne.s32.totalorder %s161, %s163
      %p167 = scmp.eq.s32.totalorder %s22, 0
      %p168 = por %p166, %p167
      %p169 = scmp.ne.s32.totalorder %s161, %s163
      %p170 = scmp.eq.s32.totalorder %s27, 1
      %p171 = por %p169, %p170
      %p172 = scmp.ne.s32.totalorder %s163, %s164
      %p173 = scmp.eq.s32.totalorder %s27, 0
      %p174 = por %p172, %p173
      %p175 = scmp.ne.s32.totalorder %s163, %s164
      %p176 = scmp.eq.s32.totalorder %s28, 1
      %p177 = por %p175, %p176
      %p179 = scmp.ne.s32.totalorder %s164, %s178
      %p180 = scmp.eq.s32.totalorder %s28, 0
      %p181 = por %p179, %p180
      %s183 = sadd.s32 %s182, 1
      %p186 = scmp.eq.s32.totalorder %s22, 1
      %p187 = scmp.ne.s32.totalorder %s182, %s184
      %p188 = scmp.eq.s32.totalorder %s22, 0
      %p189 = por %p187, %p188
      %p190 = scmp.ne.s32.totalorder %s182, %s184
      %p191 = scmp.eq.s32.totalorder %s27, 1
      %p192 = por %p190, %p191
      %p193 = scmp.ne.s32.totalorder %s184, %s185
      %p194 = scmp.eq.s32.totalorder %s27, 0
      %p195 = por %p193, %p194
      %p196 = scmp.ne.s32.totalorder %s184, %s185
      %p197 = scmp.eq.s32.totalorder %s28, 1
      %p198 = por %p196, %p197
      %p200 = scmp.ne.s32.totalorder %s185, %s199
      %p201 = scmp.eq.s32.totalorder %s28, 0
      %p202 = por %p200, %p201
      %s204 = sadd.s32 %s203, 1
      %p207 = scmp.eq.s32.totalorder %s22, 1
      %p208 = scmp.ne.s32.totalorder %s203, %s205
      %p209 = scmp.eq.s32.totalorder %s22, 0
      %p210 = por %p208, %p209
      %p211 = scmp.ne.s32.totalorder %s203, %s205
      %p212 = scmp.eq.s32.totalorder %s27, 1
      %p213 = por %p211, %p212
      %p214 = scmp.ne.s32.totalorder %s205, %s206
      %p215 = scmp.eq.s32.totalorder %s27, 0
      %p216 = por %p214, %p215
      %p217 = scmp.ne.s32.totalorder %s205, %s206
      %p218 = scmp.eq.s32.totalorder %s28, 1
      %p219 = por %p217, %p218
      %p221 = scmp.ne.s32.totalorder %s206, %s220
      %p222 = scmp.eq.s32.totalorder %s28, 0
      %p223 = por %p221, %p222
      %s225 = sadd.s32 %s224, 1
      %p228 = scmp.eq.s32.totalorder %s22, 1
      %p229 = scmp.ne.s32.totalorder %s224, %s226
      %p230 = scmp.eq.s32.totalorder %s22, 0
      %p231 = por %p229, %p230
      %p232 = scmp.ne.s32.totalorder %s224, %s226
      %p233 = scmp.eq.s32.totalorder %s27, 1
      %p234 = por %p232, %p233
      %p235 = scmp.ne.s32.totalorder %s226, %s227
      %p236 = scmp.eq.s32.totalorder %s27, 0
      %p237 = por %p235, %p236
      %p238 = scmp.ne.s32.totalorder %s226, %s227
      %p239 = scmp.eq.s32.totalorder %s28, 1
      %p240 = por %p238, %p239
      %p242 = scmp.ne.s32.totalorder %s227, %s241
      %p243 = scmp.eq.s32.totalorder %s28, 0
      %p244 = por %p242, %p243
      %s246 = sadd.s32 %s245, 1
      %p249 = scmp.eq.s32.totalorder %s22, 1
      %p250 = scmp.ne.s32.totalorder %s245, %s247
      %p251 = scmp.eq.s32.totalorder %s22, 0
      %p252 = por %p250, %p251
      %p253 = scmp.ne.s32.totalorder %s245, %s247
      %p254 = scmp.eq.s32.totalorder %s27, 1
      %p255 = por %p253, %p254
      %p256 = scmp.ne.s32.totalorder %s247, %s248
      %p257 = scmp.eq.s32.totalorder %s27, 0
      %p258 = por %p256, %p257
      %p259 = scmp.ne.s32.totalorder %s247, %s248
      %p260 = scmp.eq.s32.totalorder %s28, 1
      %p261 = por %p259, %p260
      %p263 = scmp.ne.s32.totalorder %s248, %s262
      %p264 = scmp.eq.s32.totalorder %s28, 0
      %p265 = por %p263, %p264
      %s267 = sadd.s32 %s266, 1
      %p270 = scmp.eq.s32.totalorder %s22, 1
      %p271 = scmp.ne.s32.totalorder %s266, %s268
      %p272 = scmp.eq.s32.totalorder %s22, 0
      %p273 = por %p271, %p272
      %p274 = scmp.ne.s32.totalorder %s266, %s268
      %p275 = scmp.eq.s32.totalorder %s27, 1
      %p276 = por %p274, %p275
      %p277 = scmp.ne.s32.totalorder %s268, %s269
      %p278 = scmp.eq.s32.totalorder %s27, 0
      %p279 = por %p277, %p278
      %p280 = scmp.ne.s32.totalorder %s268, %s269
      %p281 = scmp.eq.s32.totalorder %s28, 1
      %p282 = por %p280, %p281
      %p284 = scmp.ne.s32.totalorder %s269, %s283
      %p285 = scmp.eq.s32.totalorder %s28, 0
      %p286 = por %p284, %p285
      %s288 = sadd.s32 %s287, 1
      %p291 = scmp.eq.s32.totalorder %s22, 1
      %p292 = scmp.ne.s32.totalorder %s287, %s289
      %p293 = scmp.eq.s32.totalorder %s22, 0
      %p294 = por %p292, %p293
      %p295 = scmp.ne.s32.totalorder %s287, %s289
      %p296 = scmp.eq.s32.totalorder %s27, 1
      %p297 = por %p295, %p296
      %p298 = scmp.ne.s32.totalorder %s289, %s290
      %p299 = scmp.eq.s32.totalorder %s27, 0
      %p300 = por %p298, %p299
      %p301 = scmp.ne.s32.totalorder %s289, %s290
      %p302 = scmp.eq.s32.totalorder %s28, 1
      %p303 = por %p301, %p302
      %p305 = scmp.ne.s32.totalorder %s290, %s304
      %p306 = scmp.eq.s32.totalorder %s28, 0
      %p307 = por %p305, %p306
      %s308 = ssub.s32 %s22, %s29
      %p309 = scmp.eq.s32.totalorder %s308, 0
      %s311 = sadd.s32 %s310, 1
      %s312 = scalar_select %p309, %s310, %s311
      %p315 = pneg %p309
      %p316 = scmp.eq.s32.totalorder %s22, 1
      %p317 = por %p315, %p316
      %p318 = scmp.ne.s32.totalorder %s310, %s313
      %p319 = scmp.eq.s32.totalorder %s22, 0
      %p320 = por %p318, %p319
      %p321 = scmp.ne.s32.totalorder %s310, %s313
      %p322 = scmp.eq.s32.totalorder %s27, 1
      %p323 = por %p321, %p322
      %p324 = scmp.ne.s32.totalorder %s313, %s314
      %p325 = scmp.eq.s32.totalorder %s27, 0
      %p326 = por %p324, %p325
      %p327 = scmp.ne.s32.totalorder %s313, %s314
      %p328 = scmp.eq.s32.totalorder %s28, 1
      %p329 = por %p327, %p328
      %p331 = scmp.ne.s32.totalorder %s314, %s330
      %p332 = scmp.eq.s32.totalorder %s28, 0
      %p333 = por %p331, %p332
      %p334 = scmp.le.s32.totalorder 1, %s22
      %p335 = scmp.lt.s32.totalorder %s22, 3
      %p336 = pnand %p334, %p335
      %p337 = pneg %p336
      // Predicated region
      $region9: #{tpu_custom_call.1} parent=5 // pred_check
        _
      $region10: #{tpu_custom_call.1} parent=5 // pred_check_branch
        %339 = sbr.rel (%p336) target = $region12
      $region11: #{tpu_custom_call.1} parent=5 // pred_region
        %s340 = ssub.s32 %s22, 1
        // Predicated region
        $region13: #{tpu_custom_call.1} parent=11 // pred_check
          %p341 = pneg %p69
        $region14: #{tpu_custom_call.1} parent=11 // pred_check_branch
          %343 = sbr.rel (%p341) target = $region16
        $region15: #{tpu_custom_call.1} parent=11 // pred_region
          _
        $region16: #{tpu_custom_call.1} parent=11 // pred_fallthru
          _
        // Predicated region
        $region17: #{tpu_custom_call.1} parent=11 // pred_check
          %p344 = pneg %p90
        $region18: #{tpu_custom_call.1} parent=11 // pred_check_branch
          %346 = sbr.rel (%p344) target = $region20
        $region19: #{tpu_custom_call.1} parent=11 // pred_region
          _
        $region20: #{tpu_custom_call.1} parent=11 // pred_fallthru
          _
        // Predicated region
        $region21: #{tpu_custom_call.1} parent=11 // pred_check
          %p347 = pneg %p111
        $region22: #{tpu_custom_call.1} parent=11 // pred_check_branch
          %349 = sbr.rel (%p347) target = $region24
        $region23: #{tpu_custom_call.1} parent=11 // pred_region
          _
        $region24: #{tpu_custom_call.1} parent=11 // pred_fallthru
          _
        // Predicated region
        $region25: #{tpu_custom_call.1} parent=11 // pred_check
          %p350 = pneg %p132
        $region26: #{tpu_custom_call.1} parent=11 // pred_check_branch
          %352 = sbr.rel (%p350) target = $region28
        $region27: #{tpu_custom_call.1} parent=11 // pred_region
          _
        $region28: #{tpu_custom_call.1} parent=11 // pred_fallthru
          _
        // Predicated region
        $region29: #{tpu_custom_call.1} parent=11 // pred_check
          %p353 = pneg %p153
        $region30: #{tpu_custom_call.1} parent=11 // pred_check_branch
          %355 = sbr.rel (%p353) target = $region32
        $region31: #{tpu_custom_call.1} parent=11 // pred_region
          _
        $region32: #{tpu_custom_call.1} parent=11 // pred_fallthru
          _
        // Predicated region
        $region33: #{tpu_custom_call.1} parent=11 // pred_check
          %p356 = pneg %p174
        $region34: #{tpu_custom_call.1} parent=11 // pred_check_branch
          %358 = sbr.rel (%p356) target = $region36
        $region35: #{tpu_custom_call.1} parent=11 // pred_region
          _
        $region36: #{tpu_custom_call.1} parent=11 // pred_fallthru
          _
        // Predicated region
        $region37: #{tpu_custom_call.1} parent=11 // pred_check
          %p359 = pneg %p195
        $region38: #{tpu_custom_call.1} parent=11 // pred_check_branch
          %361 = sbr.rel (%p359) target = $region40
        $region39: #{tpu_custom_call.1} parent=11 // pred_region
          _
        $region40: #{tpu_custom_call.1} parent=11 // pred_fallthru
          _
        // Predicated region
        $region41: #{tpu_custom_call.1} parent=11 // pred_check
          %p362 = pneg %p216
        $region42: #{tpu_custom_call.1} parent=11 // pred_check_branch
          %364 = sbr.rel (%p362) target = $region44
        $region43: #{tpu_custom_call.1} parent=11 // pred_region
          _
        $region44: #{tpu_custom_call.1} parent=11 // pred_fallthru
          _
        // Predicated region
        $region45: #{tpu_custom_call.1} parent=11 // pred_check
          %p365 = pneg %p237
        $region46: #{tpu_custom_call.1} parent=11 // pred_check_branch
          %367 = sbr.rel (%p365) target = $region48
        $region47: #{tpu_custom_call.1} parent=11 // pred_region
          _
        $region48: #{tpu_custom_call.1} parent=11 // pred_fallthru
          _
        // Predicated region
        $region49: #{tpu_custom_call.1} parent=11 // pred_check
          %p368 = pneg %p258
        $region50: #{tpu_custom_call.1} parent=11 // pred_check_branch
          %370 = sbr.rel (%p368) target = $region52
        $region51: #{tpu_custom_call.1} parent=11 // pred_region
          _
        $region52: #{tpu_custom_call.1} parent=11 // pred_fallthru
          _
        // Predicated region
        $region53: #{tpu_custom_call.1} parent=11 // pred_check
          %p371 = pneg %p279
        $region54: #{tpu_custom_call.1} parent=11 // pred_check_branch
          %373 = sbr.rel (%p371) target = $region56
        $region55: #{tpu_custom_call.1} parent=11 // pred_region
          _
        $region56: #{tpu_custom_call.1} parent=11 // pred_fallthru
          _
        // Predicated region
        $region57: #{tpu_custom_call.1} parent=11 // pred_check
          %p374 = pneg %p300
        $region58: #{tpu_custom_call.1} parent=11 // pred_check_branch
          %376 = sbr.rel (%p374) target = $region60
        $region59: #{tpu_custom_call.1} parent=11 // pred_region
          _
        $region60: #{tpu_custom_call.1} parent=11 // pred_fallthru
          _
      $region12: #{tpu_custom_call.1} parent=5 // pred_fallthru
        _
      %p377 = scmp.lt.s32.totalorder %s22, 2
      // Predicated region
      $region61: #{tpu_custom_call.1} parent=5 // pred_check
        %p378 = pneg %p377
      $region62: #{tpu_custom_call.1} parent=5 // pred_check_branch
        %380 = sbr.rel (%p378) target = $region64
      $region63: #{tpu_custom_call.1} parent=5 // pred_region
        // Predicated region
        $region65: #{tpu_custom_call.1} parent=63 // pred_check
          %p381 = pneg %p42
        $region66: #{tpu_custom_call.1} parent=63 // pred_check_branch
          %383 = sbr.rel (%p381) target = $region68
        $region67: #{tpu_custom_call.1} parent=63 // pred_region
          %p384 = scmp.lt.s32.totalorder %s22, 1
          %s385 = scalar_select %p384, %s22, 1
          %s386 = smul.addr %s385, 8
          %s387 = scalar_lea.vmem %s0, %s386
        $region68: #{tpu_custom_call.1} parent=63 // pred_fallthru
          _
      $region64: #{tpu_custom_call.1} parent=5 // pred_fallthru
        _
      %p388 = scmp.le.s32.totalorder 1, %s22
      %p389 = scmp.lt.s32.totalorder %s22, 3
      %p390 = pnand %p388, %p389
      %p391 = pneg %p390
      // Predicated region
      $region69: #{tpu_custom_call.1} parent=5 // pred_check
        _
      $region70: #{tpu_custom_call.1} parent=5 // pred_check_branch
        %393 = sbr.rel (%p390) target = $region72
      $region71: #{tpu_custom_call.1} parent=5 // pred_region
        %s394 = ssub.s32 %s22, 1
        %p395 = scmp.lt.s32.totalorder %s27, 1
        %s396 = scalar_select %p395, %s27, 1
        %s397 = smul.addr %s396, 8
        %s398 = scalar_lea.vmem %s0, %s397
        %p399 = pneg %p48
        %p400 = pneg %p45
        %p401 = pneg %p69
        %p402 = pneg %p66
        %p403 = pneg %p90
        %p404 = pneg %p87
        %p405 = pneg %p111
        %p406 = pneg %p108
        %p407 = pneg %p132
        %p408 = pneg %p129
        %p409 = pneg %p153
        %p410 = pneg %p150
        %p411 = pneg %p174
        %p412 = pneg %p171
        %p413 = pneg %p195
        %p414 = pneg %p192
        %p415 = pneg %p216
        %p416 = pneg %p213
        %p417 = pneg %p237
        %p418 = pneg %p234
        %p419 = pneg %p258
        %p420 = pneg %p255
        %p421 = pneg %p279
        %p422 = pneg %p276
        %p423 = pneg %p300
        %p424 = pneg %p297
        %p425 = pneg %p326
        %p426 = pneg %p323
        %s427 = sand.u32 %s313, 1
        %s428 = scalar_lea.sflag [#allocation3], %s427
        %s429 = sand.u32 %s313, 1
        %s430 = smul.addr %s429, 8
        %s431 = scalar_lea.vmem [#allocation2], %s430
        %p432 = scmp.lt.s32.totalorder %s27, 1
        %s433 = scalar_select %p432, %s27, 1
        %s434 = smul.addr %s433, 8
        %s435 = scalar_lea.vmem %s0, %s434
        %v437 = vld [vmem:[%s435] sm:$0xff]
        %v438 = vld [vmem:[%s1] sm:$0x1]
        %v439 = vld [vmem:[%s2] sm:$0x1]
        %vm440 = vcmask 261120
        %v441 = vsel %vm440, %v437, 0.0
        %442 = vadd.xlane.f32.xlu0 %v441
        %v443 = vpop.xlane.xlu0 %442
        %v444 = vrcp.pop 32.0
        %v445 = vmul.f32 %v443, %v444
        %v446 = vsub.f32 %v437, %v445
        %v447 = vmul.f32 %v446, %v446
        %v448 = vsel %vm440, %v447, 0.0
        %449 = vadd.xlane.f32.xlu0 %v448
        %v450 = vpop.xlane.xlu0 %449
        %v451 = vmul.f32 %v450, %v444
        %v452 = vadd.f32 %v451, 1e-05
        %v453 = vrsqrt.pop %v452
        %v454 = vmul.f32 %v446, %v453
        %v456 = vlaneseq
        %v457 = vshrl.u32 %v456, 7
        %v458 = vsub.s32 0, %v457
        %v459 = vrot.slane %v438, %v458
        %v461 = vmul.f32 %v454, %v459
        %v463 = vlaneseq
        %v464 = vshrl.u32 %v463, 7
        %v465 = vsub.s32 0, %v464
        %v466 = vrot.slane %v439, %v465
        %v468 = vadd.f32 %v461, %v466
        %v469 = vpack.c.bf16 %v468, %v468
        %v470 = vld [vmem:[%s3] sm:$0xf]
        %v471 = vld [vmem:[%s3 + $0x4] sm:$0xf]
        %v472 = vld [vmem:[%s3 + $0x8] sm:$0xf]
        %v473 = vld [vmem:[%s3 + $0xc] sm:$0xf]
        %v474 = vld [vmem:[%s4] sm:$0x1]
        %v476 = vlaneseq
        %v477 = vshrl.u32 %v476, 7
        %v478 = vsub.s32 0, %v477
        %v479 = vrot.slane %v474, %v478
        %v485 = vunpack.c.l.b16 %v470
        %v486 = vunpack.c.l.b16 %v471
        %v487 = vunpack.c.l.b16 %v472
        %v488 = vunpack.c.l.b16 %v473
        %v489 = vpack.c.b16 %v486, %v485
        %v490 = vpack.c.b16 %v488, %v487
        %v494 = vsel %vm440, %v469, 0
        %496 = vmatprep.subr.bf16.mxu0 0
        %497 = vmatpush1.bf16.msra.mxu0 0
        %498 = vmatprep.subr.bf16.mxu0 0
        %499 = vmatpush1.bf16.msra.mxu0 0
        %500 = vmatprep.subr.bf16.mxu0 0
        %501 = vmatpush1.bf16.msra.mxu0 0
        %502 = vmatprep.subr.bf16.mxu0 0
        %503 = vmatpush1.bf16.msra.mxu0 0
        %504 = vmatprep.subr.bf16.mxu0 0
        %505 = vmatpush1.bf16.msra.mxu0 0
        %506 = vmatprep.subr.bf16.mxu0 0
        %507 = vmatpush1.bf16.msra.mxu0 0
        %508 = vmatprep.subr.bf16.mxu0 0
        %509 = vmatpush1.bf16.msra.mxu0 %v490
        %510 = vmatprep.subr.bf16.mxu0 0
        %511 = vmatpush1.bf16.msra.mxu0 %v489
        %512 = vmatprep.subr.bf16.mxu0 0
        %513 = vmatpush2.bf16.msra.mxu0 0
        %514 = vmatprep.subr.bf16.mxu0 0
        %515 = vmatpush2.bf16.msra.mxu0 0
        %516 = vmatprep.subr.bf16.mxu0 0
        %517 = vmatpush2.bf16.msra.mxu0 0
        %518 = vmatprep.subr.bf16.mxu0 0
        %519 = vmatpush2.bf16.msra.mxu0 0
        %520 = vmatprep.subr.bf16.mxu0 0
        %521 = vmatpush2.bf16.msra.mxu0 0
        %522 = vmatprep.subr.bf16.mxu0 0
        %523 = vmatpush2.bf16.msra.mxu0 0
        %524 = vmatprep.subr.bf16.mxu0 0
        %525 = vmatpush2.bf16.msra.mxu0 0
        %526 = vmatprep.subr.bf16.mxu0 0
        %527 = vmatpush2.bf16.msra.mxu0 0
        %528 = vmatprep.mubr.bf16.mxu0 0
        %529 = vmatmul.mubr.bf16.gmra.mxu0 %v494
        %v530 = vpop.f32.mrf.mxu0
        %v531 = vadd.f32 %v479, %v530
        %v532 = vpop.f32.mrf.mxu0
        %v533 = vpop.f32.mrf.mxu0
        %v534 = vpop.f32.mrf.mxu0
        %535 = vdwg.mxu0
        %v536 = vlaneseq
        %v537 = vshrl.u32 %v536, 7
        %v538 = vlaneseq
        %v539 = vand.u32 %v538, 127
        %vm540 = vcmp.ge.s32.totalorder %v537, %v539
        %v541 = vpack.c.bf16 %v531, %v531
        %543 = vrot.lane.b32.xlu0 %v541, 96
        %v544 = vpop.permute.xlu0 %543
        %vm545 = vcmask 64512
        %v547 = vsel %vm545, %v541, 0
        %v550 = vsel %vm545, %v544, 0
        %552 = vmatprep.subr.bf16.mxu0 0
        %553 = vmatpush1.bf16.xpose.msra.mxu0 0
        %554 = vmatprep.subr.bf16.mxu0 0
        %555 = vmatpush1.bf16.xpose.msra.mxu0 0
        %556 = vmatprep.subr.bf16.mxu0 0
        %557 = vmatpush1.bf16.xpose.msra.mxu0 0
        %558 = vmatprep.subr.bf16.mxu0 0
        %559 = vmatpush1.bf16.xpose.msra.mxu0 0
        %560 = vmatprep.subr.bf16.mxu0 0
        %561 = vmatpush1.bf16.xpose.msra.mxu0 0
        %562 = vmatprep.subr.bf16.mxu0 0
        %563 = vmatpush1.bf16.xpose.msra.mxu0 0
        %564 = vmatprep.subr.bf16.mxu0 0
        %565 = vmatpush1.bf16.xpose.msra.mxu0 0
        %566 = vmatprep.subr.bf16.mxu0 0
        %567 = vmatpush1.bf16.xpose.msra.mxu0 %v550
        %568 = vmatprep.subr.bf16.mxu0 0
        %569 = vmatpush2.bf16.xpose.msra.mxu0 0
        %570 = vmatprep.subr.bf16.mxu0 0
        %571 = vmatpush2.bf16.xpose.msra.mxu0 0
        %572 = vmatprep.subr.bf16.mxu0 0
        %573 = vmatpush2.bf16.xpose.msra.mxu0 0
        %574 = vmatprep.subr.bf16.mxu0 0
        %575 = vmatpush2.bf16.xpose.msra.mxu0 0
        %576 = vmatprep.subr.bf16.mxu0 0
        %577 = vmatpush2.bf16.xpose.msra.mxu0 0
        %578 = vmatprep.subr.bf16.mxu0 0
        %579 = vmatpush2.bf16.xpose.msra.mxu0 0
        %580 = vmatprep.subr.bf16.mxu0 0
        %581 = vmatpush2.bf16.xpose.msra.mxu0 0
        %582 = vmatprep.subr.bf16.mxu0 0
        %583 = vmatpush2.bf16.xpose.msra.mxu0 0
        %584 = vmatprep.mubr.bf16.mxu0 0
        %585 = vmatmul.mubr.bf16.gmra.mxu0 %v547
        %v586 = vpop.f32.mrf.mxu0
        %v587 = vadd.f32 0.0, %v586
        %v588 = vpop.f32.mrf.mxu0
        %v589 = vpop.f32.mrf.mxu0
        %v590 = vpop.f32.mrf.mxu0
        %591 = vdwg.mxu0
        %v592 = vmul.f32 %v587, 0.35355338
        %v593 = vsel %vm540, %v592, -1e+30
        %v594 = vsel %vm545, %v593, -inf
        %595 = vmax.xlane.f32.xlu0 %v594
        %v596 = vpop.xlane.xlu0 %595
        %v597 = vsub.f32 %v593, %v596
        %v598 = vmul.f32 %v597, 1.442695
        %v599 = vpow.pop %v598
        %v600 = vsel %vm545, %v599, 0.0
        %601 = vadd.xlane.f32.xlu0 %v600
        %v602 = vpop.xlane.xlu0 %601
        %v603 = vrcp.pop %v602
        %v604 = vmul.f32 %v599, %v603
        %v605 = vpack.c.bf16 %v604, %v604
        %606 = vrot.lane.b32.xlu0 %v541, 64
        %v607 = vpop.permute.xlu0 %606
        %v609 = vsel %vm545, %v605, 0
        %vm611 = vcmask 1043456
        %v613 = vsel %vm611, %v607, 0
        %615 = vmatprep.subr.bf16.mxu0 0
        %616 = vmatpush1.bf16.msra.mxu0 0
        %617 = vmatprep.subr.bf16.mxu0 0
        %618 = vmatpush1.bf16.msra.mxu0 0
        %619 = vmatprep.subr.bf16.mxu0 0
        %620 = vmatpush1.bf16.msra.mxu0 0
        %621 = vmatprep.subr.bf16.mxu0 0
        %622 = vmatpush1.bf16.msra.mxu0 0
        %623 = vmatprep.subr.bf16.mxu0 0
        %624 = vmatpush1.bf16.msra.mxu0 0
        %625 = vmatprep.subr.bf16.mxu0 0
        %626 = vmatpush1.bf16.msra.mxu0 0
        %627 = vmatprep.subr.bf16.mxu0 0
        %628 = vmatpush1.bf16.msra.mxu0 0
        %629 = vmatprep.subr.bf16.mxu0 0
        %630 = vmatpush1.bf16.msra.mxu0 %v613
        %631 = vmatprep.subr.bf16.mxu0 0
        %632 = vmatpush2.bf16.msra.mxu0 0
        %633 = vmatprep.subr.bf16.mxu0 0
        %634 = vmatpush2.bf16.msra.mxu0 0
        %635 = vmatprep.subr.bf16.mxu0 0
        %636 = vmatpush2.bf16.msra.mxu0 0
        %637 = vmatprep.subr.bf16.mxu0 0
        %638 = vmatpush2.bf16.msra.mxu0 0
        %639 = vmatprep.subr.bf16.mxu0 0
        %640 = vmatpush2.bf16.msra.mxu0 0
        %641 = vmatprep.subr.bf16.mxu0 0
        %642 = vmatpush2.bf16.msra.mxu0 0
        %643 = vmatprep.subr.bf16.mxu0 0
        %644 = vmatpush2.bf16.msra.mxu0 0
        %645 = vmatprep.subr.bf16.mxu0 0
        %646 = vmatpush2.bf16.msra.mxu0 0
        %647 = vmatprep.mubr.bf16.mxu0 0
        %648 = vmatmul.mubr.bf16.gmra.mxu0 %v609
        %v649 = vpop.f32.mrf.mxu0
        %v650 = vadd.f32 0.0, %v649
        %v651 = vpop.f32.mrf.mxu0
        %v652 = vpop.f32.mrf.mxu0
        %v653 = vpop.f32.mrf.mxu0
        %654 = vdwg.mxu0
        %655 = vrot.lane.b32.xlu0 %v541, 120
        %v656 = vpop.permute.xlu0 %655
        %657 = vrot.lane.b32.xlu0 %v541, 88
        %v658 = vpop.permute.xlu0 %657
        %v660 = vsel %vm545, %v656, 0
        %v663 = vsel %vm545, %v658, 0
        %665 = vmatprep.subr.bf16.mxu0 0
        %666 = vmatpush1.bf16.xpose.msra.mxu0 0
        %667 = vmatprep.subr.bf16.mxu0 0
        %668 = vmatpush1.bf16.xpose.msra.mxu0 0
        %669 = vmatprep.subr.bf16.mxu0 0
        %670 = vmatpush1.bf16.xpose.msra.mxu0 0
        %671 = vmatprep.subr.bf16.mxu0 0
        %672 = vmatpush1.bf16.xpose.msra.mxu0 0
        %673 = vmatprep.subr.bf16.mxu0 0
        %674 = vmatpush1.bf16.xpose.msra.mxu0 0
        %675 = vmatprep.subr.bf16.mxu0 0
        %676 = vmatpush1.bf16.xpose.msra.mxu0 0
        %677 = vmatprep.subr.bf16.mxu0 0
        %678 = vmatpush1.bf16.xpose.msra.mxu0 0
        %679 = vmatprep.subr.bf16.mxu0 0
        %680 = vmatpush1.bf16.xpose.msra.mxu0 %v663
        %681 = vmatprep.subr.bf16.mxu0 0
        %682 = vmatpush2.bf16.xpose.msra.mxu0 0
        %683 = vmatprep.subr.bf16.mxu0 0
        %684 = vmatpush2.bf16.xpose.msra.mxu0 0
        %685 = vmatprep.subr.bf16.mxu0 0
        %686 = vmatpush2.bf16.xpose.msra.mxu0 0
        %687 = vmatprep.subr.bf16.mxu0 0
        %688 = vmatpush2.bf16.xpose.msra.mxu0 0
        %689 = vmatprep.subr.bf16.mxu0 0
        %690 = vmatpush2.bf16.xpose.msra.mxu0 0
        %691 = vmatprep.subr.bf16.mxu0 0
        %692 = vmatpush2.bf16.xpose.msra.mxu0 0
        %693 = vmatprep.subr.bf16.mxu0 0
        %694 = vmatpush2.bf16.xpose.msra.mxu0 0
        %695 = vmatprep.subr.bf16.mxu0 0
        %696 = vmatpush2.bf16.xpose.msra.mxu0 0
        %697 = vmatprep.mubr.bf16.mxu0 0
        %698 = vmatmul.mubr.bf16.gmra.mxu0 %v660
        %v699 = vpop.f32.mrf.mxu0
        %v700 = vadd.f32 0.0, %v699
        %v701 = vpop.f32.mrf.mxu0
        %v702 = vpop.f32.mrf.mxu0
        %v703 = vpop.f32.mrf.mxu0
        %704 = vdwg.mxu0
        %v705 = vmul.f32 %v700, 0.35355338
        %v706 = vsel %vm540, %v705, -1e+30
        %v707 = vsel %vm545, %v706, -inf
        %708 = vmax.xlane.f32.xlu0 %v707
        %v709 = vpop.xlane.xlu0 %708
        %v710 = vsub.f32 %v706, %v709
        %v711 = vmul.f32 %v710, 1.442695
        %v712 = vpow.pop %v711
        %v713 = vsel %vm545, %v712, 0.0
        %714 = vadd.xlane.f32.xlu0 %v713
        %v715 = vpop.xlane.xlu0 %714
        %v716 = vrcp.pop %v715
        %v717 = vmul.f32 %v712, %v716
        %v718 = vpack.c.bf16 %v717, %v717
        %719 = vrot.lane.b32.xlu0 %v541, 56
        %v720 = vpop.permute.xlu0 %719
        %v722 = vsel %vm545, %v718, 0
        %v725 = vsel %vm611, %v720, 0
        %727 = vmatprep.subr.bf16.mxu0 0
        %728 = vmatpush1.bf16.msra.mxu0 0
        %729 = vmatprep.subr.bf16.mxu0 0
        %730 = vmatpush1.bf16.msra.mxu0 0
        %731 = vmatprep.subr.bf16.mxu0 0
        %732 = vmatpush1.bf16.msra.mxu0 0
        %733 = vmatprep.subr.bf16.mxu0 0
        %734 = vmatpush1.bf16.msra.mxu0 0
        %735 = vmatprep.subr.bf16.mxu0 0
        %736 = vmatpush1.bf16.msra.mxu0 0
        %737 = vmatprep.subr.bf16.mxu0 0
        %738 = vmatpush1.bf16.msra.mxu0 0
        %739 = vmatprep.subr.bf16.mxu0 0
        %740 = vmatpush1.bf16.msra.mxu0 0
        %741 = vmatprep.subr.bf16.mxu0 0
        %742 = vmatpush1.bf16.msra.mxu0 %v725
        %743 = vmatprep.subr.bf16.mxu0 0
        %744 = vmatpush2.bf16.msra.mxu0 0
        %745 = vmatprep.subr.bf16.mxu0 0
        %746 = vmatpush2.bf16.msra.mxu0 0
        %747 = vmatprep.subr.bf16.mxu0 0
        %748 = vmatpush2.bf16.msra.mxu0 0
        %749 = vmatprep.subr.bf16.mxu0 0
        %750 = vmatpush2.bf16.msra.mxu0 0
        %751 = vmatprep.subr.bf16.mxu0 0
        %752 = vmatpush2.bf16.msra.mxu0 0
        %753 = vmatprep.subr.bf16.mxu0 0
        %754 = vmatpush2.bf16.msra.mxu0 0
        %755 = vmatprep.subr.bf16.mxu0 0
        %756 = vmatpush2.bf16.msra.mxu0 0
        %757 = vmatprep.subr.bf16.mxu0 0
        %758 = vmatpush2.bf16.msra.mxu0 0
        %759 = vmatprep.mubr.bf16.mxu0 0
        %760 = vmatmul.mubr.bf16.gmra.mxu0 %v722
        %v761 = vpop.f32.mrf.mxu0
        %v762 = vadd.f32 0.0, %v761
        %v763 = vpop.f32.mrf.mxu0
        %v764 = vpop.f32.mrf.mxu0
        %v765 = vpop.f32.mrf.mxu0
        %766 = vdwg.mxu0
        %767 = vrot.lane.b32.xlu0 %v541, 112
        %v768 = vpop.permute.xlu0 %767
        %769 = vrot.lane.b32.xlu0 %v541, 80
        %v770 = vpop.permute.xlu0 %769
        %v772 = vsel %vm545, %v768, 0
        %v775 = vsel %vm545, %v770, 0
        %777 = vmatprep.subr.bf16.mxu0 0
        %778 = vmatpush1.bf16.xpose.msra.mxu0 0
        %779 = vmatprep.subr.bf16.mxu0 0
        %780 = vmatpush1.bf16.xpose.msra.mxu0 0
        %781 = vmatprep.subr.bf16.mxu0 0
        %782 = vmatpush1.bf16.xpose.msra.mxu0 0
        %783 = vmatprep.subr.bf16.mxu0 0
        %784 = vmatpush1.bf16.xpose.msra.mxu0 0
        %785 = vmatprep.subr.bf16.mxu0 0
        %786 = vmatpush1.bf16.xpose.msra.mxu0 0
        %787 = vmatprep.subr.bf16.mxu0 0
        %788 = vmatpush1.bf16.xpose.msra.mxu0 0
        %789 = vmatprep.subr.bf16.mxu0 0
        %790 = vmatpush1.bf16.xpose.msra.mxu0 0
        %791 = vmatprep.subr.bf16.mxu0 0
        %792 = vmatpush1.bf16.xpose.msra.mxu0 %v775
        %793 = vmatprep.subr.bf16.mxu0 0
        %794 = vmatpush2.bf16.xpose.msra.mxu0 0
        %795 = vmatprep.subr.bf16.mxu0 0
        %796 = vmatpush2.bf16.xpose.msra.mxu0 0
        %797 = vmatprep.subr.bf16.mxu0 0
        %798 = vmatpush2.bf16.xpose.msra.mxu0 0
        %799 = vmatprep.subr.bf16.mxu0 0
        %800 = vmatpush2.bf16.xpose.msra.mxu0 0
        %801 = vmatprep.subr.bf16.mxu0 0
        %802 = vmatpush2.bf16.xpose.msra.mxu0 0
        %803 = vmatprep.subr.bf16.mxu0 0
        %804 = vmatpush2.bf16.xpose.msra.mxu0 0
        %805 = vmatprep.subr.bf16.mxu0 0
        %806 = vmatpush2.bf16.xpose.msra.mxu0 0
        %807 = vmatprep.subr.bf16.mxu0 0
        %808 = vmatpush2.bf16.xpose.msra.mxu0 0
        %809 = vmatprep.mubr.bf16.mxu0 0
        %810 = vmatmul.mubr.bf16.gmra.mxu0 %v772
        %v811 = vpop.f32.mrf.mxu0
        %v812 = vadd.f32 0.0, %v811
        %v813 = vpop.f32.mrf.mxu0
        %v814 = vpop.f32.mrf.mxu0
        %v815 = vpop.f32.mrf.mxu0
        %816 = vdwg.mxu0
        %v817 = vmul.f32 %v812, 0.35355338
        %v818 = vsel %vm540, %v817, -1e+30
        %v819 = vsel %vm545, %v818, -inf
        %820 = vmax.xlane.f32.xlu0 %v819
        %v821 = vpop.xlane.xlu0 %820
        %v822 = vsub.f32 %v818, %v821
        %v823 = vmul.f32 %v822, 1.442695
        %v824 = vpow.pop %v823
        %v825 = vsel %vm545, %v824, 0.0
        %826 = vadd.xlane.f32.xlu0 %v825
        %v827 = vpop.xlane.xlu0 %826
        %v828 = vrcp.pop %v827
        %v829 = vmul.f32 %v824, %v828
        %v830 = vpack.c.bf16 %v829, %v829
        %831 = vrot.lane.b32.xlu0 %v541, 48
        %v832 = vpop.permute.xlu0 %831
        %v834 = vsel %vm545, %v830, 0
        %v837 = vsel %vm611, %v832, 0
        %839 = vmatprep.subr.bf16.mxu0 0
        %840 = vmatpush1.bf16.msra.mxu0 0
        %841 = vmatprep.subr.bf16.mxu0 0
        %842 = vmatpush1.bf16.msra.mxu0 0
        %843 = vmatprep.subr.bf16.mxu0 0
        %844 = vmatpush1.bf16.msra.mxu0 0
        %845 = vmatprep.subr.bf16.mxu0 0
        %846 = vmatpush1.bf16.msra.mxu0 0
        %847 = vmatprep.subr.bf16.mxu0 0
        %848 = vmatpush1.bf16.msra.mxu0 0
        %849 = vmatprep.subr.bf16.mxu0 0
        %850 = vmatpush1.bf16.msra.mxu0 0
        %851 = vmatprep.subr.bf16.mxu0 0
        %852 = vmatpush1.bf16.msra.mxu0 0
        %853 = vmatprep.subr.bf16.mxu0 0
        %854 = vmatpush1.bf16.msra.mxu0 %v837
        %855 = vmatprep.subr.bf16.mxu0 0
        %856 = vmatpush2.bf16.msra.mxu0 0
        %857 = vmatprep.subr.bf16.mxu0 0
        %858 = vmatpush2.bf16.msra.mxu0 0
        %859 = vmatprep.subr.bf16.mxu0 0
        %860 = vmatpush2.bf16.msra.mxu0 0
        %861 = vmatprep.subr.bf16.mxu0 0
        %862 = vmatpush2.bf16.msra.mxu0 0
        %863 = vmatprep.subr.bf16.mxu0 0
        %864 = vmatpush2.bf16.msra.mxu0 0
        %865 = vmatprep.subr.bf16.mxu0 0
        %866 = vmatpush2.bf16.msra.mxu0 0
        %867 = vmatprep.subr.bf16.mxu0 0
        %868 = vmatpush2.bf16.msra.mxu0 0
        %869 = vmatprep.subr.bf16.mxu0 0
        %870 = vmatpush2.bf16.msra.mxu0 0
        %871 = vmatprep.mubr.bf16.mxu0 0
        %872 = vmatmul.mubr.bf16.gmra.mxu0 %v834
        %v873 = vpop.f32.mrf.mxu0
        %v874 = vadd.f32 0.0, %v873
        %v875 = vpop.f32.mrf.mxu0
        %v876 = vpop.f32.mrf.mxu0
        %v877 = vpop.f32.mrf.mxu0
        %878 = vdwg.mxu0
        %879 = vrot.lane.b32.xlu0 %v541, 104
        %v880 = vpop.permute.xlu0 %879
        %881 = vrot.lane.b32.xlu0 %v541, 72
        %v882 = vpop.permute.xlu0 %881
        %v884 = vsel %vm545, %v880, 0
        %v887 = vsel %vm545, %v882, 0
        %889 = vmatprep.subr.bf16.mxu0 0
        %890 = vmatpush1.bf16.xpose.msra.mxu0 0
        %891 = vmatprep.subr.bf16.mxu0 0
        %892 = vmatpush1.bf16.xpose.msra.mxu0 0
        %893 = vmatprep.subr.bf16.mxu0 0
        %894 = vmatpush1.bf16.xpose.msra.mxu0 0
        %895 = vmatprep.subr.bf16.mxu0 0
        %896 = vmatpush1.bf16.xpose.msra.mxu0 0
        %897 = vmatprep.subr.bf16.mxu0 0
        %898 = vmatpush1.bf16.xpose.msra.mxu0 0
        %899 = vmatprep.subr.bf16.mxu0 0
        %900 = vmatpush1.bf16.xpose.msra.mxu0 0
        %901 = vmatprep.subr.bf16.mxu0 0
        %902 = vmatpush1.bf16.xpose.msra.mxu0 0
        %903 = vmatprep.subr.bf16.mxu0 0
        %904 = vmatpush1.bf16.xpose.msra.mxu0 %v887
        %905 = vmatprep.subr.bf16.mxu0 0
        %906 = vmatpush2.bf16.xpose.msra.mxu0 0
        %907 = vmatprep.subr.bf16.mxu0 0
        %908 = vmatpush2.bf16.xpose.msra.mxu0 0
        %909 = vmatprep.subr.bf16.mxu0 0
        %910 = vmatpush2.bf16.xpose.msra.mxu0 0
        %911 = vmatprep.subr.bf16.mxu0 0
        %912 = vmatpush2.bf16.xpose.msra.mxu0 0
        %913 = vmatprep.subr.bf16.mxu0 0
        %914 = vmatpush2.bf16.xpose.msra.mxu0 0
        %915 = vmatprep.subr.bf16.mxu0 0
        %916 = vmatpush2.bf16.xpose.msra.mxu0 0
        %917 = vmatprep.subr.bf16.mxu0 0
        %918 = vmatpush2.bf16.xpose.msra.mxu0 0
        %919 = vmatprep.subr.bf16.mxu0 0
        %920 = vmatpush2.bf16.xpose.msra.mxu0 0
        %921 = vmatprep.mubr.bf16.mxu0 0
        %922 = vmatmul.mubr.bf16.gmra.mxu0 %v884
        %v923 = vpop.f32.mrf.mxu0
        %v924 = vadd.f32 0.0, %v923
        %v925 = vpop.f32.mrf.mxu0
        %v926 = vpop.f32.mrf.mxu0
        %v927 = vpop.f32.mrf.mxu0
        %928 = vdwg.mxu0
        %v929 = vmul.f32 %v924, 0.35355338
        %v930 = vsel %vm540, %v929, -1e+30
        %v931 = vsel %vm545, %v930, -inf
        %932 = vmax.xlane.f32.xlu0 %v931
        %v933 = vpop.xlane.xlu0 %932
        %v934 = vsub.f32 %v930, %v933
        %v935 = vmul.f32 %v934, 1.442695
        %v936 = vpow.pop %v935
        %v937 = vsel %vm545, %v936, 0.0
        %938 = vadd.xlane.f32.xlu0 %v937
        %v939 = vpop.xlane.xlu0 %938
        %v940 = vrcp.pop %v939
        %v941 = vmul.f32 %v936, %v940
        %v942 = vpack.c.bf16 %v941, %v941
        %943 = vrot.lane.b32.xlu0 %v541, 40
        %v944 = vpop.permute.xlu0 %943
        %v946 = vsel %vm545, %v942, 0
        %v949 = vsel %vm611, %v944, 0
        %951 = vmatprep.subr.bf16.mxu0 0
        %952 = vmatpush1.bf16.msra.mxu0 0
        %953 = vmatprep.subr.bf16.mxu0 0
        %954 = vmatpush1.bf16.msra.mxu0 0
        %955 = vmatprep.subr.bf16.mxu0 0
        %956 = vmatpush1.bf16.msra.mxu0 0
        %957 = vmatprep.subr.bf16.mxu0 0
        %958 = vmatpush1.bf16.msra.mxu0 0
        %959 = vmatprep.subr.bf16.mxu0 0
        %960 = vmatpush1.bf16.msra.mxu0 0
        %961 = vmatprep.subr.bf16.mxu0 0
        %962 = vmatpush1.bf16.msra.mxu0 0
        %963 = vmatprep.subr.bf16.mxu0 0
        %964 = vmatpush1.bf16.msra.mxu0 0
        %965 = vmatprep.subr.bf16.mxu0 0
        %966 = vmatpush1.bf16.msra.mxu0 %v949
        %967 = vmatprep.subr.bf16.mxu0 0
        %968 = vmatpush2.bf16.msra.mxu0 0
        %969 = vmatprep.subr.bf16.mxu0 0
        %970 = vmatpush2.bf16.msra.mxu0 0
        %971 = vmatprep.subr.bf16.mxu0 0
        %972 = vmatpush2.bf16.msra.mxu0 0
        %973 = vmatprep.subr.bf16.mxu0 0
        %974 = vmatpush2.bf16.msra.mxu0 0
        %975 = vmatprep.subr.bf16.mxu0 0
        %976 = vmatpush2.bf16.msra.mxu0 0
        %977 = vmatprep.subr.bf16.mxu0 0
        %978 = vmatpush2.bf16.msra.mxu0 0
        %979 = vmatprep.subr.bf16.mxu0 0
        %980 = vmatpush2.bf16.msra.mxu0 0
        %981 = vmatprep.subr.bf16.mxu0 0
        %982 = vmatpush2.bf16.msra.mxu0 0
        %983 = vmatprep.mubr.bf16.mxu0 0
        %984 = vmatmul.mubr.bf16.gmra.mxu0 %v946
        %v985 = vpop.f32.mrf.mxu0
        %v986 = vadd.f32 0.0, %v985
        %v987 = vpop.f32.mrf.mxu0
        %v988 = vpop.f32.mrf.mxu0
        %v989 = vpop.f32.mrf.mxu0
        %990 = vdwg.mxu0
        %992 = vrot.lane.b32.xlu0 %v762, 8
        %v993 = vpop.permute.xlu0 %992
        %996 = vrot.lane.b32.xlu0 %v874, 16
        %v997 = vpop.permute.xlu0 %996
        %1000 = vrot.lane.b32.xlu0 %v986, 24
        %v1001 = vpop.permute.xlu0 %1000
        %v1003 = vsel %vm545, %v650, %v993
        %vm1004 = vcmask 130048
        %v1005 = vsel %vm1004, %v1003, %v997
        %vm1006 = vcmask 195584
        %v1007 = vsel %vm1006, %v1005, %v1001
        %v1008 = vpack.c.bf16 %v1007, %v1007
        %v1009 = vld [vmem:[%s5] sm:$0xf]
        %v1010 = vld [vmem:[%s5 + $0x4] sm:$0xf]
        %v1011 = vld [vmem:[%s5 + $0x8] sm:$0xf]
        %v1012 = vld [vmem:[%s5 + $0xc] sm:$0xf]
        %v1017 = vunpack.c.l.b16 %v1009
        %v1018 = vunpack.c.l.b16 %v1010
        %v1019 = vunpack.c.l.b16 %v1011
        %v1020 = vunpack.c.l.b16 %v1012
        %v1021 = vpack.c.b16 %v1018, %v1017
        %v1022 = vpack.c.b16 %v1020, %v1019
        %v1026 = vsel %vm440, %v1008, 0
        %1028 = vmatprep.subr.bf16.mxu0 0
        %1029 = vmatpush1.bf16.msra.mxu0 0
        %1030 = vmatprep.subr.bf16.mxu0 0
        %1031 = vmatpush1.bf16.msra.mxu0 0
        %1032 = vmatprep.subr.bf16.mxu0 0
        %1033 = vmatpush1.bf16.msra.mxu0 0
        %1034 = vmatprep.subr.bf16.mxu0 0
        %1035 = vmatpush1.bf16.msra.mxu0 0
        %1036 = vmatprep.subr.bf16.mxu0 0
        %1037 = vmatpush1.bf16.msra.mxu0 0
        %1038 = vmatprep.subr.bf16.mxu0 0
        %1039 = vmatpush1.bf16.msra.mxu0 0
        %1040 = vmatprep.subr.bf16.mxu0 0
        %1041 = vmatpush1.bf16.msra.mxu0 %v1022
        %1042 = vmatprep.subr.bf16.mxu0 0
        %1043 = vmatpush1.bf16.msra.mxu0 %v1021
        %1044 = vmatprep.subr.bf16.mxu0 0
        %1045 = vmatpush2.bf16.msra.mxu0 0
        %1046 = vmatprep.subr.bf16.mxu0 0
        %1047 = vmatpush2.bf16.msra.mxu0 0
        %1048 = vmatprep.subr.bf16.mxu0 0
        %1049 = vmatpush2.bf16.msra.mxu0 0
        %1050 = vmatprep.subr.bf16.mxu0 0
        %1051 = vmatpush2.bf16.msra.mxu0 0
        %1052 = vmatprep.subr.bf16.mxu0 0
        %1053 = vmatpush2.bf16.msra.mxu0 0
        %1054 = vmatprep.subr.bf16.mxu0 0
        %1055 = vmatpush2.bf16.msra.mxu0 0
        %1056 = vmatprep.subr.bf16.mxu0 0
        %1057 = vmatpush2.bf16.msra.mxu0 0
        %1058 = vmatprep.subr.bf16.mxu0 0
        %1059 = vmatpush2.bf16.msra.mxu0 0
        %1060 = vmatprep.mubr.bf16.mxu0 0
        %1061 = vmatmul.mubr.bf16.gmra.mxu0 %v1026
        %v1062 = vpop.f32.mrf.mxu0
        %v1063 = vadd.f32 0.0, %v1062
        %v1064 = vpop.f32.mrf.mxu0
        %v1065 = vpop.f32.mrf.mxu0
        %v1066 = vpop.f32.mrf.mxu0
        %1067 = vdwg.mxu0
        %v1068 = vadd.f32 %v437, %v1063
        %v1069 = vld [vmem:[%s6] sm:$0x1]
        %v1071 = vlaneseq
        %v1072 = vshrl.u32 %v1071, 7
        %v1073 = vsub.s32 0, %v1072
        %v1074 = vrot.slane %v1069, %v1073
        %v1076 = vadd.f32 %v1068, %v1074
        %v1077 = vld [vmem:[%s7] sm:$0x1]
        %v1078 = vld [vmem:[%s8] sm:$0x1]
        %v1079 = vsel %vm440, %v1076, 0.0
        %1080 = vadd.xlane.f32.xlu0 %v1079
        %v1081 = vpop.xlane.xlu0 %1080
        %v1082 = vmul.f32 %v1081, %v444
        %v1083 = vsub.f32 %v1076, %v1082
        %v1084 = vmul.f32 %v1083, %v1083
        %v1085 = vsel %vm440, %v1084, 0.0
        %1086 = vadd.xlane.f32.xlu0 %v1085
        %v1087 = vpop.xlane.xlu0 %1086
        %v1088 = vmul.f32 %v1087, %v444
        %v1089 = vadd.f32 %v1088, 1e-05
        %v1090 = vrsqrt.pop %v1089
        %v1091 = vmul.f32 %v1083, %v1090
        %v1093 = vlaneseq
        %v1094 = vshrl.u32 %v1093, 7
        %v1095 = vsub.s32 0, %v1094
        %v1096 = vrot.slane %v1077, %v1095
        %v1098 = vmul.f32 %v1091, %v1096
        %v1100 = vlaneseq
        %v1101 = vshrl.u32 %v1100, 7
        %v1102 = vsub.s32 0, %v1101
        %v1103 = vrot.slane %v1078, %v1102
        %v1105 = vadd.f32 %v1098, %v1103
        %v1106 = vpack.c.bf16 %v1105, %v1105
        %v1107 = vld [vmem:[%s9] sm:$0xf]
        %v1108 = vld [vmem:[%s9 + $0x4] sm:$0xf]
        %v1109 = vld [vmem:[%s9 + $0x8] sm:$0xf]
        %v1110 = vld [vmem:[%s9 + $0xc] sm:$0xf]
        %v1111 = vld [vmem:[%s10] sm:$0x1]
        %v1113 = vlaneseq
        %v1114 = vshrl.u32 %v1113, 7
        %v1115 = vsub.s32 0, %v1114
        %v1116 = vrot.slane %v1111, %v1115
        %v1122 = vunpack.c.l.b16 %v1107
        %v1123 = vunpack.c.l.b16 %v1108
        %v1124 = vunpack.c.l.b16 %v1109
        %v1125 = vunpack.c.l.b16 %v1110
        %v1126 = vpack.c.b16 %v1123, %v1122
        %v1127 = vpack.c.b16 %v1125, %v1124
        %v1131 = vsel %vm440, %v1106, 0
        %1133 = vmatprep.subr.bf16.mxu0 0
        %1134 = vmatpush1.bf16.msra.mxu0 0
        %1135 = vmatprep.subr.bf16.mxu0 0
        %1136 = vmatpush1.bf16.msra.mxu0 0
        %1137 = vmatprep.subr.bf16.mxu0 0
        %1138 = vmatpush1.bf16.msra.mxu0 0
        %1139 = vmatprep.subr.bf16.mxu0 0
        %1140 = vmatpush1.bf16.msra.mxu0 0
        %1141 = vmatprep.subr.bf16.mxu0 0
        %1142 = vmatpush1.bf16.msra.mxu0 0
        %1143 = vmatprep.subr.bf16.mxu0 0
        %1144 = vmatpush1.bf16.msra.mxu0 0
        %1145 = vmatprep.subr.bf16.mxu0 0
        %1146 = vmatpush1.bf16.msra.mxu0 %v1127
        %1147 = vmatprep.subr.bf16.mxu0 0
        %1148 = vmatpush1.bf16.msra.mxu0 %v1126
        %1149 = vmatprep.subr.bf16.mxu0 0
        %1150 = vmatpush2.bf16.msra.mxu0 0
        %1151 = vmatprep.subr.bf16.mxu0 0
        %1152 = vmatpush2.bf16.msra.mxu0 0
        %1153 = vmatprep.subr.bf16.mxu0 0
        %1154 = vmatpush2.bf16.msra.mxu0 0
        %1155 = vmatprep.subr.bf16.mxu0 0
        %1156 = vmatpush2.bf16.msra.mxu0 0
        %1157 = vmatprep.subr.bf16.mxu0 0
        %1158 = vmatpush2.bf16.msra.mxu0 0
        %1159 = vmatprep.subr.bf16.mxu0 0
        %1160 = vmatpush2.bf16.msra.mxu0 0
        %1161 = vmatprep.subr.bf16.mxu0 0
        %1162 = vmatpush2.bf16.msra.mxu0 0
        %1163 = vmatprep.subr.bf16.mxu0 0
        %1164 = vmatpush2.bf16.msra.mxu0 0
        %1165 = vmatprep.mubr.bf16.mxu0 0
        %1166 = vmatmul.mubr.bf16.gmra.mxu0 %v1131
        %v1167 = vpop.f32.mrf.mxu0
        %v1168 = vadd.f32 %v1116, %v1167
        %v1169 = vpop.f32.mrf.mxu0
        %v1170 = vpop.f32.mrf.mxu0
        %v1171 = vpop.f32.mrf.mxu0
        %1172 = vdwg.mxu0
        %v1173 = vmul.f32 %v1168, 0.5
        %v1174 = vmul.f32 %v1168, 0.044715
        %v1175 = vmul.f32 %v1174, %v1168
        %v1176 = vmul.f32 %v1175, %v1168
        %v1177 = vadd.f32 %v1168, %v1176
        %v1178 = vmul.f32 %v1177, 0.7978846
        %v1179 = vtanh.pop %v1178
        %v1180 = vadd.f32 %v1179, 1.0
        %v1181 = vmul.f32 %v1173, %v1180
        %v1182 = vpack.c.bf16 %v1181, %v1181
        %v1183 = vld [vmem:[%s11] sm:$0xf]
        %v1184 = vld [vmem:[%s11 + $0x4] sm:$0xf]
        %v1185 = vld [vmem:[%s11 + $0x8] sm:$0xf]
        %v1186 = vld [vmem:[%s11 + $0xc] sm:$0xf]
        %v1187 = vld [vmem:[%s11 + $0x10] sm:$0xf]
        %v1188 = vld [vmem:[%s11 + $0x14] sm:$0xf]
        %v1189 = vld [vmem:[%s11 + $0x18] sm:$0xf]
        %v1190 = vld [vmem:[%s11 + $0x1c] sm:$0xf]
        %v1191 = vld [vmem:[%s11 + $0x20] sm:$0xf]
        %v1192 = vld [vmem:[%s11 + $0x24] sm:$0xf]
        %v1193 = vld [vmem:[%s11 + $0x28] sm:$0xf]
        %v1194 = vld [vmem:[%s11 + $0x2c] sm:$0xf]
        %v1195 = vld [vmem:[%s11 + $0x30] sm:$0xf]
        %v1196 = vld [vmem:[%s11 + $0x34] sm:$0xf]
        %v1197 = vld [vmem:[%s11 + $0x38] sm:$0xf]
        %v1198 = vld [vmem:[%s11 + $0x3c] sm:$0xf]
        %v1199 = vld [vmem:[%s12] sm:$0x1]
        %v1201 = vlaneseq
        %v1202 = vshrl.u32 %v1201, 7
        %v1203 = vsub.s32 0, %v1202
        %v1204 = vrot.slane %v1199, %v1203
        %v1222 = vunpack.c.l.b16 %v1183
        %v1223 = vunpack.c.l.b16 %v1184
        %v1224 = vunpack.c.l.b16 %v1185
        %v1225 = vunpack.c.l.b16 %v1186
        %v1226 = vunpack.c.l.b16 %v1187
        %v1227 = vunpack.c.l.b16 %v1188
        %v1228 = vunpack.c.l.b16 %v1189
        %v1229 = vunpack.c.l.b16 %v1190
        %v1230 = vunpack.c.l.b16 %v1191
        %v1231 = vunpack.c.l.b16 %v1192
        %v1232 = vunpack.c.l.b16 %v1193
        %v1233 = vunpack.c.l.b16 %v1194
        %v1234 = vunpack.c.l.b16 %v1195
        %v1235 = vunpack.c.l.b16 %v1196
        %v1236 = vunpack.c.l.b16 %v1197
        %v1237 = vunpack.c.l.b16 %v1198
        %v1238 = vpack.c.b16 %v1223, %v1222
        %v1239 = vpack.c.b16 %v1225, %v1224
        %v1240 = vpack.c.b16 %v1227, %v1226
        %v1241 = vpack.c.b16 %v1229, %v1228
        %v1242 = vpack.c.b16 %v1231, %v1230
        %v1243 = vpack.c.b16 %v1233, %v1232
        %v1244 = vpack.c.b16 %v1235, %v1234
        %v1245 = vpack.c.b16 %v1237, %v1236
        %1254 = vmatprep.subr.bf16.mxu0 0
        %1255 = vmatpush1.bf16.msra.mxu0 %v1245
        %1256 = vmatprep.subr.bf16.mxu0 0
        %1257 = vmatpush1.bf16.msra.mxu0 %v1244
        %1258 = vmatprep.subr.bf16.mxu0 0
        %1259 = vmatpush1.bf16.msra.mxu0 %v1243
        %1260 = vmatprep.subr.bf16.mxu0 0
        %1261 = vmatpush1.bf16.msra.mxu0 %v1242
        %1262 = vmatprep.subr.bf16.mxu0 0
        %1263 = vmatpush1.bf16.msra.mxu0 %v1241
        %1264 = vmatprep.subr.bf16.mxu0 0
        %1265 = vmatpush1.bf16.msra.mxu0 %v1240
        %1266 = vmatprep.subr.bf16.mxu0 0
        %1267 = vmatpush1.bf16.msra.mxu0 %v1239
        %1268 = vmatprep.subr.bf16.mxu0 0
        %1269 = vmatpush1.bf16.msra.mxu0 %v1238
        %1270 = vmatprep.subr.bf16.mxu0 0
        %1271 = vmatpush2.bf16.msra.mxu0 0
        %1272 = vmatprep.subr.bf16.mxu0 0
        %1273 = vmatpush2.bf16.msra.mxu0 0
        %1274 = vmatprep.subr.bf16.mxu0 0
        %1275 = vmatpush2.bf16.msra.mxu0 0
        %1276 = vmatprep.subr.bf16.mxu0 0
        %1277 = vmatpush2.bf16.msra.mxu0 0
        %1278 = vmatprep.subr.bf16.mxu0 0
        %1279 = vmatpush2.bf16.msra.mxu0 0
        %1280 = vmatprep.subr.bf16.mxu0 0
        %1281 = vmatpush2.bf16.msra.mxu0 0
        %1282 = vmatprep.subr.bf16.mxu0 0
        %1283 = vmatpush2.bf16.msra.mxu0 0
        %1284 = vmatprep.subr.bf16.mxu0 0
        %1285 = vmatpush2.bf16.msra.mxu0 0
        %1286 = vmatprep.mubr.bf16.mxu0 0
        %1287 = vmatmul.mubr.bf16.gmra.mxu0 %v1182
        %v1288 = vpop.f32.mrf.mxu0
        %v1289 = vadd.f32 %v1204, %v1288
        %v1290 = vpop.f32.mrf.mxu0
        %v1291 = vpop.f32.mrf.mxu0
        %v1292 = vpop.f32.mrf.mxu0
        %1293 = vdwg.mxu0
        %v1294 = vadd.f32 %v1076, %v1289
        %1295 = vst.msk [vmem:[%s431] sm:$0xff] %vm440, %v1294
        %s1296 = sand.u32 %s313, 1
        %s1297 = scalar_lea.sflag [#allocation3], %s1296
        %s1298 = sand.u32 %s313, 1
        %s1299 = smul.addr %s1298, 8
        %s1300 = scalar_lea.vmem [#allocation2], %s1299
        // Predicated region
        $region73: #{tpu_custom_call.1} parent=71 // pred_check
          %p1301 = pneg %p323
        $region74: #{tpu_custom_call.1} parent=71 // pred_check_branch
          %1303 = sbr.rel (%p1301) target = $region76
        $region75: #{tpu_custom_call.1} parent=71 // pred_region
          %s1305 = ssub.s32 128, 128
          %1306 = vsyncadd %s1297, %s1305
          %s1307 = smul.addr %s27, 128
          %s1308 = scalar_lea.hbm %s13, %s1307
          %s1310 = sshll.u32 %s1300, 4
          %s1311 = int_to_ptr.vmem [resolvable:$true] %s1310
          %1313 = dma.vmem_to_hbm [thread:$0]  %s1311, 128, %s1308, %s1297
        $region76: #{tpu_custom_call.1} parent=71 // pred_fallthru
          _
      $region72: #{tpu_custom_call.1} parent=5 // pred_fallthru
        _
      %p1314 = scmp.le.s32.totalorder 2, %s22
      // Predicated region
      $region77: #{tpu_custom_call.1} parent=5 // pred_check
        %p1315 = pneg %p1314
      $region78: #{tpu_custom_call.1} parent=5 // pred_check_branch
        %1317 = sbr.rel (%p1315) target = $region80
      $region79: #{tpu_custom_call.1} parent=5 // pred_region
        %s1318 = ssub.s32 %s22, 2
        // Predicated region
        $region81: #{tpu_custom_call.1} parent=79 // pred_check
          %p1319 = pneg %p329
        $region82: #{tpu_custom_call.1} parent=79 // pred_check_branch
          %1321 = sbr.rel (%p1319) target = $region84
        $region83: #{tpu_custom_call.1} parent=79 // pred_region
          %s1322 = sand.u32 %s314, 1
          %s1323 = scalar_lea.sflag [#allocation3], %s1322
          %s1324 = sand.u32 %s314, 1
          %s1325 = smul.addr %s1324, 8
          %s1326 = scalar_lea.vmem [#allocation2], %s1325
          %1327 = dma.done %s1323, 128
        $region84: #{tpu_custom_call.1} parent=79 // pred_fallthru
          _
      $region80: #{tpu_custom_call.1} parent=5 // pred_fallthru
        _
    $region6: #{tpu_custom_call.1} parent=1 // loop_footer
      %s26 = sadd.s32 1, %s22
    $region7: #{tpu_custom_call.1} parent=1 // loop_footer_branch
      %21 = sbr.rel target = $region3
    $region8: #{tpu_custom_call.1} parent=1 // loop_exit
      _
    %1328 = vsyncpa [#allocation3], 1
    %s1329 = scalar_lea.sflag [#allocation3], 1
    %1330 = vsyncpa %s1329, 1

// kernel: tpu_custom_call.1
$region0: #{tpu_custom_call.1}
  #allocation0 [shape = 'u32[]', space=smem, size = 0x4, offset = 0x4, fixed_abs, tag = 'smem constant byte address 0x4 - core index']
  #allocation1 [shape = 'u32[144,128]{1,0:T(1,128)}', space=vmem, size = 0x12000, scoped, tag = 'internal scratch']
  %s0 = inlined_call_operand.vmem [shape: f32[2,8,32], index: 0, kind: input, shape index: {}]
  %s1 = inlined_call_operand.vmem [shape: f32[1,32], index: 1, kind: input, shape index: {}]
  %s2 = inlined_call_operand.vmem [shape: f32[1,32], index: 2, kind: input, shape index: {}]
  %s3 = inlined_call_operand.vmem [shape: bf16[32,96], index: 3, kind: input, shape index: {}]
  %s4 = inlined_call_operand.vmem [shape: f32[1,96], index: 4, kind: input, shape index: {}]
  %s5 = inlined_call_operand.vmem [shape: bf16[32,32], index: 5, kind: input, shape index: {}]
  %s6 = inlined_call_operand.vmem [shape: f32[1,32], index: 6, kind: input, shape index: {}]
  %s7 = inlined_call_operand.vmem [shape: f32[1,32], index: 7, kind: input, shape index: {}]
  %s8 = inlined_call_operand.vmem [shape: f32[1,32], index: 8, kind: input, shape index: {}]
  %s9 = inlined_call_operand.vmem [shape: bf16[32,128], index: 9, kind: input, shape index: {}]
  %s10 = inlined_call_operand.vmem [shape: f32[1,128], index: 10, kind: input, shape index: {}]
  %s11 = inlined_call_operand.vmem [shape: bf16[128,32], index: 11, kind: input, shape index: {}]
  %s12 = inlined_call_operand.vmem [shape: f32[1,32], index: 12, kind: input, shape index: {}]
  %s13 = inlined_call_operand.hbm [shape: f32[2,8,32], index: 13, kind: output, shape index: {}]
  %s14 = sld [smem:[#allocation0]]
  $region85: #{tpu_custom_call.1} parent=0
    _
  %s16 = ssub.s32 1, %s14
  %s17 = scalar_select 0, %s16, %s14
  $region1: #{tpu_custom_call.1} parent=0
    #allocation2 [shape = 'u8[8192]{0}', space=vmem, size = 0x2000, scoped, tag = 'output window, operand 0']
    #allocation3 [shape = 's32[2]{0}', space=sflag, size = 0x8, scoped, tag = 'scoped memory for tpu_custom_call.1']
    %18 = vsyncpa [#allocation3], 0
    %s19 = scalar_lea.sflag [#allocation3], 1
    %20 = vsyncpa %s19, 0
    loop: start=0, step=1, limit=4
    $region2: #{tpu_custom_call.1} parent=1 // loop_pre_header
      _
    $region3: #{tpu_custom_call.1} parent=1 // loop_header
      %s22 = sphi 0, %s26
      %p23 = scmp.ge.s32.totalorder %s22, 4
      %s32 = sphi 0, %s34
      %s35 = sphi 0, %s32
      %s36 = sphi 0, %s35
      %s52 = sphi 0, %s36
      %s56 = sphi 0, %s56
      %s58 = sphi 0, %s56
      %s59 = sphi 0, %s58
      %s73 = sphi 0, %s59
      %s77 = sphi 0, %s77
      %s79 = sphi 0, %s77
      %s80 = sphi 0, %s79
      %s94 = sphi 0, %s80
      %s98 = sphi 0, %s98
      %s100 = sphi 0, %s98
      %s101 = sphi 0, %s100
      %s115 = sphi 0, %s101
      %s119 = sphi 0, %s119
      %s121 = sphi 0, %s119
      %s122 = sphi 0, %s121
      %s136 = sphi 0, %s122
      %s140 = sphi 0, %s140
      %s142 = sphi 0, %s140
      %s143 = sphi 0, %s142
      %s157 = sphi 0, %s143
      %s161 = sphi 0, %s161
      %s163 = sphi 0, %s161
      %s164 = sphi 0, %s163
      %s178 = sphi 0, %s164
      %s182 = sphi 0, %s182
      %s184 = sphi 0, %s182
      %s185 = sphi 0, %s184
      %s199 = sphi 0, %s185
      %s203 = sphi 0, %s203
      %s205 = sphi 0, %s203
      %s206 = sphi 0, %s205
      %s220 = sphi 0, %s206
      %s224 = sphi 0, %s224
      %s226 = sphi 0, %s224
      %s227 = sphi 0, %s226
      %s241 = sphi 0, %s227
      %s245 = sphi 0, %s245
      %s247 = sphi 0, %s245
      %s248 = sphi 0, %s247
      %s262 = sphi 0, %s248
      %s266 = sphi 0, %s266
      %s268 = sphi 0, %s266
      %s269 = sphi 0, %s268
      %s283 = sphi 0, %s269
      %s287 = sphi 0, %s287
      %s289 = sphi 0, %s287
      %s290 = sphi 0, %s289
      %s304 = sphi 0, %s290
      %s310 = sphi 0, %s312
      %s313 = sphi 0, %s310
      %s314 = sphi 0, %s313
      %s330 = sphi 0, %s314
    $region4: #{tpu_custom_call.1} parent=1 // loop_header_branch
      %25 = sbr.rel (%p23) target = $region8
    $region5: #{tpu_custom_call.1} parent=1 // loop_body
      %s27 = ssub.s32 %s22, 1
      %s28 = ssub.s32 %s22, 2
      %s29 = sadd.s32 %s22, 1
      %s30 = ssub.s32 %s22, %s29
      %p31 = scmp.eq.s32.totalorder %s30, 0
      %s33 = sadd.s32 %s32, 1
      %s34 = scalar_select %p31, %s32, %s33
      %p37 = pneg %p31
      %p38 = scmp.eq.s32.totalorder %s22, 1
      %p39 = por %p37, %p38
      %p40 = scmp.ne.s32.totalorder %s32, %s35
      %p41 = scmp.eq.s32.totalorder %s22, 0
      %p42 = por %p40, %p41
      %p43 = scmp.ne.s32.totalorder %s32, %s35
      %p44 = scmp.eq.s32.totalorder %s27, 1
      %p45 = por %p43, %p44
      %p46 = scmp.ne.s32.totalorder %s35, %s36
      %p47 = scmp.eq.s32.totalorder %s27, 0
      %p48 = por %p46, %p47
      %p49 = scmp.ne.s32.totalorder %s35, %s36
      %p50 = scmp.eq.s32.totalorder %s28, 1
      %p51 = por %p49, %p50
      %p53 = scmp.ne.s32.totalorder %s36, %s52
      %p54 = scmp.eq.s32.totalorder %s28, 0
      %p55 = por %p53, %p54
      %s57 = sadd.s32 %s56, 1
      %p60 = scmp.eq.s32.totalorder %s22, 1
      %p61 = scmp.ne.s32.totalorder %s56, %s58
      %p62 = scmp.eq.s32.totalorder %s22, 0
      %p63 = por %p61, %p62
      %p64 = scmp.ne.s32.totalorder %s56, %s58
      %p65 = scmp.eq.s32.totalorder %s27, 1
      %p66 = por %p64, %p65
      %p67 = scmp.ne.s32.totalorder %s58, %s59
      %p68 = scmp.eq.s32.totalorder %s27, 0
      %p69 = por %p67, %p68
      %p70 = scmp.ne.s32.totalorder %s58, %s59
      %p71 = scmp.eq.s32.totalorder %s28, 1
      %p72 = por %p70, %p71
      %p74 = scmp.ne.s32.totalorder %s59, %s73
      %p75 = scmp.eq.s32.totalorder %s28, 0
      %p76 = por %p74, %p75
      %s78 = sadd.s32 %s77, 1
      %p81 = scmp.eq.s32.totalorder %s22, 1
      %p82 = scmp.ne.s32.totalorder %s77, %s79
      %p83 = scmp.eq.s32.totalorder %s22, 0
      %p84 = por %p82, %p83
      %p85 = scmp.ne.s32.totalorder %s77, %s79
      %p86 = scmp.eq.s32.totalorder %s27, 1
      %p87 = por %p85, %p86
      %p88 = scmp.ne.s32.totalorder %s79, %s80
      %p89 = scmp.eq.s32.totalorder %s27, 0
      %p90 = por %p88, %p89
      %p91 = scmp.ne.s32.totalorder %s79, %s80
      %p92 = scmp.eq.s32.totalorder %s28, 1
      %p93 = por %p91, %p92
      %p95 = scmp.ne.s32.totalorder %s80, %s94
      %p96 = scmp.eq.s32.totalorder %s28, 0
      %p97 = por %p95, %p96
      %s99 = sadd.s32 %s98, 1
      %p102 = scmp.eq.s32.totalorder %s22, 1
      %p103 = scmp.ne.s32.totalorder %s98, %s100
      %p104 = scmp.eq.s32.totalorder %s22, 0
      %p105 = por %p103, %p104
      %p106 = scmp.ne.s32.totalorder %s98, %s100
      %p107 = scmp.eq.s32.totalorder %s27, 1
      %p108 = por %p106, %p107
      %p109 = scmp.ne.s32.totalorder %s100, %s101
      %p110 = scmp.eq.s32.totalorder %s27, 0
      %p111 = por %p109, %p110
      %p112 = scmp.ne.s32.totalorder %s100, %s101
      %p113 = scmp.eq.s32.totalorder %s28, 1
      %p114 = por %p112, %p113
      %p116 = scmp.ne.s32.totalorder %s101, %s115
      %p117 = scmp.eq.s32.totalorder %s28, 0
      %p118 = por %p116, %p117
      %s120 = sadd.s32 %s119, 1
      %p123 = scmp.eq.s32.totalorder %s22, 1
      %p124 = scmp.ne.s32.totalorder %s119, %s121
      %p125 = scmp.eq.s32.totalorder %s22, 0
      %p126 = por %p124, %p125
      %p127 = scmp.ne.s32.totalorder %s119, %s121
      %p128 = scmp.eq.s32.totalorder %s27, 1
      %p129 = por %p127, %p128
      %p130 = scmp.ne.s32.totalorder %s121, %s122
      %p131 = scmp.eq.s32.totalorder %s27, 0
      %p132 = por %p130, %p131
      %p133 = scmp.ne.s32.totalorder %s121, %s122
      %p134 = scmp.eq.s32.totalorder %s28, 1
      %p135 = por %p133, %p134
      %p137 = scmp.ne.s32.totalorder %s122, %s136
      %p138 = scmp.eq.s32.totalorder %s28, 0
      %p139 = por %p137, %p138
      %s141 = sadd.s32 %s140, 1
      %p144 = scmp.eq.s32.totalorder %s22, 1
      %p145 = scmp.ne.s32.totalorder %s140, %s142
      %p146 = scmp.eq.s32.totalorder %s22, 0
      %p147 = por %p145, %p146
      %p148 = scmp.ne.s32.totalorder %s140, %s142
      %p149 = scmp.eq.s32.totalorder %s27, 1
      %p150 = por %p148, %p149
      %p151 = scmp.ne.s32.totalorder %s142, %s143
      %p152 = scmp.eq.s32.totalorder %s27, 0
      %p153 = por %p151, %p152
      %p154 = scmp.ne.s32.totalorder %s142, %s143
      %p155 = scmp.eq.s32.totalorder %s28, 1
      %p156 = por %p154, %p155
      %p158 = scmp.ne.s32.totalorder %s143, %s157
      %p159 = scmp.eq.s32.totalorder %s28, 0
      %p160 = por %p158, %p159
      %s162 = sadd.s32 %s161, 1
      %p165 = scmp.eq.s32.totalorder %s22, 1
      %p166 = scmp.ne.s32.totalorder %s161, %s163
      %p167 = scmp.eq.s32.totalorder %s22, 0
      %p168 = por %p166, %p167
      %p169 = scmp.ne.s32.totalorder %s161, %s163
      %p170 = scmp.eq.s32.totalorder %s27, 1
      %p171 = por %p169, %p170
      %p172 = scmp.ne.s32.totalorder %s163, %s164
      %p173 = scmp.eq.s32.totalorder %s27, 0
      %p174 = por %p172, %p173
      %p175 = scmp.ne.s32.totalorder %s163, %s164
      %p176 = scmp.eq.s32.totalorder %s28, 1
      %p177 = por %p175, %p176
      %p179 = scmp.ne.s32.totalorder %s164, %s178
      %p180 = scmp.eq.s32.totalorder %s28, 0
      %p181 = por %p179, %p180
      %s183 = sadd.s32 %s182, 1
      %p186 = scmp.eq.s32.totalorder %s22, 1
      %p187 = scmp.ne.s32.totalorder %s182, %s184
      %p188 = scmp.eq.s32.totalorder %s22, 0
      %p189 = por %p187, %p188
      %p190 = scmp.ne.s32.totalorder %s182, %s184
      %p191 = scmp.eq.s32.totalorder %s27, 1
      %p192 = por %p190, %p191
      %p193 = scmp.ne.s32.totalorder %s184, %s185
      %p194 = scmp.eq.s32.totalorder %s27, 0
      %p195 = por %p193, %p194
      %p196 = scmp.ne.s32.totalorder %s184, %s185
      %p197 = scmp.eq.s32.totalorder %s28, 1
      %p198 = por %p196, %p197
      %p200 = scmp.ne.s32.totalorder %s185, %s199
      %p201 = scmp.eq.s32.totalorder %s28, 0
      %p202 = por %p200, %p201
      %s204 = sadd.s32 %s203, 1
      %p207 = scmp.eq.s32.totalorder %s22, 1
      %p208 = scmp.ne.s32.totalorder %s203, %s205
      %p209 = scmp.eq.s32.totalorder %s22, 0
      %p210 = por %p208, %p209
      %p211 = scmp.ne.s32.totalorder %s203, %s205
      %p212 = scmp.eq.s32.totalorder %s27, 1
      %p213 = por %p211, %p212
      %p214 = scmp.ne.s32.totalorder %s205, %s206
      %p215 = scmp.eq.s32.totalorder %s27, 0
      %p216 = por %p214, %p215
      %p217 = scmp.ne.s32.totalorder %s205, %s206
      %p218 = scmp.eq.s32.totalorder %s28, 1
      %p219 = por %p217, %p218
      %p221 = scmp.ne.s32.totalorder %s206, %s220
      %p222 = scmp.eq.s32.totalorder %s28, 0
      %p223 = por %p221, %p222
      %s225 = sadd.s32 %s224, 1
      %p228 = scmp.eq.s32.totalorder %s22, 1
      %p229 = scmp.ne.s32.totalorder %s224, %s226
      %p230 = scmp.eq.s32.totalorder %s22, 0
      %p231 = por %p229, %p230
      %p232 = scmp.ne.s32.totalorder %s224, %s226
      %p233 = scmp.eq.s32.totalorder %s27, 1
      %p234 = por %p232, %p233
      %p235 = scmp.ne.s32.totalorder %s226, %s227
      %p236 = scmp.eq.s32.totalorder %s27, 0
      %p237 = por %p235, %p236
      %p238 = scmp.ne.s32.totalorder %s226, %s227
      %p239 = scmp.eq.s32.totalorder %s28, 1
      %p240 = por %p238, %p239
      %p242 = scmp.ne.s32.totalorder %s227, %s241
      %p243 = scmp.eq.s32.totalorder %s28, 0
      %p244 = por %p242, %p243
      %s246 = sadd.s32 %s245, 1
      %p249 = scmp.eq.s32.totalorder %s22, 1
      %p250 = scmp.ne.s32.totalorder %s245, %s247
      %p251 = scmp.eq.s32.totalorder %s22, 0
      %p252 = por %p250, %p251
      %p253 = scmp.ne.s32.totalorder %s245, %s247
      %p254 = scmp.eq.s32.totalorder %s27, 1
      %p255 = por %p253, %p254
      %p256 = scmp.ne.s32.totalorder %s247, %s248
      %p257 = scmp.eq.s32.totalorder %s27, 0
      %p258 = por %p256, %p257
      %p259 = scmp.ne.s32.totalorder %s247, %s248
      %p260 = scmp.eq.s32.totalorder %s28, 1
      %p261 = por %p259, %p260
      %p263 = scmp.ne.s32.totalorder %s248, %s262
      %p264 = scmp.eq.s32.totalorder %s28, 0
      %p265 = por %p263, %p264
      %s267 = sadd.s32 %s266, 1
      %p270 = scmp.eq.s32.totalorder %s22, 1
      %p271 = scmp.ne.s32.totalorder %s266, %s268
      %p272 = scmp.eq.s32.totalorder %s22, 0
      %p273 = por %p271, %p272
      %p274 = scmp.ne.s32.totalorder %s266, %s268
      %p275 = scmp.eq.s32.totalorder %s27, 1
      %p276 = por %p274, %p275
      %p277 = scmp.ne.s32.totalorder %s268, %s269
      %p278 = scmp.eq.s32.totalorder %s27, 0
      %p279 = por %p277, %p278
      %p280 = scmp.ne.s32.totalorder %s268, %s269
      %p281 = scmp.eq.s32.totalorder %s28, 1
      %p282 = por %p280, %p281
      %p284 = scmp.ne.s32.totalorder %s269, %s283
      %p285 = scmp.eq.s32.totalorder %s28, 0
      %p286 = por %p284, %p285
      %s288 = sadd.s32 %s287, 1
      %p291 = scmp.eq.s32.totalorder %s22, 1
      %p292 = scmp.ne.s32.totalorder %s287, %s289
      %p293 = scmp.eq.s32.totalorder %s22, 0
      %p294 = por %p292, %p293
      %p295 = scmp.ne.s32.totalorder %s287, %s289
      %p296 = scmp.eq.s32.totalorder %s27, 1
      %p297 = por %p295, %p296
      %p298 = scmp.ne.s32.totalorder %s289, %s290
      %p299 = scmp.eq.s32.totalorder %s27, 0
      %p300 = por %p298, %p299
      %p301 = scmp.ne.s32.totalorder %s289, %s290
      %p302 = scmp.eq.s32.totalorder %s28, 1
      %p303 = por %p301, %p302
      %p305 = scmp.ne.s32.totalorder %s290, %s304
      %p306 = scmp.eq.s32.totalorder %s28, 0
      %p307 = por %p305, %p306
      %s308 = ssub.s32 %s22, %s29
      %p309 = scmp.eq.s32.totalorder %s308, 0
      %s311 = sadd.s32 %s310, 1
      %s312 = scalar_select %p309, %s310, %s311
      %p315 = pneg %p309
      %p316 = scmp.eq.s32.totalorder %s22, 1
      %p317 = por %p315, %p316
      %p318 = scmp.ne.s32.totalorder %s310, %s313
      %p319 = scmp.eq.s32.totalorder %s22, 0
      %p320 = por %p318, %p319
      %p321 = scmp.ne.s32.totalorder %s310, %s313
      %p322 = scmp.eq.s32.totalorder %s27, 1
      %p323 = por %p321, %p322
      %p324 = scmp.ne.s32.totalorder %s313, %s314
      %p325 = scmp.eq.s32.totalorder %s27, 0
      %p326 = por %p324, %p325
      %p327 = scmp.ne.s32.totalorder %s313, %s314
      %p328 = scmp.eq.s32.totalorder %s28, 1
      %p329 = por %p327, %p328
      %p331 = scmp.ne.s32.totalorder %s314, %s330
      %p332 = scmp.eq.s32.totalorder %s28, 0
      %p333 = por %p331, %p332
      %p334 = scmp.le.s32.totalorder 1, %s22
      %p335 = scmp.lt.s32.totalorder %s22, 3
      %p336 = pnand %p334, %p335
      %p337 = pneg %p336
      // Predicated region
      $region9: #{tpu_custom_call.1} parent=5 // pred_check
        _
      $region10: #{tpu_custom_call.1} parent=5 // pred_check_branch
        %339 = sbr.rel (%p336) target = $region12
      $region11: #{tpu_custom_call.1} parent=5 // pred_region
        %s340 = ssub.s32 %s22, 1
        // Predicated region
        $region13: #{tpu_custom_call.1} parent=11 // pred_check
          %p341 = pneg %p69
        $region14: #{tpu_custom_call.1} parent=11 // pred_check_branch
          %343 = sbr.rel (%p341) target = $region16
        $region15: #{tpu_custom_call.1} parent=11 // pred_region
          _
        $region16: #{tpu_custom_call.1} parent=11 // pred_fallthru
          _
        // Predicated region
        $region17: #{tpu_custom_call.1} parent=11 // pred_check
          %p344 = pneg %p90
        $region18: #{tpu_custom_call.1} parent=11 // pred_check_branch
          %346 = sbr.rel (%p344) target = $region20
        $region19: #{tpu_custom_call.1} parent=11 // pred_region
          _
        $region20: #{tpu_custom_call.1} parent=11 // pred_fallthru
          _
        // Predicated region
        $region21: #{tpu_custom_call.1} parent=11 // pred_check
          %p347 = pneg %p111
        $region22: #{tpu_custom_call.1} parent=11 // pred_check_branch
          %349 = sbr.rel (%p347) target = $region24
        $region23: #{tpu_custom_call.1} parent=11 // pred_region
          _
        $region24: #{tpu_custom_call.1} parent=11 // pred_fallthru
          _
        // Predicated region
        $region25: #{tpu_custom_call.1} parent=11 // pred_check
          %p350 = pneg %p132
        $region26: #{tpu_custom_call.1} parent=11 // pred_check_branch
          %352 = sbr.rel (%p350) target = $region28
        $region27: #{tpu_custom_call.1} parent=11 // pred_region
          _
        $region28: #{tpu_custom_call.1} parent=11 // pred_fallthru
          _
        // Predicated region
        $region29: #{tpu_custom_call.1} parent=11 // pred_check
          %p353 = pneg %p153
        $region30: #{tpu_custom_call.1} parent=11 // pred_check_branch
          %355 = sbr.rel (%p353) target = $region32
        $region31: #{tpu_custom_call.1} parent=11 // pred_region
          _
        $region32: #{tpu_custom_call.1} parent=11 // pred_fallthru
          _
        // Predicated region
        $region33: #{tpu_custom_call.1} parent=11 // pred_check
          %p356 = pneg %p174
        $region34: #{tpu_custom_call.1} parent=11 // pred_check_branch
          %358 = sbr.rel (%p356) target = $region36
        $region35: #{tpu_custom_call.1} parent=11 // pred_region
          _
        $region36: #{tpu_custom_call.1} parent=11 // pred_fallthru
          _
        // Predicated region
        $region37: #{tpu_custom_call.1} parent=11 // pred_check
          %p359 = pneg %p195
        $region38: #{tpu_custom_call.1} parent=11 // pred_check_branch
          %361 = sbr.rel (%p359) target = $region40
        $region39: #{tpu_custom_call.1} parent=11 // pred_region
          _
        $region40: #{tpu_custom_call.1} parent=11 // pred_fallthru
          _
        // Predicated region
        $region41: #{tpu_custom_call.1} parent=11 // pred_check
          %p362 = pneg %p216
        $region42: #{tpu_custom_call.1} parent=11 // pred_check_branch
          %364 = sbr.rel (%p362) target = $region44
        $region43: #{tpu_custom_call.1} parent=11 // pred_region
          _
        $region44: #{tpu_custom_call.1} parent=11 // pred_fallthru
          _
        // Predicated region
        $region45: #{tpu_custom_call.1} parent=11 // pred_check
          %p365 = pneg %p237
        $region46: #{tpu_custom_call.1} parent=11 // pred_check_branch
          %367 = sbr.rel (%p365) target = $region48
        $region47: #{tpu_custom_call.1} parent=11 // pred_region
          _
        $region48: #{tpu_custom_call.1} parent=11 // pred_fallthru
          _
        // Predicated region
        $region49: #{tpu_custom_call.1} parent=11 // pred_check
          %p368 = pneg %p258
        $region50: #{tpu_custom_call.1} parent=11 // pred_check_branch
          %370 = sbr.rel (%p368) target = $region52
        $region51: #{tpu_custom_call.1} parent=11 // pred_region
          _
        $region52: #{tpu_custom_call.1} parent=11 // pred_fallthru
          _
        // Predicated region
        $region53: #{tpu_custom_call.1} parent=11 // pred_check
          %p371 = pneg %p279
        $region54: #{tpu_custom_call.1} parent=11 // pred_check_branch
          %373 = sbr.rel (%p371) target = $region56
        $region55: #{tpu_custom_call.1} parent=11 // pred_region
          _
        $region56: #{tpu_custom_call.1} parent=11 // pred_fallthru
          _
        // Predicated region
        $region57: #{tpu_custom_call.1} parent=11 // pred_check
          %p374 = pneg %p300
        $region58: #{tpu_custom_call.1} parent=11 // pred_check_branch
          %376 = sbr.rel (%p374) target = $region60
        $region59: #{tpu_custom_call.1} parent=11 // pred_region
          _
        $region60: #{tpu_custom_call.1} parent=11 // pred_fallthru
          _
      $region12: #{tpu_custom_call.1} parent=5 // pred_fallthru
        _
      %p377 = scmp.lt.s32.totalorder %s22, 2
      // Predicated region
      $region61: #{tpu_custom_call.1} parent=5 // pred_check
        %p378 = pneg %p377
      $region62: #{tpu_custom_call.1} parent=5 // pred_check_branch
        %380 = sbr.rel (%p378) target = $region64
      $region63: #{tpu_custom_call.1} parent=5 // pred_region
        // Predicated region
        $region65: #{tpu_custom_call.1} parent=63 // pred_check
          %p381 = pneg %p42
        $region66: #{tpu_custom_call.1} parent=63 // pred_check_branch
          %383 = sbr.rel (%p381) target = $region68
        $region67: #{tpu_custom_call.1} parent=63 // pred_region
          %p384 = scmp.lt.s32.totalorder %s22, 1
          %s385 = scalar_select %p384, %s22, 1
          %s386 = smul.addr %s385, 8
          %s387 = scalar_lea.vmem %s0, %s386
        $region68: #{tpu_custom_call.1} parent=63 // pred_fallthru
          _
      $region64: #{tpu_custom_call.1} parent=5 // pred_fallthru
        _
      %p388 = scmp.le.s32.totalorder 1, %s22
      %p389 = scmp.lt.s32.totalorder %s22, 3
      %p390 = pnand %p388, %p389
      %p391 = pneg %p390
      // Predicated region
      $region69: #{tpu_custom_call.1} parent=5 // pred_check
        _
      $region70: #{tpu_custom_call.1} parent=5 // pred_check_branch
        %393 = sbr.rel (%p390) target = $region72
      $region71: #{tpu_custom_call.1} parent=5 // pred_region
        %s394 = ssub.s32 %s22, 1
        %p395 = scmp.lt.s32.totalorder %s27, 1
        %s396 = scalar_select %p395, %s27, 1
        %s397 = smul.addr %s396, 8
        %s398 = scalar_lea.vmem %s0, %s397
        %p399 = pneg %p48
        %p400 = pneg %p45
        %p401 = pneg %p69
        %p402 = pneg %p66
        %p403 = pneg %p90
        %p404 = pneg %p87
        %p405 = pneg %p111
        %p406 = pneg %p108
        %p407 = pneg %p132
        %p408 = pneg %p129
        %p409 = pneg %p153
        %p410 = pneg %p150
        %p411 = pneg %p174
        %p412 = pneg %p171
        %p413 = pneg %p195
        %p414 = pneg %p192
        %p415 = pneg %p216
        %p416 = pneg %p213
        %p417 = pneg %p237
        %p418 = pneg %p234
        %p419 = pneg %p258
        %p420 = pneg %p255
        %p421 = pneg %p279
        %p422 = pneg %p276
        %p423 = pneg %p300
        %p424 = pneg %p297
        %p425 = pneg %p326
        %p426 = pneg %p323
        %s427 = sand.u32 %s313, 1
        %s428 = scalar_lea.sflag [#allocation3], %s427
        %s429 = sand.u32 %s313, 1
        %s430 = smul.addr %s429, 8
        %s431 = scalar_lea.vmem [#allocation2], %s430
        %p432 = scmp.lt.s32.totalorder %s27, 1
        %s433 = scalar_select %p432, %s27, 1
        %s434 = smul.addr %s433, 8
        %s435 = scalar_lea.vmem %s0, %s434
        %v437 = vld [vmem:[%s435] sm:$0xff]
        %v438 = vld [vmem:[%s1] sm:$0x1]
        %v439 = vld [vmem:[%s2] sm:$0x1]
        %vm440 = vcmask 261120
        %v441 = vsel %vm440, %v437, 0.0
        %442 = vadd.xlane.f32.xlu0 %v441
        %v443 = vpop.xlane.xlu0 %442
        %v444 = vrcp.pop 32.0
        %v445 = vmul.f32 %v443, %v444
        %v446 = vsub.f32 %v437, %v445
        %v447 = vmul.f32 %v446, %v446
        %v448 = vsel %vm440, %v447, 0.0
        %449 = vadd.xlane.f32.xlu0 %v448
        %v450 = vpop.xlane.xlu0 %449
        %v451 = vmul.f32 %v450, %v444
        %v452 = vadd.f32 %v451, 1e-05
        %v453 = vrsqrt.pop %v452
        %v454 = vmul.f32 %v446, %v453
        %v456 = vlaneseq
        %v457 = vshrl.u32 %v456, 7
        %v458 = vsub.s32 0, %v457
        %v459 = vrot.slane %v438, %v458
        %v461 = vmul.f32 %v454, %v459
        %v463 = vlaneseq
        %v464 = vshrl.u32 %v463, 7
        %v465 = vsub.s32 0, %v464
        %v466 = vrot.slane %v439, %v465
        %v468 = vadd.f32 %v461, %v466
        %v469 = vpack.c.bf16 %v468, %v468
        %v470 = vld [vmem:[%s3] sm:$0xf]
        %v471 = vld [vmem:[%s3 + $0x4] sm:$0xf]
        %v472 = vld [vmem:[%s3 + $0x8] sm:$0xf]
        %v473 = vld [vmem:[%s3 + $0xc] sm:$0xf]
        %v474 = vld [vmem:[%s4] sm:$0x1]
        %v476 = vlaneseq
        %v477 = vshrl.u32 %v476, 7
        %v478 = vsub.s32 0, %v477
        %v479 = vrot.slane %v474, %v478
        %v485 = vunpack.c.l.b16 %v470
        %v486 = vunpack.c.l.b16 %v471
        %v487 = vunpack.c.l.b16 %v472
        %v488 = vunpack.c.l.b16 %v473
        %v489 = vpack.c.b16 %v486, %v485
        %v490 = vpack.c.b16 %v488, %v487
        %v494 = vsel %vm440, %v469, 0
        %496 = vmatprep.subr.bf16.mxu0 0
        %497 = vmatpush1.bf16.msra.mxu0 0
        %498 = vmatprep.subr.bf16.mxu0 0
        %499 = vmatpush1.bf16.msra.mxu0 0
        %500 = vmatprep.subr.bf16.mxu0 0
        %501 = vmatpush1.bf16.msra.mxu0 0
        %502 = vmatprep.subr.bf16.mxu0 0
        %503 = vmatpush1.bf16.msra.mxu0 0
        %504 = vmatprep.subr.bf16.mxu0 0
        %505 = vmatpush1.bf16.msra.mxu0 0
        %506 = vmatprep.subr.bf16.mxu0 0
        %507 = vmatpush1.bf16.msra.mxu0 0
        %508 = vmatprep.subr.bf16.mxu0 0
        %509 = vmatpush1.bf16.msra.mxu0 %v490
        %510 = vmatprep.subr.bf16.mxu0 0
        %511 = vmatpush1.bf16.msra.mxu0 %v489
        %512 = vmatprep.subr.bf16.mxu0 0
        %513 = vmatpush2.bf16.msra.mxu0 0
        %514 = vmatprep.subr.bf16.mxu0 0
        %515 = vmatpush2.bf16.msra.mxu0 0
        %516 = vmatprep.subr.bf16.mxu0 0
        %517 = vmatpush2.bf16.msra.mxu0 0
        %518 = vmatprep.subr.bf16.mxu0 0
        %519 = vmatpush2.bf16.msra.mxu0 0
        %520 = vmatprep.subr.bf16.mxu0 0
        %521 = vmatpush2.bf16.msra.mxu0 0
        %522 = vmatprep.subr.bf16.mxu0 0
        %523 = vmatpush2.bf16.msra.mxu0 0
        %524 = vmatprep.subr.bf16.mxu0 0
        %525 = vmatpush2.bf16.msra.mxu0 0
        %526 = vmatprep.subr.bf16.mxu0 0
        %527 = vmatpush2.bf16.msra.mxu0 0
        %528 = vmatprep.mubr.bf16.mxu0 0
        %529 = vmatmul.mubr.bf16.gmra.mxu0 %v494
        %v530 = vpop.f32.mrf.mxu0
        %v531 = vadd.f32 %v479, %v530
        %v532 = vpop.f32.mrf.mxu0
        %v533 = vpop.f32.mrf.mxu0
        %v534 = vpop.f32.mrf.mxu0
        %535 = vdwg.mxu0
        %v536 = vlaneseq
        %v537 = vshrl.u32 %v536, 7
        %v538 = vlaneseq
        %v539 = vand.u32 %v538, 127
        %vm540 = vcmp.ge.s32.totalorder %v537, %v539
        %v541 = vpack.c.bf16 %v531, %v531
        %543 = vrot.lane.b32.xlu0 %v541, 96
        %v544 = vpop.permute.xlu0 %543
        %vm545 = vcmask 64512
        %v547 = vsel %vm545, %v541, 0
        %v550 = vsel %vm545, %v544, 0
        %552 = vmatprep.subr.bf16.mxu0 0
        %553 = vmatpush1.bf16.xpose.msra.mxu0 0
        %554 = vmatprep.subr.bf16.mxu0 0
        %555 = vmatpush1.bf16.xpose.msra.mxu0 0
        %556 = vmatprep.subr.bf16.mxu0 0
        %557 = vmatpush1.bf16.xpose.msra.mxu0 0
        %558 = vmatprep.subr.bf16.mxu0 0
        %559 = vmatpush1.bf16.xpose.msra.mxu0 0
        %560 = vmatprep.subr.bf16.mxu0 0
        %561 = vmatpush1.bf16.xpose.msra.mxu0 0
        %562 = vmatprep.subr.bf16.mxu0 0
        %563 = vmatpush1.bf16.xpose.msra.mxu0 0
        %564 = vmatprep.subr.bf16.mxu0 0
        %565 = vmatpush1.bf16.xpose.msra.mxu0 0
        %566 = vmatprep.subr.bf16.mxu0 0
        %567 = vmatpush1.bf16.xpose.msra.mxu0 %v550
        %568 = vmatprep.subr.bf16.mxu0 0
        %569 = vmatpush2.bf16.xpose.msra.mxu0 0
        %570 = vmatprep.subr.bf16.mxu0 0
        %571 = vmatpush2.bf16.xpose.msra.mxu0 0
        %572 = vmatprep.subr.bf16.mxu0 0
        %573 = vmatpush2.bf16.xpose.msra.mxu0 0
        %574 = vmatprep.subr.bf16.mxu0 0
        %575 = vmatpush2.bf16.xpose.msra.mxu0 0
        %576 = vmatprep.subr.bf16.mxu0 0
        %577 = vmatpush2.bf16.xpose.msra.mxu0 0
        %578 = vmatprep.subr.bf16.mxu0 0
        %579 = vmatpush2.bf16.xpose.msra.mxu0 0
        %580 = vmatprep.subr.bf16.mxu0 0
        %581 = vmatpush2.bf16.xpose.msra.mxu0 0
        %582 = vmatprep.subr.bf16.mxu0 0
        %583 = vmatpush2.bf16.xpose.msra.mxu0 0
        %584 = vmatprep.mubr.bf16.mxu0 0
        %585 = vmatmul.mubr.bf16.gmra.mxu0 %v547
        %v586 = vpop.f32.mrf.mxu0
        %v587 = vadd.f32 0.0, %v586
        %v588 = vpop.f32.mrf.mxu0
        %v589 = vpop.f32.mrf.mxu0
        %v590 = vpop.f32.mrf.mxu0
        %591 = vdwg.mxu0
        %v592 = vmul.f32 %v587, 0.35355338
        %v593 = vsel %vm540, %v592, -1e+30
        %v594 = vsel %vm545, %v593, -inf
        %595 = vmax.xlane.f32.xlu0 %v594
        %v596 = vpop.xlane.xlu0 %595
        %v597 = vsub.f32 %v593, %v596
        %v598 = vmul.f32 %v597, 1.442695
        %v599 = vpow.pop %v598
        %v600 = vsel %vm545, %v599, 0.0
        %601 = vadd.xlane.f32.xlu0 %v600
        %v602 = vpop.xlane.xlu0 %601
        %v603 = vrcp.pop %v602
        %v604 = vmul.f32 %v599, %v603
        %v605 = vpack.c.bf16 %v604, %v604
        %606 = vrot.lane.b32.xlu0 %v541, 64
        %v607 = vpop.permute.xlu0 %606
        %v609 = vsel %vm545, %v605, 0
        %vm611 = vcmask 1043456
        %v613 = vsel %vm611, %v607, 0
        %615 = vmatprep.subr.bf16.mxu0 0
        %616 = vmatpush1.bf16.msra.mxu0 0
        %617 = vmatprep.subr.bf16.mxu0 0
        %618 = vmatpush1.bf16.msra.mxu0 0
        %619 = vmatprep.subr.bf16.mxu0 0
        %620 = vmatpush1.bf16.msra.mxu0 0
        %621 = vmatprep.subr.bf16.mxu0 0
        %622 = vmatpush1.bf16.msra.mxu0 0
        %623 = vmatprep.subr.bf16.mxu0 0
        %624 = vmatpush1.bf16.msra.mxu0 0
        %625 = vmatprep.subr.bf16.mxu0 0
        %626 = vmatpush1.bf16.msra.mxu0 0
        %627 = vmatprep.subr.bf16.mxu0 0
        %628 = vmatpush1.bf16.msra.mxu0 0
        %629 = vmatprep.subr.bf16.mxu0 0
        %630 = vmatpush1.bf16.msra.mxu0 %v613
        %631 = vmatprep.subr.bf16.mxu0 0
        %632 = vmatpush2.bf16.msra.mxu0 0
        %633 = vmatprep.subr.bf16.mxu0 0
        %634 = vmatpush2.bf16.msra.mxu0 0
        %635 = vmatprep.subr.bf16.mxu0 0
        %636 = vmatpush2.bf16.msra.mxu0 0
        %637 = vmatprep.subr.bf16.mxu0 0
        %638 = vmatpush2.bf16.msra.mxu0 0
        %639 = vmatprep.subr.bf16.mxu0 0
        %640 = vmatpush2.bf16.msra.mxu0 0
        %641 = vmatprep.subr.bf16.mxu0 0
        %642 = vmatpush2.bf16.msra.mxu0 0
        %643 = vmatprep.subr.bf16.mxu0 0
        %644 = vmatpush2.bf16.msra.mxu0 0
        %645 = vmatprep.subr.bf16.mxu0 0
        %646 = vmatpush2.bf16.msra.mxu0 0
        %647 = vmatprep.mubr.bf16.mxu0 0
        %648 = vmatmul.mubr.bf16.gmra.mxu0 %v609
        %v649 = vpop.f32.mrf.mxu0
        %v650 = vadd.f32 0.0, %v649
        %v651 = vpop.f32.mrf.mxu0
        %v652 = vpop.f32.mrf.mxu0
        %v653 = vpop.f32.mrf.mxu0
        %654 = vdwg.mxu0
        %655 = vrot.lane.b32.xlu0 %v541, 120
        %v656 = vpop.permute.xlu0 %655
        %657 = vrot.lane.b32.xlu0 %v541, 88
        %v658 = vpop.permute.xlu0 %657
        %v660 = vsel %vm545, %v656, 0
        %v663 = vsel %vm545, %v658, 0
        %665 = vmatprep.subr.bf16.mxu0 0
        %666 = vmatpush1.bf16.xpose.msra.mxu0 0
        %667 = vmatprep.subr.bf16.mxu0 0
        %668 = vmatpush1.bf16.xpose.msra.mxu0 0
        %669 = vmatprep.subr.bf16.mxu0 0
        %670 = vmatpush1.bf16.xpose.msra.mxu0 0
        %671 = vmatprep.subr.bf16.mxu0 0
        %672 = vmatpush1.bf16.xpose.msra.mxu0 0
        %673 = vmatprep.subr.bf16.mxu0 0
        %674 = vmatpush1.bf16.xpose.msra.mxu0 0
        %675 = vmatprep.subr.bf16.mxu0 0
        %676 = vmatpush1.bf16.xpose.msra.mxu0 0
        %677 = vmatprep.subr.bf16.mxu0 0
        %678 = vmatpush1.bf16.xpose.msra.mxu0 0
        %679 = vmatprep.subr.bf16.mxu0 0
        %680 = vmatpush1.bf16.xpose.msra.mxu0 %v663
        %681 = vmatprep.subr.bf16.mxu0 0
        %682 = vmatpush2.bf16.xpose.msra.mxu0 0
        %683 = vmatprep.subr.bf16.mxu0 0
        %684 = vmatpush2.bf16.xpose.msra.mxu0 0
        %685 = vmatprep.subr.bf16.mxu0 0
        %686 = vmatpush2.bf16.xpose.msra.mxu0 0
        %687 = vmatprep.subr.bf16.mxu0 0
        %688 = vmatpush2.bf16.xpose.msra.mxu0 0
        %689 = vmatprep.subr.bf16.mxu0 0
        %690 = vmatpush2.bf16.xpose.msra.mxu0 0
        %691 = vmatprep.subr.bf16.mxu0 0
        %692 = vmatpush2.bf16.xpose.msra.mxu0 0
        %693 = vmatprep.subr.bf16.mxu0 0
        %694 = vmatpush2.bf16.xpose.msra.mxu0 0
        %695 = vmatprep.subr.bf16.mxu0 0
        %696 = vmatpush2.bf16.xpose.msra.mxu0 0
        %697 = vmatprep.mubr.bf16.mxu0 0
        %698 = vmatmul.mubr.bf16.gmra.mxu0 %v660
        %v699 = vpop.f32.mrf.mxu0
        %v700 = vadd.f32 0.0, %v699
        %v701 = vpop.f32.mrf.mxu0
        %v702 = vpop.f32.mrf.mxu0
        %v703 = vpop.f32.mrf.mxu0
        %704 = vdwg.mxu0
        %v705 = vmul.f32 %v700, 0.35355338
        %v706 = vsel %vm540, %v705, -1e+30
        %v707 = vsel %vm545, %v706, -inf
        %708 = vmax.xlane.f32.xlu0 %v707
        %v709 = vpop.xlane.xlu0 %708
        %v710 = vsub.f32 %v706, %v709
        %v711 = vmul.f32 %v710, 1.442695
        %v712 = vpow.pop %v711
        %v713 = vsel %vm545, %v712, 0.0
        %714 = vadd.xlane.f32.xlu0 %v713
        %v715 = vpop.xlane.xlu0 %714
        %v716 = vrcp.pop %v715
        %v717 = vmul.f32 %v712, %v716
        %v718 = vpack.c.bf16 %v717, %v717
        %719 = vrot.lane.b32.xlu0 %v541, 56
        %v720 = vpop.permute.xlu0 %719
        %v722 = vsel %vm545, %v718, 0
        %v725 = vsel %vm611, %v720, 0
        %727 = vmatprep.subr.bf16.mxu0 0
        %728 = vmatpush1.bf16.msra.mxu0 0
        %729 = vmatprep.subr.bf16.mxu0 0
        %730 = vmatpush1.bf16.msra.mxu0 0
        %731 = vmatprep.subr.bf16.mxu0 0
        %732 = vmatpush1.bf16.msra.mxu0 0
        %733 = vmatprep.subr.bf16.mxu0 0
        %734 = vmatpush1.bf16.msra.mxu0 0
        %735 = vmatprep.subr.bf16.mxu0 0
        %736 = vmatpush1.bf16.msra.mxu0 0
        %737 = vmatprep.subr.bf16.mxu0 0
        %738 = vmatpush1.bf16.msra.mxu0 0
        %739 = vmatprep.subr.bf16.mxu0 0
        %740 = vmatpush1.bf16.msra.mxu0 0
        %741 = vmatprep.subr.bf16.mxu0 0
        %742 = vmatpush1.bf16.msra.mxu0 %v725
        %743 = vmatprep.subr.bf16.mxu0 0
        %744 = vmatpush2.bf16.msra.mxu0 0
        %745 = vmatprep.subr.bf16.mxu0 0
        %746 = vmatpush2.bf16.msra.mxu0 0
        %747 = vmatprep.subr.bf16.mxu0 0
        %748 = vmatpush2.bf16.msra.mxu0 0
        %749 = vmatprep.subr.bf16.mxu0 0
        %750 = vmatpush2.bf16.msra.mxu0 0
        %751 = vmatprep.subr.bf16.mxu0 0
        %752 = vmatpush2.bf16.msra.mxu0 0
        %753 = vmatprep.subr.bf16.mxu0 0
        %754 = vmatpush2.bf16.msra.mxu0 0
        %755 = vmatprep.subr.bf16.mxu0 0
        %756 = vmatpush2.bf16.msra.mxu0 0
        %757 = vmatprep.subr.bf16.mxu0 0
        %758 = vmatpush2.bf16.msra.mxu0 0
        %759 = vmatprep.mubr.bf16.mxu0 0
        %760 = vmatmul.mubr.bf16.gmra.mxu0 %v722
        %v761 = vpop.f32.mrf.mxu0
        %v762 = vadd.f32 0.0, %v761
        %v763 = vpop.f32.mrf.mxu0
        %v764 = vpop.f32.mrf.mxu0
        %v765 = vpop.f32.mrf.mxu0
        %766 = vdwg.mxu0
        %767 = vrot.lane.b32.xlu0 %v541, 112
        %v768 = vpop.permute.xlu0 %767
        %769 = vrot.lane.b32.xlu0 %v541, 80
        %v770 = vpop.permute.xlu0 %769
        %v772 = vsel %vm545, %v768, 0
        %v775 = vsel %vm545, %v770, 0
        %777 = vmatprep.subr.bf16.mxu0 0
        %778 = vmatpush1.bf16.xpose.msra.mxu0 0
        %779 = vmatprep.subr.bf16.mxu0 0
        %780 = vmatpush1.bf16.xpose.msra.mxu0 0
        %781 = vmatprep.subr.bf16.mxu0 0
        %782 = vmatpush1.bf16.xpose.msra.mxu0 0
        %783 = vmatprep.subr.bf16.mxu0 0
        %784 = vmatpush1.bf16.xpose.msra.mxu0 0
        %785 = vmatprep.subr.bf16.mxu0 0
        %786 = vmatpush1.bf16.xpose.msra.mxu0 0
        %787 = vmatprep.subr.bf16.mxu0 0
        %788 = vmatpush1.bf16.xpose.msra.mxu0 0
        %789 = vmatprep.subr.bf16.mxu0 0
        %790 = vmatpush1.bf16.xpose.msra.mxu0 0
        %791 = vmatprep.subr.bf16.mxu0 0
        %792 = vmatpush1.bf16.xpose.msra.mxu0 %v775
        %793 = vmatprep.subr.bf16.mxu0 0
        %794 = vmatpush2.bf16.xpose.msra.mxu0 0
        %795 = vmatprep.subr.bf16.mxu0 0
        %796 = vmatpush2.bf16.xpose.msra.mxu0 0
        %797 = vmatprep.subr.bf16.mxu0 0
        %798 = vmatpush2.bf16.xpose.msra.mxu0 0
        %799 = vmatprep.subr.bf16.mxu0 0
        %800 = vmatpush2.bf16.xpose.msra.mxu0 0
        %801 = vmatprep.subr.bf16.mxu0 0
        %802 = vmatpush2.bf16.xpose.msra.mxu0 0
        %803 = vmatprep.subr.bf16.mxu0 0
        %804 = vmatpush2.bf16.xpose.msra.mxu0 0
        %805 = vmatprep.subr.bf16.mxu0 0
        %806 = vmatpush2.bf16.xpose.msra.mxu0 0
        %807 = vmatprep.subr.bf16.mxu0 0
        %808 = vmatpush2.bf16.xpose.msra.mxu0 0
        %809 = vmatprep.mubr.bf16.mxu0 0
        %810 = vmatmul.mubr.bf16.gmra.mxu0 %v772
        %v811 = vpop.f32.mrf.mxu0
        %v812 = vadd.f32 0.0, %v811
        %v813 = vpop.f32.mrf.mxu0
        %v814 = vpop.f32.mrf.mxu0
        %v815 = vpop.f32.mrf.mxu0
        %816 = vdwg.mxu0
        %v817 = vmul.f32 %v812, 0.35355338
        %v818 = vsel %vm540, %v817, -1e+30
        %v819 = vsel %vm545, %v818, -inf
        %820 = vmax.xlane.f32.xlu0 %v819
        %v821 = vpop.xlane.xlu0 %820
        %v822 = vsub.f32 %v818, %v821
        %v823 = vmul.f32 %v822, 1.442695
        %v824 = vpow.pop %v823
        %v825 = vsel %vm545, %v824, 0.0
        %826 = vadd.xlane.f32.xlu0 %v825
        %v827 = vpop.xlane.xlu0 %826
        %v828 = vrcp.pop %v827
        %v829 = vmul.f32 %v824, %v828
        %v830 = vpack.c.bf16 %v829, %v829
        %831 = vrot.lane.b32.xlu0 %v541, 48
        %v832 = vpop.permute.xlu0 %831
        %v834 = vsel %vm545, %v830, 0
        %v837 = vsel %vm611, %v832, 0
        %839 = vmatprep.subr.bf16.mxu0 0
        %840 = vmatpush1.bf16.msra.mxu0 0
        %841 = vmatprep.subr.bf16.mxu0 0
        %842 = vmatpush1.bf16.msra.mxu0 0
        %843 = vmatprep.subr.bf16.mxu0 0
        %844 = vmatpush1.bf16.msra.mxu0 0
        %845 = vmatprep.subr.bf16.mxu0 0
        %846 = vmatpush1.bf16.msra.mxu0 0
        %847 = vmatprep.subr.bf16.mxu0 0
        %848 = vmatpush1.bf16.msra.mxu0 0
        %849 = vmatprep.subr.bf16.mxu0 0
        %850 = vmatpush1.bf16.msra.mxu0 0
        %851 = vmatprep.subr.bf16.mxu0 0
        %852 = vmatpush1.bf16.msra.mxu0 0
        %853 = vmatprep.subr.bf16.mxu0 0
        %854 = vmatpush1.bf16.msra.mxu0 %v837
        %855 = vmatprep.subr.bf16.mxu0 0
        %856 = vmatpush2.bf16.msra.mxu0 0
        %857 = vmatprep.subr.bf16.mxu0 0
        %858 = vmatpush2.bf16.msra.mxu0 0
        %859 = vmatprep.subr.bf16.mxu0 0
        %860 = vmatpush2.bf16.msra.mxu0 0
        %861 = vmatprep.subr.bf16.mxu0 0
        %862 = vmatpush2.bf16.msra.mxu0 0
        %863 = vmatprep.subr.bf16.mxu0 0
        %864 = vmatpush2.bf16.msra.mxu0 0
        %865 = vmatprep.subr.bf16.mxu0 0
        %866 = vmatpush2.bf16.msra.mxu0 0
        %867 = vmatprep.subr.bf16.mxu0 0
        %868 = vmatpush2.bf16.msra.mxu0 0
        %869 = vmatprep.subr.bf16.mxu0 0
        %870 = vmatpush2.bf16.msra.mxu0 0
        %871 = vmatprep.mubr.bf16.mxu0 0
        %872 = vmatmul.mubr.bf16.gmra.mxu0 %v834
        %v873 = vpop.f32.mrf.mxu0
        %v874 = vadd.f32 0.0, %v873
        %v875 = vpop.f32.mrf.mxu0
        %v876 = vpop.f32.mrf.mxu0
        %v877 = vpop.f32.mrf.mxu0
        %878 = vdwg.mxu0
        %879 = vrot.lane.b32.xlu0 %v541, 104
        %v880 = vpop.permute.xlu0 %879
        %881 = vrot.lane.b32.xlu0 %v541, 72
        %v882 = vpop.permute.xlu0 %881
        %v884 = vsel %vm545, %v880, 0
        %v887 = vsel %vm545, %v882, 0
        %889 = vmatprep.subr.bf16.mxu0 0
        %890 = vmatpush1.bf16.xpose.msra.mxu0 0
        %891 = vmatprep.subr.bf16.mxu0 0
        %892 = vmatpush1.bf16.xpose.msra.mxu0 0
        %893 = vmatprep.subr.bf16.mxu0 0
        %894 = vmatpush1.bf16.xpose.msra.mxu0 0
        %895 = vmatprep.subr.bf16.mxu0 0
        %896 = vmatpush1.bf16.xpose.msra.mxu0 0
        %897 = vmatprep.subr.bf16.mxu0 0
        %898 = vmatpush1.bf16.xpose.msra.mxu0 0
        %899 = vmatprep.subr.bf16.mxu0 0
        %900 = vmatpush1.bf16.xpose.msra.mxu0 0
        %901 = vmatprep.subr.bf16.mxu0 0
        %902 = vmatpush1.bf16.xpose.msra.mxu0 0
        %903 = vmatprep.subr.bf16.mxu0 0
        %904 = vmatpush1.bf16.xpose.msra.mxu0 %v887
        %905 = vmatprep.subr.bf16.mxu0 0
        %906 = vmatpush2.bf16.xpose.msra.mxu0 0
        %907 = vmatprep.subr.bf16.mxu0 0
        %908 = vmatpush2.bf16.xpose.msra.mxu0 0
        %909 = vmatprep.subr.bf16.mxu0 0
        %910 = vmatpush2.bf16.xpose.msra.mxu0 0
        %911 = vmatprep.subr.bf16.mxu0 0
        %912 = vmatpush2.bf16.xpose.msra.mxu0 0
        %913 = vmatprep.subr.bf16.mxu0 0
        %914 = vmatpush2.bf16.xpose.msra.mxu0 0
        %915 = vmatprep.subr.bf16.mxu0 0
        %916 = vmatpush2.bf16.xpose.msra.mxu0 0
        %917 = vmatprep.subr.bf16.mxu0 0
        %918 = vmatpush2.bf16.xpose.msra.mxu0 0
        %919 = vmatprep.subr.bf16.mxu0 0
        %920 = vmatpush2.bf16.xpose.msra.mxu0 0
        %921 = vmatprep.mubr.bf16.mxu0 0
        %922 = vmatmul.mubr.bf16.gmra.mxu0 %v884
        %v923 = vpop.f32.mrf.mxu0
        %v924 = vadd.f32 0.0, %v923
        %v925 = vpop.f32.mrf.mxu0
        %v926 = vpop.f32.mrf.mxu0
        %v927 = vpop.f32.mrf.mxu0
        %928 = vdwg.mxu0
        %v929 = vmul.f32 %v924, 0.35355338
        %v930 = vsel %vm540, %v929, -1e+30
        %v931 = vsel %vm545, %v930, -inf
        %932 = vmax.xlane.f32.xlu0 %v931
        %v933 = vpop.xlane.xlu0 %932
        %v934 = vsub.f32 %v930, %v933
        %v935 = vmul.f32 %v934, 1.442695
        %v936 = vpow.pop %v935
        %v937 = vsel %vm545, %v936, 0.0
        %938 = vadd.xlane.f32.xlu0 %v937
        %v939 = vpop.xlane.xlu0 %938
        %v940 = vrcp.pop %v939
        %v941 = vmul.f32 %v936, %v940
        %v942 = vpack.c.bf16 %v941, %v941
        %943 = vrot.lane.b32.xlu0 %v541, 40
        %v944 = vpop.permute.xlu0 %943
        %v946 = vsel %vm545, %v942, 0
        %v949 = vsel %vm611, %v944, 0
        %951 = vmatprep.subr.bf16.mxu0 0
        %952 = vmatpush1.bf16.msra.mxu0 0
        %953 = vmatprep.subr.bf16.mxu0 0
        %954 = vmatpush1.bf16.msra.mxu0 0
        %955 = vmatprep.subr.bf16.mxu0 0
        %956 = vmatpush1.bf16.msra.mxu0 0
        %957 = vmatprep.subr.bf16.mxu0 0
        %958 = vmatpush1.bf16.msra.mxu0 0
        %959 = vmatprep.subr.bf16.mxu0 0
        %960 = vmatpush1.bf16.msra.mxu0 0
        %961 = vmatprep.subr.bf16.mxu0 0
        %962 = vmatpush1.bf16.msra.mxu0 0
        %963 = vmatprep.subr.bf16.mxu0 0
        %964 = vmatpush1.bf16.msra.mxu0 0
        %965 = vmatprep.subr.bf16.mxu0 0
        %966 = vmatpush1.bf16.msra.mxu0 %v949
        %967 = vmatprep.subr.bf16.mxu0 0
        %968 = vmatpush2.bf16.msra.mxu0 0
        %969 = vmatprep.subr.bf16.mxu0 0
        %970 = vmatpush2.bf16.msra.mxu0 0
        %971 = vmatprep.subr.bf16.mxu0 0
        %972 = vmatpush2.bf16.msra.mxu0 0
        %973 = vmatprep.subr.bf16.mxu0 0
        %974 = vmatpush2.bf16.msra.mxu0 0
        %975 = vmatprep.subr.bf16.mxu0 0
        %976 = vmatpush2.bf16.msra.mxu0 0
        %977 = vmatprep.subr.bf16.mxu0 0
        %978 = vmatpush2.bf16.msra.mxu0 0
        %979 = vmatprep.subr.bf16.mxu0 0
        %980 = vmatpush2.bf16.msra.mxu0 0
        %981 = vmatprep.subr.bf16.mxu0 0
        %982 = vmatpush2.bf16.msra.mxu0 0
        %983 = vmatprep.mubr.bf16.mxu0 0
        %984 = vmatmul.mubr.bf16.gmra.mxu0 %v946
        %v985 = vpop.f32.mrf.mxu0
        %v986 = vadd.f32 0.0, %v985
        %v987 = vpop.f32.mrf.mxu0
        %v988 = vpop.f32.mrf.mxu0
        %v989 = vpop.f32.mrf.mxu0
        %990 = vdwg.mxu0
        %992 = vrot.lane.b32.xlu0 %v762, 8
        %v993 = vpop.permute.xlu0 %992
        %996 = vrot.lane.b32.xlu0 %v874, 16
        %v997 = vpop.permute.xlu0 %996
        %1000 = vrot.lane.b32.xlu0 %v986, 24
        %v1001 = vpop.permute.xlu0 %1000
        %v1003 = vsel %vm545, %v650, %v993
        %vm1004 = vcmask 130048
        %v1005 = vsel %vm1004, %v1003, %v997
        %vm1006 = vcmask 195584
        %v1007 = vsel %vm1006, %v1005, %v1001
        %v1008 = vpack.c.bf16 %v1007, %v1007
        %v1009 = vld [vmem:[%s5] sm:$0xf]
        %v1010 = vld [vmem:[%s5 + $0x4] sm:$0xf]
        %v1011 = vld [vmem:[%s5 + $0x8] sm:$0xf]
        %v1012 = vld [vmem:[%s5 + $0xc] sm:$0xf]
        %v1017 = vunpack.c.l.b16 %v1009
        %v1018 = vunpack.c.l.b16 %v1010
        %v1019 = vunpack.c.l.b16 %v1011
        %v1020 = vunpack.c.l.b16 %v1012
        %v1021 = vpack.c.b16 %v1018, %v1017
        %v1022 = vpack.c.b16 %v1020, %v1019
        %v1026 = vsel %vm440, %v1008, 0
        %1028 = vmatprep.subr.bf16.mxu0 0
        %1029 = vmatpush1.bf16.msra.mxu0 0
        %1030 = vmatprep.subr.bf16.mxu0 0
        %1031 = vmatpush1.bf16.msra.mxu0 0
        %1032 = vmatprep.subr.bf16.mxu0 0
        %1033 = vmatpush1.bf16.msra.mxu0 0
        %1034 = vmatprep.subr.bf16.mxu0 0
        %1035 = vmatpush1.bf16.msra.mxu0 0
        %1036 = vmatprep.subr.bf16.mxu0 0
        %1037 = vmatpush1.bf16.msra.mxu0 0
        %1038 = vmatprep.subr.bf16.mxu0 0
        %1039 = vmatpush1.bf16.msra.mxu0 0
        %1040 = vmatprep.subr.bf16.mxu0 0
        %1041 = vmatpush1.bf16.msra.mxu0 %v1022
        %1042 = vmatprep.subr.bf16.mxu0 0
        %1043 = vmatpush1.bf16.msra.mxu0 %v1021
        %1044 = vmatprep.subr.bf16.mxu0 0
        %1045 = vmatpush2.bf16.msra.mxu0 0
        %1046 = vmatprep.subr.bf16.mxu0 0
        %1047 = vmatpush2.bf16.msra.mxu0 0
        %1048 = vmatprep.subr.bf16.mxu0 0
        %1049 = vmatpush2.bf16.msra.mxu0 0
        %1050 = vmatprep.subr.bf16.mxu0 0
        %1051 = vmatpush2.bf16.msra.mxu0 0
        %1052 = vmatprep.subr.bf16.mxu0 0
        %1053 = vmatpush2.bf16.msra.mxu0 0
        %1054 = vmatprep.subr.bf16.mxu0 0
        %1055 = vmatpush2.bf16.msra.mxu0 0
        %1056 = vmatprep.subr.bf16.mxu0 0
        %1057 = vmatpush2.bf16.msra.mxu0 0
        %1058 = vmatprep.subr.bf16.mxu0 0
        %1059 = vmatpush2.bf16.msra.mxu0 0
        %1060 = vmatprep.mubr.bf16.mxu0 0
        %1061 = vmatmul.mubr.bf16.gmra.mxu0 %v1026
        %v1062 = vpop.f32.mrf.mxu0
        %v1063 = vadd.f32 0.0, %v1062
        %v1064 = vpop.f32.mrf.mxu0
        %v1065 = vpop.f32.mrf.mxu0
        %v1066 = vpop.f32.mrf.mxu0
        %1067 = vdwg.mxu0
        %v1068 = vadd.f32 %v437, %v1063
        %v1069 = vld [vmem:[%s6] sm:$0x1]
        %v1071 = vlaneseq
        %v1072 = vshrl.u32 %v1071, 7
        %v1073 = vsub.s32 0, %v1072
        %v1074 = vrot.slane %v1069, %v1073
        %v1076 = vadd.f32 %v1068, %v1074
        %v1077 = vld [vmem:[%s7] sm:$0x1]
        %v1078 = vld [vmem:[%s8] sm:$0x1]
        %v1079 = vsel %vm440, %v1076, 0.0
        %1080 = vadd.xlane.f32.xlu0 %v1079
        %v1081 = vpop.xlane.xlu0 %1080
        %v1082 = vmul.f32 %v1081, %v444
        %v1083 = vsub.f32 %v1076, %v1082
        %v1084 = vmul.f32 %v1083, %v1083
        %v1085 = vsel %vm440, %v1084, 0.0
        %1086 = vadd.xlane.f32.xlu0 %v1085
        %v1087 = vpop.xlane.xlu0 %1086
        %v1088 = vmul.f32 %v1087, %v444
        %v1089 = vadd.f32 %v1088, 1e-05
        %v1090 = vrsqrt.pop %v1089
        %v1091 = vmul.f32 %v1083, %v1090
        %v1093 = vlaneseq
        %v1094 = vshrl.u32 %v1093, 7
        %v1095 = vsub.s32 0, %v1094
        %v1096 = vrot.slane %v1077, %v1095
        %v1098 = vmul.f32 %v1091, %v1096
        %v1100 = vlaneseq
        %v1101 = vshrl.u32 %v1100, 7
        %v1102 = vsub.s32 0, %v1101
        %v1103 = vrot.slane %v1078, %v1102
        %v1105 = vadd.f32 %v1098, %v1103
        %v1106 = vpack.c.bf16 %v1105, %v1105
        %v1107 = vld [vmem:[%s9] sm:$0xf]
        %v1108 = vld [vmem:[%s9 + $0x4] sm:$0xf]
        %v1109 = vld [vmem:[%s9 + $0x8] sm:$0xf]
        %v1110 = vld [vmem:[%s9 + $0xc] sm:$0xf]
        %v1111 = vld [vmem:[%s10] sm:$0x1]
        %v1113 = vlaneseq
        %v1114 = vshrl.u32 %v1113, 7
        %v1115 = vsub.s32 0, %v1114
        %v1116 = vrot.slane %v1111, %v1115
        %v1122 = vunpack.c.l.b16 %v1107
        %v1123 = vunpack.c.l.b16 %v1108
        %v1124 = vunpack.c.l.b16 %v1109
        %v1125 = vunpack.c.l.b16 %v1110
        %v1126 = vpack.c.b16 %v1123, %v1122
        %v1127 = vpack.c.b16 %v1125, %v1124
        %v1131 = vsel %vm440, %v1106, 0
        %1133 = vmatprep.subr.bf16.mxu0 0
        %1134 = vmatpush1.bf16.msra.mxu0 0
        %1135 = vmatprep.subr.bf16.mxu0 0
        %1136 = vmatpush1.bf16.msra.mxu0 0
        %1137 = vmatprep.subr.bf16.mxu0 0
        %1138 = vmatpush1.bf16.msra.mxu0 0
        %1139 = vmatprep.subr.bf16.mxu0 0
        %1140 = vmatpush1.bf16.msra.mxu0 0
        %1141 = vmatprep.subr.bf16.mxu0 0
        %1142 = vmatpush1.bf16.msra.mxu0 0
        %1143 = vmatprep.subr.bf16.mxu0 0
        %1144 = vmatpush1.bf16.msra.mxu0 0
        %1145 = vmatprep.subr.bf16.mxu0 0
        %1146 = vmatpush1.bf16.msra.mxu0 %v1127
        %1147 = vmatprep.subr.bf16.mxu0 0
        %1148 = vmatpush1.bf16.msra.mxu0 %v1126
        %1149 = vmatprep.subr.bf16.mxu0 0
        %1150 = vmatpush2.bf16.msra.mxu0 0
        %1151 = vmatprep.subr.bf16.mxu0 0
        %1152 = vmatpush2.bf16.msra.mxu0 0
        %1153 = vmatprep.subr.bf16.mxu0 0
        %1154 = vmatpush2.bf16.msra.mxu0 0
        %1155 = vmatprep.subr.bf16.mxu0 0
        %1156 = vmatpush2.bf16.msra.mxu0 0
        %1157 = vmatprep.subr.bf16.mxu0 0
        %1158 = vmatpush2.bf16.msra.mxu0 0
        %1159 = vmatprep.subr.bf16.mxu0 0
        %1160 = vmatpush2.bf16.msra.mxu0 0
        %1161 = vmatprep.subr.bf16.mxu0 0
        %1162 = vmatpush2.bf16.msra.mxu0 0
        %1163 = vmatprep.subr.bf16.mxu0 0
        %1164 = vmatpush2.bf16.msra.mxu0 0
        %1165 = vmatprep.mubr.bf16.mxu0 0
        %1166 = vmatmul.mubr.bf16.gmra.mxu0 %v1131
        %v1167 = vpop.f32.mrf.mxu0
        %v1168 = vadd.f32 %v1116, %v1167
        %v1169 = vpop.f32.mrf.mxu0
        %v1170 = vpop.f32.mrf.mxu0
        %v1171 = vpop.f32.mrf.mxu0
        %1172 = vdwg.mxu0
        %v1173 = vmul.f32 %v1168, 0.5
        %v1174 = vmul.f32 %v1168, 0.044715
        %v1175 = vmul.f32 %v1174, %v1168
        %v1176 = vmul.f32 %v1175, %v1168
        %v1177 = vadd.f32 %v1168, %v1176
        %v1178 = vmul.f32 %v1177, 0.7978846
        %v1179 = vtanh.pop %v1178
        %v1180 = vadd.f32 %v1179, 1.0
        %v1181 = vmul.f32 %v1173, %v1180
        %v1182 = vpack.c.bf16 %v1181, %v1181
        %v1183 = vld [vmem:[%s11] sm:$0xf]
        %v1184 = vld [vmem:[%s11 + $0x4] sm:$0xf]
        %v1185 = vld [vmem:[%s11 + $0x8] sm:$0xf]
        %v1186 = vld [vmem:[%s11 + $0xc] sm:$0xf]
        %v1187 = vld [vmem:[%s11 + $0x10] sm:$0xf]
        %v1188 = vld [vmem:[%s11 + $0x14] sm:$0xf]
        %v1189 = vld [vmem:[%s11 + $0x18] sm:$0xf]
        %v1190 = vld [vmem:[%s11 + $0x1c] sm:$0xf]
        %v1191 = vld [vmem:[%s11 + $0x20] sm:$0xf]
        %v1192 = vld [vmem:[%s11 + $0x24] sm:$0xf]
        %v1193 = vld [vmem:[%s11 + $0x28] sm:$0xf]
        %v1194 = vld [vmem:[%s11 + $0x2c] sm:$0xf]
        %v1195 = vld [vmem:[%s11 + $0x30] sm:$0xf]
        %v1196 = vld [vmem:[%s11 + $0x34] sm:$0xf]
        %v1197 = vld [vmem:[%s11 + $0x38] sm:$0xf]
        %v1198 = vld [vmem:[%s11 + $0x3c] sm:$0xf]
        %v1199 = vld [vmem:[%s12] sm:$0x1]
        %v1201 = vlaneseq
        %v1202 = vshrl.u32 %v1201, 7
        %v1203 = vsub.s32 0, %v1202
        %v1204 = vrot.slane %v1199, %v1203
        %v1222 = vunpack.c.l.b16 %v1183
        %v1223 = vunpack.c.l.b16 %v1184
        %v1224 = vunpack.c.l.b16 %v1185
        %v1225 = vunpack.c.l.b16 %v1186
        %v1226 = vunpack.c.l.b16 %v1187
        %v1227 = vunpack.c.l.b16 %v1188
        %v1228 = vunpack.c.l.b16 %v1189
        %v1229 = vunpack.c.l.b16 %v1190
        %v1230 = vunpack.c.l.b16 %v1191
        %v1231 = vunpack.c.l.b16 %v1192
        %v1232 = vunpack.c.l.b16 %v1193
        %v1233 = vunpack.c.l.b16 %v1194
        %v1234 = vunpack.c.l.b16 %v1195
        %v1235 = vunpack.c.l.b16 %v1196
        %v1236 = vunpack.c.l.b16 %v1197
        %v1237 = vunpack.c.l.b16 %v1198
        %v1238 = vpack.c.b16 %v1223, %v1222
        %v1239 = vpack.c.b16 %v1225, %v1224
        %v1240 = vpack.c.b16 %v1227, %v1226
        %v1241 = vpack.c.b16 %v1229, %v1228
        %v1242 = vpack.c.b16 %v1231, %v1230
        %v1243 = vpack.c.b16 %v1233, %v1232
        %v1244 = vpack.c.b16 %v1235, %v1234
        %v1245 = vpack.c.b16 %v1237, %v1236
        %1254 = vmatprep.subr.bf16.mxu0 0
        %1255 = vmatpush1.bf16.msra.mxu0 %v1245
        %1256 = vmatprep.subr.bf16.mxu0 0
        %1257 = vmatpush1.bf16.msra.mxu0 %v1244
        %1258 = vmatprep.subr.bf16.mxu0 0
        %1259 = vmatpush1.bf16.msra.mxu0 %v1243
        %1260 = vmatprep.subr.bf16.mxu0 0
        %1261 = vmatpush1.bf16.msra.mxu0 %v1242
        %1262 = vmatprep.subr.bf16.mxu0 0
        %1263 = vmatpush1.bf16.msra.mxu0 %v1241
        %1264 = vmatprep.subr.bf16.mxu0 0
        %1265 = vmatpush1.bf16.msra.mxu0 %v1240
        %1266 = vmatprep.subr.bf16.mxu0 0
        %1267 = vmatpush1.bf16.msra.mxu0 %v1239
        %1268 = vmatprep.subr.bf16.mxu0 0
        %1269 = vmatpush1.bf16.msra.mxu0 %v1238
        %1270 = vmatprep.subr.bf16.mxu0 0
        %1271 = vmatpush2.bf16.msra.mxu0 0
        %1272 = vmatprep.subr.bf16.mxu0 0
        %1273 = vmatpush2.bf16.msra.mxu0 0
        %1274 = vmatprep.subr.bf16.mxu0 0
        %1275 = vmatpush2.bf16.msra.mxu0 0
        %1276 = vmatprep.subr.bf16.mxu0 0
        %1277 = vmatpush2.bf16.msra.mxu0 0
        %1278 = vmatprep.subr.bf16.mxu0 0
        %1279 = vmatpush2.bf16.msra.mxu0 0
        %1280 = vmatprep.subr.bf16.mxu0 0
        %1281 = vmatpush2.bf16.msra.mxu0 0
        %1282 = vmatprep.subr.bf16.mxu0 0
        %1283 = vmatpush2.bf16.msra.mxu0 0
        %1284 = vmatprep.subr.bf16.mxu0 0
        %1285 = vmatpush2.bf16.msra.mxu0 0
        %1286 = vmatprep.mubr.bf16.mxu0 0
        %1287 = vmatmul.mubr.bf16.gmra.mxu0 %v1182
        %v1288 = vpop.f32.mrf.mxu0
        %v1289 = vadd.f32 %v1204, %v1288
        %v1290 = vpop.f32.mrf.mxu0
        %v1291 = vpop.f32.mrf.mxu0
        %v1292 = vpop.f32.mrf.mxu0
        %1293 = vdwg.mxu0
        %v1294 = vadd.f32 %v1076, %v1289
        %1295 = vst.msk [vmem:[%s431] sm:$0xff] %vm440, %v1294
        %s1296 = sand.u32 %s313, 1
        %s1297 = scalar_lea.sflag [#allocation3], %s1296
        %s1298 = sand.u32 %s313, 1
        %s1299 = smul.addr %s1298, 8
        %s1300 = scalar_lea.vmem [#allocation2], %s1299
        // Predicated region
        $region73: #{tpu_custom_call.1} parent=71 // pred_check
          %p1301 = pneg %p323
        $region74: #{tpu_custom_call.1} parent=71 // pred_check_branch
          %1303 = sbr.rel (%p1301) target = $region76
        $region75: #{tpu_custom_call.1} parent=71 // pred_region
          %s1305 = ssub.s32 128, 128
          %1306 = vsyncadd %s1297, %s1305
          %s1307 = smul.addr %s27, 128
          %s1308 = scalar_lea.hbm %s13, %s1307
          %s1310 = sshll.u32 %s1300, 4
          %s1311 = int_to_ptr.vmem [resolvable:$true] %s1310
          %1313 = dma.vmem_to_hbm [thread:$0]  %s1311, 128, %s1308, %s1297
        $region76: #{tpu_custom_call.1} parent=71 // pred_fallthru
          _
      $region72: #{tpu_custom_call.1} parent=5 // pred_fallthru
        _
      %p1314 = scmp.le.s32.totalorder 2, %s22
      // Predicated region
      $region77: #{tpu_custom_call.1} parent=5 // pred_check
        %p1315 = pneg %p1314
      $region78: #{tpu_custom_call.1} parent=5 // pred_check_branch
        %1317 = sbr.rel (%p1315) target = $region80
      $region79: #{tpu_custom_call.1} parent=5 // pred_region
        %s1318 = ssub.s32 %s22, 2
        // Predicated region
        $region81: #{tpu_custom_call.1} parent=79 // pred_check
          %p1319 = pneg %p329
        $region82: #{tpu_custom_call.1} parent=79 // pred_check_branch
          %1321 = sbr.rel (%p1319) target = $region84
        $region83: #{tpu_custom_call.1} parent=79 // pred_region
          %s1322 = sand.u32 %s314, 1
          %s1323 = scalar_lea.sflag [#allocation3], %s1322
          %s1324 = sand.u32 %s314, 1
          %s1325 = smul.addr %s1324, 8
          %s1326 = scalar_lea.vmem [#allocation2], %s1325
          %1327 = dma.done %s1323, 128
        $region84: #{tpu_custom_call.1} parent=79 // pred_fallthru
          _
      $region80: #{tpu_custom_call.1} parent=5 // pred_fallthru
        _
    $region6: #{tpu_custom_call.1} parent=1 // loop_footer
      %s26 = sadd.s32 1, %s22
    $region7: #{tpu_custom_call.1} parent=1 // loop_footer_branch
      %21 = sbr.rel target = $region3
    $region8: #{tpu_custom_call.1} parent=1 // loop_exit
      _
    %1328 = vsyncpa [#allocation3], 1
    %s1329 = scalar_lea.sflag [#allocation3], 1
    %1330 = vsyncpa %s1329, 1

</llo_original>
